<compile_context>
chip_gen: v6e
topology: v6e:2x2x1
jax: 0.10.0
libtpu: 0.0.40
codegen_flags: <defaults>
</compile_context>

<pallas_src>
import functools

import jax
import jax.numpy as jnp
import numpy as np
from jax import lax
from jax.experimental import pallas as pl
from jax.experimental.pallas import tpu as pltpu


_TM = 512                       # M-tile rows (multiple of 8). Double-buffered
                                # tiles stay at a few MiB even for K=1152, so
                                # this fits the scoped-VMEM budget on v5e/v6e/v7x.
_VMEM_LIMIT = 32 * 1024 * 1024  # explicit scoped-VMEM limit (safe on all gens).


# ----------------------------- Pallas kernels ------------------------------

def _conv_gemm_kernel(p_ref, w_ref, b_ref, o_ref):
    # out = patches @ Wmat + bias        (bf16 inputs, f32 accumulation)
    acc = jnp.dot(p_ref[...], w_ref[...], preferred_element_type=jnp.float32)
    o_ref[...] = acc + b_ref[...]


def _conv_gemm_fused_kernel(p_ref, w_ref, b_ref, e_ref, o_ref, *, double_add):
    # v   = conv(x) = patches @ Wmat + bias
    # t   = relu(v + relu(v * e))        (epilogue kept in f32: v5e has no bf16 VPU)
    # out = v + t   (stage 1: v3..v7)    or    t   (stage 2: v10..v13)
    acc = jnp.dot(p_ref[...], w_ref[...], preferred_element_type=jnp.float32)
    v = acc + b_ref[...]
    t = jax.nn.relu(v + jax.nn.relu(v * e_ref[...]))
    o_ref[...] = (v + t) if double_add else t


def _gemm_call(kernel, patches, w_mat, bias, extra=None):
    """Conv-as-GEMM, tiled over M with BlockSpec auto-pipelining."""
    M, K = patches.shape
    Cout = w_mat.shape[1]
    tm = min(_TM, M)
    grid = (pl.cdiv(M, tm),)

    inputs = [patches, w_mat, bias.reshape(1, Cout)]
    in_specs = [
        pl.BlockSpec((tm, K), lambda i: (i, 0)),      # streamed M tile (bf16)
        pl.BlockSpec((K, Cout), lambda i: (0, 0)),    # resident weights (bf16)
        pl.BlockSpec((1, Cout), lambda i: (0, 0)),    # resident bias (f32)
    ]
    if extra is not None:
        inputs.append(extra)
        in_specs.append(pl.BlockSpec((tm, Cout), lambda i: (i, 0)))  # f32 epilogue operand

    return pl.pallas_call(
        kernel,
        out_shape=jax.ShapeDtypeStruct((M, Cout), jnp.float32),
        grid=grid,
        in_specs=in_specs,
        out_specs=pl.BlockSpec((tm, Cout), lambda i: (i, 0)),
        compiler_params=pltpu.CompilerParams(
            dimension_semantics=("parallel",),        # independent M tiles
            vmem_limit_bytes=_VMEM_LIMIT),
    )(*inputs)


# ------------------------------- JAX glue ----------------------------------

def _im2col_nhwc(x_nhwc, stride, pad=1, k=3):
    # TODO(synk): build the 9-tap patch tile inside the kernel from a haloed
    # NHWC row block (manual DMA) to avoid materializing the 9x-inflated patch
    # matrix in HBM; kept wrapper-side (in bf16, halving its traffic) for
    # lowering robustness.
    N, H, W, C = x_nhwc.shape
    xp = jnp.pad(x_nhwc, ((0, 0), (pad, pad), (pad, pad), (0, 0)))
    Hout = (H + 2 * pad - k) // stride + 1
    Wout = (W + 2 * pad - k) // stride + 1
    cols = []
    for kh in range(k):
        for kw in range(k):
            cols.append(
                xp[:, kh:kh + stride * Hout:stride, kw:kw + stride * Wout:stride, :])
    patches = jnp.concatenate(cols, axis=-1).astype(jnp.bfloat16)
    return patches.reshape(N * Hout * Wout, k * k * C), (N, Hout, Wout)


def _w_to_mat(w, cout_pad=None):
    # torch conv weight (Cout, Cin, kh, kw) -> (kh*kw*Cin, Cout[+pad]) in bf16,
    # matching the im2col tap order.
    Cout, Cin, kh, kw = w.shape
    m = jnp.transpose(w, (2, 3, 1, 0)).reshape(kh * kw * Cin, Cout)
    if cout_pad is not None and cout_pad > Cout:
        m = jnp.pad(m, ((0, 0), (0, cout_pad - Cout)))
    return m.astype(jnp.bfloat16)


def _nchw_to_flat(x):
    N, C, H, W = x.shape
    return jnp.transpose(x, (0, 2, 3, 1)).reshape(N * H * W, C)


# --------------------------------- Model -----------------------------------

class PallasModel:
    def __init__(self, key):
        k1, k2, k3 = jax.random.split(key, 3)

        def conv_init(k, cout, cin):
            kw_, kb_ = jax.random.split(k)
            bound = 1.0 / float(np.sqrt(cin * 9))
            w = jax.random.uniform(kw_, (cout, cin, 3, 3), jnp.float32, -bound, bound)
            b = jax.random.uniform(kb_, (cout,), jnp.float32, -bound, bound)
            return w, b

        self.w1, self.b1 = conv_init(k1, 64, 16)    # Conv2d(16, 64, 3, s=1, p=1)
        self.w2, self.b2 = conv_init(k2, 128, 64)   # Conv2d(64, 128, 3, s=2, p=1)
        self.w3, self.b3 = conv_init(k3, 16, 128)   # Conv2d(128, 16, 3, s=2, p=1)

    def __call__(self, x1, x2, x3):
        N = x1.shape[0]

        # One-time NCHW -> NHWC / flat conversion at the boundary; everything
        # downstream stays NHWC / flat (M, C) — no inter-stage transposes.
        x1_nhwc = jnp.transpose(x1, (0, 2, 3, 1))
        x2_flat = _nchw_to_flat(x2)     # f32 epilogue operand for stage 1
        x3_flat = _nchw_to_flat(x3)     # f32 epilogue operand for stage 2

        # stage 1: v1 = conv1(x1); v7 = v1 + relu(v1 + relu(v1 * x2))
        p1, (_, H1, W1) = _im2col_nhwc(x1_nhwc, stride=1)
        v7_flat = _gemm_call(
            functools.partial(_conv_gemm_fused_kernel, double_add=True),
            p1, _w_to_mat(self.w1), self.b1, x2_flat)
        v7_nhwc = v7_flat.reshape(N, H1, W1, 64)         # pure reshape, no transpose

        # stage 2: v8 = conv2(v7); v13 = relu(v8 + relu(v8 * x3))
        p2, (_, H2, W2) = _im2col_nhwc(v7_nhwc, stride=2)
        v13_flat = _gemm_call(
            functools.partial(_conv_gemm_fused_kernel, double_add=False),
            p2, _w_to_mat(self.w2), self.b2, x3_flat)
        v13_nhwc = v13_flat.reshape(N, H2, W2, 128)

        # stage 3: c3 = conv3(v13); Cout zero-padded 16 -> 128 in the weight
        # matrix so the kernel's output stores are lane-dense (unmasked vst).
        # TODO(synk): fold this tiny GEMM into the stage-2 kernel's epilogue
        # (requires a spatial-halo tiling of v13 rather than flat-M tiling).
        p3, (_, H3, W3) = _im2col_nhwc(v13_nhwc, stride=2)
        b3_pad = jnp.pad(self.b3, (0, 128 - 16))
        c3_pad = _gemm_call(_conv_gemm_kernel, p3,
                            _w_to_mat(self.w3, cout_pad=128), b3_pad)
        c3 = c3_pad[:, :16].reshape(N, H3, W3, 16)

        # TODO(synk): v14 = v8 + conv3(v13), v16 = v14 * x1 and v17..v19 are
        # invalid broadcasts in the source PyTorch module (128ch@H/2 vs
        # 16ch@H/4 vs 16ch@H) for every input shape and cannot be computed;
        # returning the last valid tensor.
        return jnp.transpose(c3, (0, 3, 1, 2))            # single NHWC->NCHW at the end


# ------------------------------ pure-JAX ref --------------------------------

def ref_forward(m, x1, x2, x3):
    # Reference with the same precision policy as the kernels: conv operands
    # (activations + weights) quantized to bf16, f32 accumulation, elementwise
    # epilogues in f32.
    def conv(x, w, b, stride):
        y = lax.conv_general_dilated(
            x.astype(jnp.bfloat16), w.astype(jnp.bfloat16),
            (stride, stride), ((1, 1), (1, 1)),
            dimension_numbers=("NCHW", "OIHW", "NCHW"),
            preferred_element_type=jnp.float32)
        return y + b.reshape(1, -1, 1, 1)

    v1 = conv(x1, m.w1, m.b1, 1)
    v7 = v1 + jax.nn.relu(v1 + jax.nn.relu(v1 * x2))
    v8 = conv(v7, m.w2, m.b2, 2)
    v13 = jax.nn.relu(v8 + jax.nn.relu(v8 * x3))
    return conv(v13, m.w3, m.b3, 2)


if __name__ == "__main__":
    key = jax.random.PRNGKey(0)
    kx1, kx2, kx3, kp = jax.random.split(key, 4)

    N, H, W = 2, 32, 32
    # NCHW inputs, shapes chosen so the valid broadcasts (v3, v10) line up.
    x1 = jax.random.normal(kx1, (N, 16, H, W), jnp.float32)
    x2 = jax.random.normal(kx2, (N, 64, H, W), jnp.float32)
    x3 = jax.random.normal(kx3, (N, 128, H // 2, W // 2), jnp.float32)

    model = PallasModel(kp)
    fwd = jax.jit(model.__call__)
    out = jax.block_until_ready(fwd(x1, x2, x3))

    ref = jax.block_until_ready(ref_forward(model, x1, x2, x3))
    assert out.shape == (N, 16, H // 4, W // 4)
    np.testing.assert_allclose(np.asarray(out), np.asarray(ref),
                               rtol=2e-3, atol=2e-3)

    print("KERNEL_OK")
</pallas_src>

<mosaic_0001>
module attributes {stable_mosaic.version = 11 : i64} {
  func.func @_conv_gemm_fused_kernel(%arg0: i32, %arg1: memref<512x144xbf16, #tpu.memory_space<vmem>>, %arg2: memref<144x64xbf16, #tpu.memory_space<vmem>>, %arg3: memref<1x64xf32, #tpu.memory_space<vmem>>, %arg4: memref<512x64xf32, #tpu.memory_space<vmem>>, %arg5: memref<512x64xf32, #tpu.memory_space<vmem>>) attributes {dimension_semantics = [#tpu.dimension_semantics<parallel>], iteration_bounds = array<i64: 4>, scalar_prefetch = 0 : i64, scratch_operands = 0 : i64, tpu.core_type = #tpu.core_type<tc>, window_params = [{transform_indices = @transform_0, window_bounds = array<i64: 512, 144>}, {pipeline_mode = #tpu.pipeline_mode<synchronous>, transform_indices = @transform_1, window_bounds = array<i64: 144, 64>}, {pipeline_mode = #tpu.pipeline_mode<synchronous>, transform_indices = @transform_2, window_bounds = array<i64: 1, 64>}, {transform_indices = @transform_3, window_bounds = array<i64: 512, 64>}, {transform_indices = @transform_4, window_bounds = array<i64: 512, 64>}]} {
    %c0 = arith.constant 0 : index
    %c0_0 = arith.constant 0 : index
    %0 = vector.load %arg1[%c0, %c0_0] : memref<512x144xbf16, #tpu.memory_space<vmem>>, vector<512x144xbf16>
    %c0_1 = arith.constant 0 : index
    %c0_2 = arith.constant 0 : index
    %1 = vector.load %arg2[%c0_1, %c0_2] : memref<144x64xbf16, #tpu.memory_space<vmem>>, vector<144x64xbf16>
    %cst = arith.constant dense<0.000000e+00> : vector<512x64xf32>
    %2 = tpu.matmul %0, %1, %cst {dimension_numbers = #tpu.dot_dimension_numbers<[1], [0], [0], [1], [0, 0, 1, 1], [], []>} : vector<512x144xbf16>, vector<144x64xbf16>, vector<512x64xf32> -> vector<512x64xf32>
    %c0_3 = arith.constant 0 : index
    %c0_4 = arith.constant 0 : index
    %3 = vector.load %arg3[%c0_3, %c0_4] : memref<1x64xf32, #tpu.memory_space<vmem>>, vector<1x64xf32>
    %4 = vector.broadcast %3 : vector<1x64xf32> to vector<512x64xf32>
    %5 = arith.addf %2, %4 : vector<512x64xf32>
    %c0_5 = arith.constant 0 : index
    %c0_6 = arith.constant 0 : index
    %6 = vector.load %arg4[%c0_5, %c0_6] : memref<512x64xf32, #tpu.memory_space<vmem>>, vector<512x64xf32>
    %7 = arith.mulf %5, %6 : vector<512x64xf32>
    %cst_7 = arith.constant 0.000000e+00 : f32
    %8 = vector.broadcast %cst_7 : f32 to vector<512x64xf32>
    %9 = arith.maximumf %7, %8 : vector<512x64xf32>
    %10 = arith.addf %5, %9 : vector<512x64xf32>
    %cst_8 = arith.constant 0.000000e+00 : f32
    %11 = vector.broadcast %cst_8 : f32 to vector<512x64xf32>
    %12 = arith.maximumf %10, %11 : vector<512x64xf32>
    %13 = arith.addf %5, %12 : vector<512x64xf32>
    %c0_9 = arith.constant 0 : index
    %c0_10 = arith.constant 0 : index
    %14 = vector.load %arg5[%c0_9, %c0_10] : memref<512x64xf32, #tpu.memory_space<vmem>>, vector<512x64xf32>
    tpu.vector_store %arg5[%c0_9, %c0_10], %13 {strides = array<i32>} : memref<512x64xf32, #tpu.memory_space<vmem>>, vector<512x64xf32>,
    return
  }
  func.func @transform_0(%arg0: i32) -> (i32, i32) {
    %c0_i32 = arith.constant 0 : i32
    %c0_i32_0 = arith.constant 0 : i32
    return %arg0, %c0_i32 : i32, i32
  }
  func.func @transform_1(%arg0: i32) -> (i32, i32) {
    %c0_i32 = arith.constant 0 : i32
    %c0_i32_0 = arith.constant 0 : i32
    %c0_i32_1 = arith.constant 0 : i32
    return %c0_i32, %c0_i32_0 : i32, i32
  }
  func.func @transform_2(%arg0: i32) -> (i32, i32) {
    %c0_i32 = arith.constant 0 : i32
    %c0_i32_0 = arith.constant 0 : i32
    %c0_i32_1 = arith.constant 0 : i32
    return %c0_i32, %c0_i32_0 : i32, i32
  }
  func.func @transform_3(%arg0: i32) -> (i32, i32) {
    %c0_i32 = arith.constant 0 : i32
    %c0_i32_0 = arith.constant 0 : i32
    return %arg0, %c0_i32 : i32, i32
  }
  func.func @transform_4(%arg0: i32) -> (i32, i32) {
    %c0_i32 = arith.constant 0 : i32
    %c0_i32_0 = arith.constant 0 : i32
    return %arg0, %c0_i32 : i32, i32
  }
}

module attributes {stable_mosaic.version = 11 : i64} {
  func.func @_conv_gemm_fused_kernel(%arg0: i32, %arg1: memref<512x576xbf16, #tpu.memory_space<vmem>>, %arg2: memref<576x128xbf16, #tpu.memory_space<vmem>>, %arg3: memref<1x128xf32, #tpu.memory_space<vmem>>, %arg4: memref<512x128xf32, #tpu.memory_space<vmem>>, %arg5: memref<512x128xf32, #tpu.memory_space<vmem>>) attributes {dimension_semantics = [#tpu.dimension_semantics<parallel>], iteration_bounds = array<i64: 1>, scalar_prefetch = 0 : i64, scratch_operands = 0 : i64, tpu.core_type = #tpu.core_type<tc>, window_params = [{transform_indices = @transform_0, window_bounds = array<i64: 512, 576>}, {pipeline_mode = #tpu.pipeline_mode<synchronous>, transform_indices = @transform_1, window_bounds = array<i64: 576, 128>}, {pipeline_mode = #tpu.pipeline_mode<synchronous>, transform_indices = @transform_2, window_bounds = array<i64: 1, 128>}, {transform_indices = @transform_3, window_bounds = array<i64: 512, 128>}, {transform_indices = @transform_4, window_bounds = array<i64: 512, 128>}]} {
    %c0 = arith.constant 0 : index
    %c0_0 = arith.constant 0 : index
    %0 = vector.load %arg1[%c0, %c0_0] : memref<512x576xbf16, #tpu.memory_space<vmem>>, vector<512x576xbf16>
    %c0_1 = arith.constant 0 : index
    %c0_2 = arith.constant 0 : index
    %1 = vector.load %arg2[%c0_1, %c0_2] : memref<576x128xbf16, #tpu.memory_space<vmem>>, vector<576x128xbf16>
    %cst = arith.constant dense<0.000000e+00> : vector<512x128xf32>
    %2 = tpu.matmul %0, %1, %cst {dimension_numbers = #tpu.dot_dimension_numbers<[1], [0], [0], [1], [0, 0, 1, 1], [], []>} : vector<512x576xbf16>, vector<576x128xbf16>, vector<512x128xf32> -> vector<512x128xf32>
    %c0_3 = arith.constant 0 : index
    %c0_4 = arith.constant 0 : index
    %3 = vector.load %arg3[%c0_3, %c0_4] : memref<1x128xf32, #tpu.memory_space<vmem>>, vector<1x128xf32>
    %4 = vector.broadcast %3 : vector<1x128xf32> to vector<512x128xf32>
    %5 = arith.addf %2, %4 : vector<512x128xf32>
    %c0_5 = arith.constant 0 : index
    %c0_6 = arith.constant 0 : index
    %6 = vector.load %arg4[%c0_5, %c0_6] : memref<512x128xf32, #tpu.memory_space<vmem>>, vector<512x128xf32>
    %7 = arith.mulf %5, %6 : vector<512x128xf32>
    %cst_7 = arith.constant 0.000000e+00 : f32
    %8 = vector.broadcast %cst_7 : f32 to vector<512x128xf32>
    %9 = arith.maximumf %7, %8 : vector<512x128xf32>
    %10 = arith.addf %5, %9 : vector<512x128xf32>
    %cst_8 = arith.constant 0.000000e+00 : f32
    %11 = vector.broadcast %cst_8 : f32 to vector<512x128xf32>
    %12 = arith.maximumf %10, %11 : vector<512x128xf32>
    %c0_9 = arith.constant 0 : index
    %c0_10 = arith.constant 0 : index
    %13 = vector.load %arg5[%c0_9, %c0_10] : memref<512x128xf32, #tpu.memory_space<vmem>>, vector<512x128xf32>
    tpu.vector_store %arg5[%c0_9, %c0_10], %12 {strides = array<i32>} : memref<512x128xf32, #tpu.memory_space<vmem>>, vector<512x128xf32>,
    return
  }
  func.func @transform_0(%arg0: i32) -> (i32, i32) {
    %c0_i32 = arith.constant 0 : i32
    %c0_i32_0 = arith.constant 0 : i32
    return %arg0, %c0_i32 : i32, i32
  }
  func.func @transform_1(%arg0: i32) -> (i32, i32) {
    %c0_i32 = arith.constant 0 : i32
    %c0_i32_0 = arith.constant 0 : i32
    %c0_i32_1 = arith.constant 0 : i32
    return %c0_i32, %c0_i32_0 : i32, i32
  }
  func.func @transform_2(%arg0: i32) -> (i32, i32) {
    %c0_i32 = arith.constant 0 : i32
    %c0_i32_0 = arith.constant 0 : i32
    %c0_i32_1 = arith.constant 0 : i32
    return %c0_i32, %c0_i32_0 : i32, i32
  }
  func.func @transform_3(%arg0: i32) -> (i32, i32) {
    %c0_i32 = arith.constant 0 : i32
    %c0_i32_0 = arith.constant 0 : i32
    return %arg0, %c0_i32 : i32, i32
  }
  func.func @transform_4(%arg0: i32) -> (i32, i32) {
    %c0_i32 = arith.constant 0 : i32
    %c0_i32_0 = arith.constant 0 : i32
    return %arg0, %c0_i32 : i32, i32
  }
}

module attributes {stable_mosaic.version = 11 : i64} {
  func.func @_conv_gemm_kernel(%arg0: i32, %arg1: memref<128x1152xbf16, #tpu.memory_space<vmem>>, %arg2: memref<1152x128xbf16, #tpu.memory_space<vmem>>, %arg3: memref<1x128xf32, #tpu.memory_space<vmem>>, %arg4: memref<128x128xf32, #tpu.memory_space<vmem>>) attributes {dimension_semantics = [#tpu.dimension_semantics<parallel>], iteration_bounds = array<i64: 1>, scalar_prefetch = 0 : i64, scratch_operands = 0 : i64, tpu.core_type = #tpu.core_type<tc>, window_params = [{transform_indices = @transform_0, window_bounds = array<i64: 128, 1152>}, {pipeline_mode = #tpu.pipeline_mode<synchronous>, transform_indices = @transform_1, window_bounds = array<i64: 1152, 128>}, {pipeline_mode = #tpu.pipeline_mode<synchronous>, transform_indices = @transform_2, window_bounds = array<i64: 1, 128>}, {transform_indices = @transform_3, window_bounds = array<i64: 128, 128>}]} {
    %c0 = arith.constant 0 : index
    %c0_0 = arith.constant 0 : index
    %0 = vector.load %arg1[%c0, %c0_0] : memref<128x1152xbf16, #tpu.memory_space<vmem>>, vector<128x1152xbf16>
    %c0_1 = arith.constant 0 : index
    %c0_2 = arith.constant 0 : index
    %1 = vector.load %arg2[%c0_1, %c0_2] : memref<1152x128xbf16, #tpu.memory_space<vmem>>, vector<1152x128xbf16>
    %cst = arith.constant dense<0.000000e+00> : vector<128x128xf32>
    %2 = tpu.matmul %0, %1, %cst {dimension_numbers = #tpu.dot_dimension_numbers<[1], [0], [0], [1], [0, 0, 1, 1], [], []>} : vector<128x1152xbf16>, vector<1152x128xbf16>, vector<128x128xf32> -> vector<128x128xf32>
    %c0_3 = arith.constant 0 : index
    %c0_4 = arith.constant 0 : index
    %3 = vector.load %arg3[%c0_3, %c0_4] : memref<1x128xf32, #tpu.memory_space<vmem>>, vector<1x128xf32>
    %4 = vector.broadcast %3 : vector<1x128xf32> to vector<128x128xf32>
    %5 = arith.addf %2, %4 : vector<128x128xf32>
    %c0_5 = arith.constant 0 : index
    %c0_6 = arith.constant 0 : index
    %6 = vector.load %arg4[%c0_5, %c0_6] : memref<128x128xf32, #tpu.memory_space<vmem>>, vector<128x128xf32>
    tpu.vector_store %arg4[%c0_5, %c0_6], %5 {strides = array<i32>} : memref<128x128xf32, #tpu.memory_space<vmem>>, vector<128x128xf32>,
    return
  }
  func.func @transform_0(%arg0: i32) -> (i32, i32) {
    %c0_i32 = arith.constant 0 : i32
    %c0_i32_0 = arith.constant 0 : i32
    return %arg0, %c0_i32 : i32, i32
  }
  func.func @transform_1(%arg0: i32) -> (i32, i32) {
    %c0_i32 = arith.constant 0 : i32
    %c0_i32_0 = arith.constant 0 : i32
    %c0_i32_1 = arith.constant 0 : i32
    return %c0_i32, %c0_i32_0 : i32, i32
  }
  func.func @transform_2(%arg0: i32) -> (i32, i32) {
    %c0_i32 = arith.constant 0 : i32
    %c0_i32_0 = arith.constant 0 : i32
    %c0_i32_1 = arith.constant 0 : i32
    return %c0_i32, %c0_i32_0 : i32, i32
  }
  func.func @transform_3(%arg0: i32) -> (i32, i32) {
    %c0_i32 = arith.constant 0 : i32
    %c0_i32_0 = arith.constant 0 : i32
    return %arg0, %c0_i32 : i32, i32
  }
}

</mosaic_0001>

<llo_original>
// kernel: a_call__.3
$region0: #{a_call__.3}
  #allocation0 [shape = 'u32[]', space=smem, size = 0x4, offset = 0x4, fixed_abs, tag = 'smem constant byte address 0x4 - core index']
  #allocation1 [shape = 'u32[144,128]{1,0:T(1,128)}', space=vmem, size = 0x12000, scoped, tag = 'internal scratch']
  %s0 = inlined_call_operand.vmem [shape: bf16[2048,144], index: 0, kind: input, shape index: {}]
  %s1 = inlined_call_operand.vmem [shape: bf16[144,64], index: 1, kind: input, shape index: {}]
  %s2 = inlined_call_operand.vmem [shape: f32[1,64], index: 2, kind: input, shape index: {}]
  %s3 = inlined_call_operand.vmem [shape: f32[2048,64], index: 3, kind: input, shape index: {}]
  %s4 = inlined_call_operand.vmem [shape: f32[2048,64], index: 4, kind: output, shape index: {}]
  %s5 = sld [smem:[#allocation0]]
  $region49: #{a_call__.3} parent=0
    _
  %s7 = ssub.s32 1, %s5
  %s8 = scalar_select 0, %s7, %s5
  loop: start=0, step=1, limit=6
  $region2: #{a_call__.3} parent=0 // loop_pre_header
    _
  $region3: #{a_call__.3} parent=0 // loop_header
    %s10 = sphi 0, %s14
    %p11 = scmp.ge.s32.totalorder %s10, 6
    %s20 = sphi 0, %s22
    %s23 = sphi 0, %s20
    %s24 = sphi 0, %s23
    %s40 = sphi 0, %s24
    %s44 = sphi 0, %s44
    %s46 = sphi 0, %s44
    %s47 = sphi 0, %s46
    %s61 = sphi 0, %s47
    %s65 = sphi 0, %s65
    %s67 = sphi 0, %s65
    %s68 = sphi 0, %s67
    %s82 = sphi 0, %s68
    %s88 = sphi 0, %s90
    %s91 = sphi 0, %s88
    %s92 = sphi 0, %s91
    %s108 = sphi 0, %s92
    %s114 = sphi 0, %s116
    %s117 = sphi 0, %s114
    %s118 = sphi 0, %s117
    %s134 = sphi 0, %s118
  $region4: #{a_call__.3} parent=0 // loop_header_branch
    %13 = sbr.rel (%p11) target = $region8
  $region5: #{a_call__.3} parent=0 // loop_body
    %s15 = ssub.s32 %s10, 1
    %s16 = ssub.s32 %s10, 2
    %s17 = sadd.s32 %s10, 1
    %s18 = ssub.s32 %s10, %s17
    %p19 = scmp.eq.s32.totalorder %s18, 0
    %s21 = sadd.s32 %s20, 1
    %s22 = scalar_select %p19, %s20, %s21
    %p25 = pneg %p19
    %p26 = scmp.eq.s32.totalorder %s10, 3
    %p27 = por %p25, %p26
    %p28 = scmp.ne.s32.totalorder %s20, %s23
    %p29 = scmp.eq.s32.totalorder %s10, 0
    %p30 = por %p28, %p29
    %p31 = scmp.ne.s32.totalorder %s20, %s23
    %p32 = scmp.eq.s32.totalorder %s15, 3
    %p33 = por %p31, %p32
    %p34 = scmp.ne.s32.totalorder %s23, %s24
    %p35 = scmp.eq.s32.totalorder %s15, 0
    %p36 = por %p34, %p35
    %p37 = scmp.ne.s32.totalorder %s23, %s24
    %p38 = scmp.eq.s32.totalorder %s16, 3
    %p39 = por %p37, %p38
    %p41 = scmp.ne.s32.totalorder %s24, %s40
    %p42 = scmp.eq.s32.totalorder %s16, 0
    %p43 = por %p41, %p42
    %s45 = sadd.s32 %s44, 1
    %p48 = scmp.eq.s32.totalorder %s10, 3
    %p49 = scmp.ne.s32.totalorder %s44, %s46
    %p50 = scmp.eq.s32.totalorder %s10, 0
    %p51 = por %p49, %p50
    %p52 = scmp.ne.s32.totalorder %s44, %s46
    %p53 = scmp.eq.s32.totalorder %s15, 3
    %p54 = por %p52, %p53
    %p55 = scmp.ne.s32.totalorder %s46, %s47
    %p56 = scmp.eq.s32.totalorder %s15, 0
    %p57 = por %p55, %p56
    %p58 = scmp.ne.s32.totalorder %s46, %s47
    %p59 = scmp.eq.s32.totalorder %s16, 3
    %p60 = por %p58, %p59
    %p62 = scmp.ne.s32.totalorder %s47, %s61
    %p63 = scmp.eq.s32.totalorder %s16, 0
    %p64 = por %p62, %p63
    %s66 = sadd.s32 %s65, 1
    %p69 = scmp.eq.s32.totalorder %s10, 3
    %p70 = scmp.ne.s32.totalorder %s65, %s67
    %p71 = scmp.eq.s32.totalorder %s10, 0
    %p72 = por %p70, %p71
    %p73 = scmp.ne.s32.totalorder %s65, %s67
    %p74 = scmp.eq.s32.totalorder %s15, 3
    %p75 = por %p73, %p74
    %p76 = scmp.ne.s32.totalorder %s67, %s68
    %p77 = scmp.eq.s32.totalorder %s15, 0
    %p78 = por %p76, %p77
    %p79 = scmp.ne.s32.totalorder %s67, %s68
    %p80 = scmp.eq.s32.totalorder %s16, 3
    %p81 = por %p79, %p80
    %p83 = scmp.ne.s32.totalorder %s68, %s82
    %p84 = scmp.eq.s32.totalorder %s16, 0
    %p85 = por %p83, %p84
    %s86 = ssub.s32 %s10, %s17
    %p87 = scmp.eq.s32.totalorder %s86, 0
    %s89 = sadd.s32 %s88, 1
    %s90 = scalar_select %p87, %s88, %s89
    %p93 = pneg %p87
    %p94 = scmp.eq.s32.totalorder %s10, 3
    %p95 = por %p93, %p94
    %p96 = scmp.ne.s32.totalorder %s88, %s91
    %p97 = scmp.eq.s32.totalorder %s10, 0
    %p98 = por %p96, %p97
    %p99 = scmp.ne.s32.totalorder %s88, %s91
    %p100 = scmp.eq.s32.totalorder %s15, 3
    %p101 = por %p99, %p100
    %p102 = scmp.ne.s32.totalorder %s91, %s92
    %p103 = scmp.eq.s32.totalorder %s15, 0
    %p104 = por %p102, %p103
    %p105 = scmp.ne.s32.totalorder %s91, %s92
    %p106 = scmp.eq.s32.totalorder %s16, 3
    %p107 = por %p105, %p106
    %p109 = scmp.ne.s32.totalorder %s92, %s108
    %p110 = scmp.eq.s32.totalorder %s16, 0
    %p111 = por %p109, %p110
    %s112 = ssub.s32 %s10, %s17
    %p113 = scmp.eq.s32.totalorder %s112, 0
    %s115 = sadd.s32 %s114, 1
    %s116 = scalar_select %p113, %s114, %s115
    %p119 = pneg %p113
    %p120 = scmp.eq.s32.totalorder %s10, 3
    %p121 = por %p119, %p120
    %p122 = scmp.ne.s32.totalorder %s114, %s117
    %p123 = scmp.eq.s32.totalorder %s10, 0
    %p124 = por %p122, %p123
    %p125 = scmp.ne.s32.totalorder %s114, %s117
    %p126 = scmp.eq.s32.totalorder %s15, 3
    %p127 = por %p125, %p126
    %p128 = scmp.ne.s32.totalorder %s117, %s118
    %p129 = scmp.eq.s32.totalorder %s15, 0
    %p130 = por %p128, %p129
    %p131 = scmp.ne.s32.totalorder %s117, %s118
    %p132 = scmp.eq.s32.totalorder %s16, 3
    %p133 = por %p131, %p132
    %p135 = scmp.ne.s32.totalorder %s118, %s134
    %p136 = scmp.eq.s32.totalorder %s16, 0
    %p137 = por %p135, %p136
    %p138 = scmp.le.s32.totalorder 1, %s10
    %p139 = scmp.lt.s32.totalorder %s10, 5
    %p140 = pnand %p138, %p139
    %p141 = pneg %p140
    // Predicated region
    $region9: #{a_call__.3} parent=5 // pred_check
      _
    $region10: #{a_call__.3} parent=5 // pred_check_branch
      %143 = sbr.rel (%p140) target = $region12
    $region11: #{a_call__.3} parent=5 // pred_region
      %s144 = ssub.s32 %s10, 1
      // Predicated region
      $region13: #{a_call__.3} parent=11 // pred_check
        %p145 = pneg %p57
      $region14: #{a_call__.3} parent=11 // pred_check_branch
        %147 = sbr.rel (%p145) target = $region16
      $region15: #{a_call__.3} parent=11 // pred_region
        _
      $region16: #{a_call__.3} parent=11 // pred_fallthru
        _
      // Predicated region
      $region17: #{a_call__.3} parent=11 // pred_check
        %p148 = pneg %p78
      $region18: #{a_call__.3} parent=11 // pred_check_branch
        %150 = sbr.rel (%p148) target = $region20
      $region19: #{a_call__.3} parent=11 // pred_region
        _
      $region20: #{a_call__.3} parent=11 // pred_fallthru
        _
    $region12: #{a_call__.3} parent=5 // pred_fallthru
      _
    %p151 = scmp.lt.s32.totalorder %s10, 4
    // Predicated region
    $region21: #{a_call__.3} parent=5 // pred_check
      %p152 = pneg %p151
    $region22: #{a_call__.3} parent=5 // pred_check_branch
      %154 = sbr.rel (%p152) target = $region24
    $region23: #{a_call__.3} parent=5 // pred_region
      // Predicated region
      $region25: #{a_call__.3} parent=23 // pred_check
        %p155 = pneg %p30
      $region26: #{a_call__.3} parent=23 // pred_check_branch
        %157 = sbr.rel (%p155) target = $region28
      $region27: #{a_call__.3} parent=23 // pred_region
        %s158 = smul.u32 64, %s10
        %p159 = scmp.lt.s32.totalorder %s158, 255
        %s160 = scalar_select %p159, %s158, 255
        %s161 = smul.addr %s160, 2
        %s162 = smul.addr %s161, 4
        %s163 = scalar_lea.vmem %s0, %s162
        %s164 = smul.u32 64, %s10
      $region28: #{a_call__.3} parent=23 // pred_fallthru
        _
      // Predicated region
      $region29: #{a_call__.3} parent=23 // pred_check
        %p165 = pneg %p98
      $region30: #{a_call__.3} parent=23 // pred_check_branch
        %167 = sbr.rel (%p165) target = $region32
      $region31: #{a_call__.3} parent=23 // pred_region
        %s168 = smul.u32 64, %s10
        %p169 = scmp.lt.s32.totalorder %s168, 255
        %s170 = scalar_select %p169, %s168, 255
        %s171 = smul.addr %s170, 8
        %s172 = scalar_lea.vmem %s3, %s171
        %s173 = smul.u32 64, %s10
      $region32: #{a_call__.3} parent=23 // pred_fallthru
        _
    $region24: #{a_call__.3} parent=5 // pred_fallthru
      _
    %p174 = scmp.le.s32.totalorder 1, %s10
    %p175 = scmp.lt.s32.totalorder %s10, 5
    %p176 = pnand %p174, %p175
    %p177 = pneg %p176
    // Predicated region
    $region33: #{a_call__.3} parent=5 // pred_check
      _
    $region34: #{a_call__.3} parent=5 // pred_check_branch
      %179 = sbr.rel (%p176) target = $region36
    $region35: #{a_call__.3} parent=5 // pred_region
      %s180 = ssub.s32 %s10, 1
      %s181 = smul.u32 64, %s15
      %p182 = scmp.lt.s32.totalorder %s181, 255
      %s183 = scalar_select %p182, %s181, 255
      %s184 = smul.addr %s183, 2
      %s185 = smul.addr %s184, 4
      %s186 = scalar_lea.vmem %s0, %s185
      %p187 = pneg %p36
      %p188 = pneg %p33
      %p189 = pneg %p57
      %p190 = pneg %p54
      %p191 = pneg %p78
      %p192 = pneg %p75
      %s193 = smul.u32 64, %s15
      %p194 = scmp.lt.s32.totalorder %s193, 255
      %s195 = scalar_select %p194, %s193, 255
      %s196 = smul.addr %s195, 8
      %s197 = scalar_lea.vmem %s3, %s196
      %p198 = pneg %p104
      %p199 = pneg %p101
      %p200 = pneg %p130
      %p201 = pneg %p127
      %s202 = smul.u32 64, %s15
      %p203 = scmp.lt.s32.totalorder %s202, 255
      %s204 = scalar_select %p203, %s202, 255
      %s205 = smul.addr %s204, 8
      %s206 = scalar_lea.vmem %s4, %s205
      %s207 = smul.u32 64, %s15
      %p208 = scmp.lt.s32.totalorder %s207, 255
      %s209 = scalar_select %p208, %s207, 255
      %s210 = smul.addr %s209, 2
      %s211 = smul.addr %s210, 4
      %s212 = scalar_lea.vmem %s0, %s211
      %s213 = smul.u32 64, %s15
      %s214 = smul.u32 64, %s15
      %p215 = scmp.lt.s32.totalorder %s214, 255
      %s216 = scalar_select %p215, %s214, 255
      %s217 = smul.addr %s216, 8
      %s218 = scalar_lea.vmem %s3, %s217
      %s219 = smul.u32 64, %s15
      %s220 = smul.u32 64, %s15
      %p221 = scmp.lt.s32.totalorder %s220, 255
      %s222 = scalar_select %p221, %s220, 255
      %s223 = smul.addr %s222, 8
      %s224 = scalar_lea.vmem %s4, %s223
      %s225 = smul.u32 64, %s15
      %v227 = vld [vmem:[%s212] sm:$0xff]
      %v228 = vld [vmem:[%s212 + $0x8] sm:$0xff]
      %v229 = vld [vmem:[%s212 + $0x10] sm:$0xff]
      %v230 = vld [vmem:[%s212 + $0x18] sm:$0xff]
      %v231 = vld [vmem:[%s212 + $0x20] sm:$0xff]
      %v232 = vld [vmem:[%s212 + $0x28] sm:$0xff]
      %v233 = vld [vmem:[%s212 + $0x30] sm:$0xff]
      %v234 = vld [vmem:[%s212 + $0x38] sm:$0xff]
      %v235 = vld [vmem:[%s212 + $0x40] sm:$0xff]
      %v236 = vld [vmem:[%s212 + $0x48] sm:$0xff]
      %v237 = vld [vmem:[%s212 + $0x50] sm:$0xff]
      %v238 = vld [vmem:[%s212 + $0x58] sm:$0xff]
      %v239 = vld [vmem:[%s212 + $0x60] sm:$0xff]
      %v240 = vld [vmem:[%s212 + $0x68] sm:$0xff]
      %v241 = vld [vmem:[%s212 + $0x70] sm:$0xff]
      %v242 = vld [vmem:[%s212 + $0x78] sm:$0xff]
      %v243 = vld [vmem:[%s212 + $0x80] sm:$0xff]
      %v244 = vld [vmem:[%s212 + $0x88] sm:$0xff]
      %v245 = vld [vmem:[%s212 + $0x90] sm:$0xff]
      %v246 = vld [vmem:[%s212 + $0x98] sm:$0xff]
      %v247 = vld [vmem:[%s212 + $0xa0] sm:$0xff]
      %v248 = vld [vmem:[%s212 + $0xa8] sm:$0xff]
      %v249 = vld [vmem:[%s212 + $0xb0] sm:$0xff]
      %v250 = vld [vmem:[%s212 + $0xb8] sm:$0xff]
      %v251 = vld [vmem:[%s212 + $0xc0] sm:$0xff]
      %v252 = vld [vmem:[%s212 + $0xc8] sm:$0xff]
      %v253 = vld [vmem:[%s212 + $0xd0] sm:$0xff]
      %v254 = vld [vmem:[%s212 + $0xd8] sm:$0xff]
      %v255 = vld [vmem:[%s212 + $0xe0] sm:$0xff]
      %v256 = vld [vmem:[%s212 + $0xe8] sm:$0xff]
      %v257 = vld [vmem:[%s212 + $0xf0] sm:$0xff]
      %v258 = vld [vmem:[%s212 + $0xf8] sm:$0xff]
      %v259 = vld [vmem:[%s212 + $0x100] sm:$0xff]
      %v260 = vld [vmem:[%s212 + $0x108] sm:$0xff]
      %v261 = vld [vmem:[%s212 + $0x110] sm:$0xff]
      %v262 = vld [vmem:[%s212 + $0x118] sm:$0xff]
      %v263 = vld [vmem:[%s212 + $0x120] sm:$0xff]
      %v264 = vld [vmem:[%s212 + $0x128] sm:$0xff]
      %v265 = vld [vmem:[%s212 + $0x130] sm:$0xff]
      %v266 = vld [vmem:[%s212 + $0x138] sm:$0xff]
      %v267 = vld [vmem:[%s212 + $0x140] sm:$0xff]
      %v268 = vld [vmem:[%s212 + $0x148] sm:$0xff]
      %v269 = vld [vmem:[%s212 + $0x150] sm:$0xff]
      %v270 = vld [vmem:[%s212 + $0x158] sm:$0xff]
      %v271 = vld [vmem:[%s212 + $0x160] sm:$0xff]
      %v272 = vld [vmem:[%s212 + $0x168] sm:$0xff]
      %v273 = vld [vmem:[%s212 + $0x170] sm:$0xff]
      %v274 = vld [vmem:[%s212 + $0x178] sm:$0xff]
      %v275 = vld [vmem:[%s212 + $0x180] sm:$0xff]
      %v276 = vld [vmem:[%s212 + $0x188] sm:$0xff]
      %v277 = vld [vmem:[%s212 + $0x190] sm:$0xff]
      %v278 = vld [vmem:[%s212 + $0x198] sm:$0xff]
      %v279 = vld [vmem:[%s212 + $0x1a0] sm:$0xff]
      %v280 = vld [vmem:[%s212 + $0x1a8] sm:$0xff]
      %v281 = vld [vmem:[%s212 + $0x1b0] sm:$0xff]
      %v282 = vld [vmem:[%s212 + $0x1b8] sm:$0xff]
      %v283 = vld [vmem:[%s212 + $0x1c0] sm:$0xff]
      %v284 = vld [vmem:[%s212 + $0x1c8] sm:$0xff]
      %v285 = vld [vmem:[%s212 + $0x1d0] sm:$0xff]
      %v286 = vld [vmem:[%s212 + $0x1d8] sm:$0xff]
      %v287 = vld [vmem:[%s212 + $0x1e0] sm:$0xff]
      %v288 = vld [vmem:[%s212 + $0x1e8] sm:$0xff]
      %v289 = vld [vmem:[%s212 + $0x1f0] sm:$0xff]
      %v290 = vld [vmem:[%s212 + $0x1f8] sm:$0xff]
      %v291 = vld [vmem:[%s1] sm:$0xf]
      %v292 = vld [vmem:[%s1 + $0x4] sm:$0xf]
      %v293 = vld [vmem:[%s1 + $0x8] sm:$0xf]
      %v294 = vld [vmem:[%s1 + $0xc] sm:$0xf]
      %v295 = vld [vmem:[%s1 + $0x10] sm:$0xf]
      %v296 = vld [vmem:[%s1 + $0x14] sm:$0xf]
      %v297 = vld [vmem:[%s1 + $0x18] sm:$0xf]
      %v298 = vld [vmem:[%s1 + $0x1c] sm:$0xf]
      %v299 = vld [vmem:[%s1 + $0x20] sm:$0xf]
      %v300 = vld [vmem:[%s1 + $0x24] sm:$0xf]
      %v301 = vld [vmem:[%s1 + $0x28] sm:$0xf]
      %v302 = vld [vmem:[%s1 + $0x2c] sm:$0xf]
      %v303 = vld [vmem:[%s1 + $0x30] sm:$0xf]
      %v304 = vld [vmem:[%s1 + $0x34] sm:$0xf]
      %v305 = vld [vmem:[%s1 + $0x38] sm:$0xf]
      %v306 = vld [vmem:[%s1 + $0x3c] sm:$0xf]
      %v307 = vld [vmem:[%s1 + $0x40] sm:$0xf]
      %v308 = vld [vmem:[%s1 + $0x44] sm:$0xf]
      %v309 = vld [vmem:[%s2] sm:$0x1]
      %v311 = vlaneseq
      %v312 = vshrl.u32 %v311, 7
      %v313 = vsub.s32 0, %v312
      %v314 = vrot.slane %v309, %v313
      %v380 = vunpack.c.l.b16 %v227
      %v381 = vunpack.c.h.b16 %v227
      %v382 = vunpack.c.l.b16 %v228
      %v383 = vunpack.c.h.b16 %v228
      %v384 = vunpack.c.l.b16 %v229
      %v385 = vunpack.c.h.b16 %v229
      %v386 = vunpack.c.l.b16 %v230
      %v387 = vunpack.c.h.b16 %v230
      %v388 = vunpack.c.l.b16 %v231
      %v389 = vunpack.c.h.b16 %v231
      %v390 = vunpack.c.l.b16 %v232
      %v391 = vunpack.c.h.b16 %v232
      %v392 = vunpack.c.l.b16 %v233
      %v393 = vunpack.c.h.b16 %v233
      %v394 = vunpack.c.l.b16 %v234
      %v395 = vunpack.c.h.b16 %v234
      %v396 = vunpack.c.l.b16 %v235
      %v397 = vunpack.c.h.b16 %v235
      %v398 = vunpack.c.l.b16 %v236
      %v399 = vunpack.c.h.b16 %v236
      %v400 = vunpack.c.l.b16 %v237
      %v401 = vunpack.c.h.b16 %v237
      %v402 = vunpack.c.l.b16 %v238
      %v403 = vunpack.c.h.b16 %v238
      %v404 = vunpack.c.l.b16 %v239
      %v405 = vunpack.c.h.b16 %v239
      %v406 = vunpack.c.l.b16 %v240
      %v407 = vunpack.c.h.b16 %v240
      %v408 = vunpack.c.l.b16 %v241
      %v409 = vunpack.c.h.b16 %v241
      %v410 = vunpack.c.l.b16 %v242
      %v411 = vunpack.c.h.b16 %v242
      %v412 = vunpack.c.l.b16 %v243
      %v413 = vunpack.c.h.b16 %v243
      %v414 = vunpack.c.l.b16 %v244
      %v415 = vunpack.c.h.b16 %v244
      %v416 = vunpack.c.l.b16 %v245
      %v417 = vunpack.c.h.b16 %v245
      %v418 = vunpack.c.l.b16 %v246
      %v419 = vunpack.c.h.b16 %v246
      %v420 = vunpack.c.l.b16 %v247
      %v421 = vunpack.c.h.b16 %v247
      %v422 = vunpack.c.l.b16 %v248
      %v423 = vunpack.c.h.b16 %v248
      %v424 = vunpack.c.l.b16 %v249
      %v425 = vunpack.c.h.b16 %v249
      %v426 = vunpack.c.l.b16 %v250
      %v427 = vunpack.c.h.b16 %v250
      %v428 = vunpack.c.l.b16 %v251
      %v429 = vunpack.c.h.b16 %v251
      %v430 = vunpack.c.l.b16 %v252
      %v431 = vunpack.c.h.b16 %v252
      %v432 = vunpack.c.l.b16 %v253
      %v433 = vunpack.c.h.b16 %v253
      %v434 = vunpack.c.l.b16 %v254
      %v435 = vunpack.c.h.b16 %v254
      %v436 = vunpack.c.l.b16 %v255
      %v437 = vunpack.c.h.b16 %v255
      %v438 = vunpack.c.l.b16 %v256
      %v439 = vunpack.c.h.b16 %v256
      %v440 = vunpack.c.l.b16 %v257
      %v441 = vunpack.c.h.b16 %v257
      %v442 = vunpack.c.l.b16 %v258
      %v443 = vunpack.c.h.b16 %v258
      %v444 = vunpack.c.l.b16 %v259
      %v445 = vunpack.c.h.b16 %v259
      %v446 = vunpack.c.l.b16 %v260
      %v447 = vunpack.c.h.b16 %v260
      %v448 = vunpack.c.l.b16 %v261
      %v449 = vunpack.c.h.b16 %v261
      %v450 = vunpack.c.l.b16 %v262
      %v451 = vunpack.c.h.b16 %v262
      %v452 = vunpack.c.l.b16 %v263
      %v453 = vunpack.c.h.b16 %v263
      %v454 = vunpack.c.l.b16 %v264
      %v455 = vunpack.c.h.b16 %v264
      %v456 = vunpack.c.l.b16 %v265
      %v457 = vunpack.c.h.b16 %v265
      %v458 = vunpack.c.l.b16 %v266
      %v459 = vunpack.c.h.b16 %v266
      %v460 = vunpack.c.l.b16 %v267
      %v461 = vunpack.c.h.b16 %v267
      %v462 = vunpack.c.l.b16 %v268
      %v463 = vunpack.c.h.b16 %v268
      %v464 = vunpack.c.l.b16 %v269
      %v465 = vunpack.c.h.b16 %v269
      %v466 = vunpack.c.l.b16 %v270
      %v467 = vunpack.c.h.b16 %v270
      %v468 = vunpack.c.l.b16 %v271
      %v469 = vunpack.c.h.b16 %v271
      %v470 = vunpack.c.l.b16 %v272
      %v471 = vunpack.c.h.b16 %v272
      %v472 = vunpack.c.l.b16 %v273
      %v473 = vunpack.c.h.b16 %v273
      %v474 = vunpack.c.l.b16 %v274
      %v475 = vunpack.c.h.b16 %v274
      %v476 = vunpack.c.l.b16 %v275
      %v477 = vunpack.c.h.b16 %v275
      %v478 = vunpack.c.l.b16 %v276
      %v479 = vunpack.c.h.b16 %v276
      %v480 = vunpack.c.l.b16 %v277
      %v481 = vunpack.c.h.b16 %v277
      %v482 = vunpack.c.l.b16 %v278
      %v483 = vunpack.c.h.b16 %v278
      %v484 = vunpack.c.l.b16 %v279
      %v485 = vunpack.c.h.b16 %v279
      %v486 = vunpack.c.l.b16 %v280
      %v487 = vunpack.c.h.b16 %v280
      %v488 = vunpack.c.l.b16 %v281
      %v489 = vunpack.c.h.b16 %v281
      %v490 = vunpack.c.l.b16 %v282
      %v491 = vunpack.c.h.b16 %v282
      %v492 = vunpack.c.l.b16 %v283
      %v493 = vunpack.c.h.b16 %v283
      %v494 = vunpack.c.l.b16 %v284
      %v495 = vunpack.c.h.b16 %v284
      %v496 = vunpack.c.l.b16 %v285
      %v497 = vunpack.c.h.b16 %v285
      %v498 = vunpack.c.l.b16 %v286
      %v499 = vunpack.c.h.b16 %v286
      %v500 = vunpack.c.l.b16 %v287
      %v501 = vunpack.c.h.b16 %v287
      %v502 = vunpack.c.l.b16 %v288
      %v503 = vunpack.c.h.b16 %v288
      %v504 = vunpack.c.l.b16 %v289
      %v505 = vunpack.c.h.b16 %v289
      %v506 = vunpack.c.l.b16 %v290
      %v507 = vunpack.c.h.b16 %v290
      %v508 = vpack.c.b16 %v382, %v380
      %v509 = vpack.c.b16 %v383, %v381
      %v510 = vpack.c.b16 %v386, %v384
      %v511 = vpack.c.b16 %v387, %v385
      %v512 = vpack.c.b16 %v390, %v388
      %v513 = vpack.c.b16 %v391, %v389
      %v514 = vpack.c.b16 %v394, %v392
      %v515 = vpack.c.b16 %v395, %v393
      %v516 = vpack.c.b16 %v398, %v396
      %v517 = vpack.c.b16 %v399, %v397
      %v518 = vpack.c.b16 %v402, %v400
      %v519 = vpack.c.b16 %v403, %v401
      %v520 = vpack.c.b16 %v406, %v404
      %v521 = vpack.c.b16 %v407, %v405
      %v522 = vpack.c.b16 %v410, %v408
      %v523 = vpack.c.b16 %v411, %v409
      %v524 = vpack.c.b16 %v414, %v412
      %v525 = vpack.c.b16 %v415, %v413
      %v526 = vpack.c.b16 %v418, %v416
      %v527 = vpack.c.b16 %v419, %v417
      %v528 = vpack.c.b16 %v422, %v420
      %v529 = vpack.c.b16 %v423, %v421
      %v530 = vpack.c.b16 %v426, %v424
      %v531 = vpack.c.b16 %v427, %v425
      %v532 = vpack.c.b16 %v430, %v428
      %v533 = vpack.c.b16 %v431, %v429
      %v534 = vpack.c.b16 %v434, %v432
      %v535 = vpack.c.b16 %v435, %v433
      %v536 = vpack.c.b16 %v438, %v436
      %v537 = vpack.c.b16 %v439, %v437
      %v538 = vpack.c.b16 %v442, %v440
      %v539 = vpack.c.b16 %v443, %v441
      %v540 = vpack.c.b16 %v446, %v444
      %v541 = vpack.c.b16 %v447, %v445
      %v542 = vpack.c.b16 %v450, %v448
      %v543 = vpack.c.b16 %v451, %v449
      %v544 = vpack.c.b16 %v454, %v452
      %v545 = vpack.c.b16 %v455, %v453
      %v546 = vpack.c.b16 %v458, %v456
      %v547 = vpack.c.b16 %v459, %v457
      %v548 = vpack.c.b16 %v462, %v460
      %v549 = vpack.c.b16 %v463, %v461
      %v550 = vpack.c.b16 %v466, %v464
      %v551 = vpack.c.b16 %v467, %v465
      %v552 = vpack.c.b16 %v470, %v468
      %v553 = vpack.c.b16 %v471, %v469
      %v554 = vpack.c.b16 %v474, %v472
      %v555 = vpack.c.b16 %v475, %v473
      %v556 = vpack.c.b16 %v478, %v476
      %v557 = vpack.c.b16 %v479, %v477
      %v558 = vpack.c.b16 %v482, %v480
      %v559 = vpack.c.b16 %v483, %v481
      %v560 = vpack.c.b16 %v486, %v484
      %v561 = vpack.c.b16 %v487, %v485
      %v562 = vpack.c.b16 %v490, %v488
      %v563 = vpack.c.b16 %v491, %v489
      %v564 = vpack.c.b16 %v494, %v492
      %v565 = vpack.c.b16 %v495, %v493
      %v566 = vpack.c.b16 %v498, %v496
      %v567 = vpack.c.b16 %v499, %v497
      %v568 = vpack.c.b16 %v502, %v500
      %v569 = vpack.c.b16 %v503, %v501
      %v570 = vpack.c.b16 %v506, %v504
      %v571 = vpack.c.b16 %v507, %v505
      %v622 = vunpack.c.l.b16 %v291
      %v623 = vunpack.c.l.b16 %v292
      %v624 = vunpack.c.l.b16 %v293
      %v625 = vunpack.c.l.b16 %v294
      %v626 = vunpack.c.l.b16 %v295
      %v627 = vunpack.c.l.b16 %v296
      %v628 = vunpack.c.l.b16 %v297
      %v629 = vunpack.c.l.b16 %v298
      %v630 = vunpack.c.l.b16 %v299
      %v631 = vunpack.c.l.b16 %v300
      %v632 = vunpack.c.l.b16 %v301
      %v633 = vunpack.c.l.b16 %v302
      %v634 = vunpack.c.l.b16 %v303
      %v635 = vunpack.c.l.b16 %v304
      %v636 = vunpack.c.l.b16 %v305
      %v637 = vunpack.c.l.b16 %v306
      %v638 = vunpack.c.l.b16 %v307
      %v639 = vunpack.c.l.b16 %v308
      %v640 = vpack.c.b16 %v623, %v622
      %v641 = vpack.c.b16 %v625, %v624
      %v642 = vpack.c.b16 %v627, %v626
      %v643 = vpack.c.b16 %v629, %v628
      %v644 = vpack.c.b16 %v631, %v630
      %v645 = vpack.c.b16 %v633, %v632
      %v646 = vpack.c.b16 %v635, %v634
      %v647 = vpack.c.b16 %v637, %v636
      %v648 = vpack.c.b16 %v639, %v638
      %vm658 = vcmask 130048
      %v660 = vsel %vm658, %v509, 0
      %v663 = vsel %vm658, %v511, 0
      %v666 = vsel %vm658, %v513, 0
      %v669 = vsel %vm658, %v515, 0
      %v672 = vsel %vm658, %v517, 0
      %v675 = vsel %vm658, %v519, 0
      %v678 = vsel %vm658, %v521, 0
      %v681 = vsel %vm658, %v523, 0
      %v684 = vsel %vm658, %v525, 0
      %v687 = vsel %vm658, %v527, 0
      %v690 = vsel %vm658, %v529, 0
      %v693 = vsel %vm658, %v531, 0
      %v696 = vsel %vm658, %v533, 0
      %v699 = vsel %vm658, %v535, 0
      %v702 = vsel %vm658, %v537, 0
      %v705 = vsel %vm658, %v539, 0
      %v708 = vsel %vm658, %v541, 0
      %v711 = vsel %vm658, %v543, 0
      %v714 = vsel %vm658, %v545, 0
      %v717 = vsel %vm658, %v547, 0
      %v720 = vsel %vm658, %v549, 0
      %v723 = vsel %vm658, %v551, 0
      %v726 = vsel %vm658, %v553, 0
      %v729 = vsel %vm658, %v555, 0
      %v732 = vsel %vm658, %v557, 0
      %v735 = vsel %vm658, %v559, 0
      %v738 = vsel %vm658, %v561, 0
      %v741 = vsel %vm658, %v563, 0
      %v744 = vsel %vm658, %v565, 0
      %v747 = vsel %vm658, %v567, 0
      %v750 = vsel %vm658, %v569, 0
      %v753 = vsel %vm658, %v571, 0
      %755 = vmatprep.subr.bf16.mxu0 0
      %756 = vmatpush1.bf16.msra.mxu0 %v647
      %757 = vmatprep.subr.bf16.mxu0 0
      %758 = vmatpush1.bf16.msra.mxu0 %v646
      %759 = vmatprep.subr.bf16.mxu0 0
      %760 = vmatpush1.bf16.msra.mxu0 %v645
      %761 = vmatprep.subr.bf16.mxu0 0
      %762 = vmatpush1.bf16.msra.mxu0 %v644
      %763 = vmatprep.subr.bf16.mxu0 0
      %764 = vmatpush1.bf16.msra.mxu0 %v643
      %765 = vmatprep.subr.bf16.mxu0 0
      %766 = vmatpush1.bf16.msra.mxu0 %v642
      %767 = vmatprep.subr.bf16.mxu0 0
      %768 = vmatpush1.bf16.msra.mxu0 %v641
      %769 = vmatprep.subr.bf16.mxu0 0
      %770 = vmatpush1.bf16.msra.mxu0 %v640
      %771 = vmatprep.subr.bf16.mxu0 0
      %772 = vmatpush2.bf16.msra.mxu0 0
      %773 = vmatprep.subr.bf16.mxu0 0
      %774 = vmatpush2.bf16.msra.mxu0 0
      %775 = vmatprep.subr.bf16.mxu0 0
      %776 = vmatpush2.bf16.msra.mxu0 0
      %777 = vmatprep.subr.bf16.mxu0 0
      %778 = vmatpush2.bf16.msra.mxu0 0
      %779 = vmatprep.subr.bf16.mxu0 0
      %780 = vmatpush2.bf16.msra.mxu0 0
      %781 = vmatprep.subr.bf16.mxu0 0
      %782 = vmatpush2.bf16.msra.mxu0 0
      %783 = vmatprep.subr.bf16.mxu0 0
      %784 = vmatpush2.bf16.msra.mxu0 0
      %785 = vmatprep.subr.bf16.mxu0 0
      %786 = vmatpush2.bf16.msra.mxu0 %v648
      %787 = vmatprep.mubr.bf16.mxu0 %v660
      %788 = vmatmul.mubr.bf16.gmra.mxu0 %v508
      %v789 = vpop.f32.mrf.mxu0
      %v790 = vadd.f32 %v314, %v789
      %v791 = vpop.f32.mrf.mxu0
      %v792 = vpop.f32.mrf.mxu0
      %v793 = vadd.f32 %v314, %v792
      %v794 = vpop.f32.mrf.mxu0
      %795 = vmatprep.mubr.bf16.mxu0 %v663
      %796 = vmatmul.mubr.bf16.gmra.mxu0 %v510
      %v797 = vpop.f32.mrf.mxu0
      %v798 = vadd.f32 %v314, %v797
      %v799 = vpop.f32.mrf.mxu0
      %v800 = vpop.f32.mrf.mxu0
      %v801 = vadd.f32 %v314, %v800
      %v802 = vpop.f32.mrf.mxu0
      %803 = vmatprep.mubr.bf16.mxu0 %v666
      %804 = vmatmul.mubr.bf16.gmra.mxu0 %v512
      %v805 = vpop.f32.mrf.mxu0
      %v806 = vadd.f32 %v314, %v805
      %v807 = vpop.f32.mrf.mxu0
      %v808 = vpop.f32.mrf.mxu0
      %v809 = vadd.f32 %v314, %v808
      %v810 = vpop.f32.mrf.mxu0
      %811 = vmatprep.mubr.bf16.mxu0 %v669
      %812 = vmatmul.mubr.bf16.gmra.mxu0 %v514
      %v813 = vpop.f32.mrf.mxu0
      %v814 = vadd.f32 %v314, %v813
      %v815 = vpop.f32.mrf.mxu0
      %v816 = vpop.f32.mrf.mxu0
      %v817 = vadd.f32 %v314, %v816
      %v818 = vpop.f32.mrf.mxu0
      %819 = vmatprep.mubr.bf16.mxu0 %v672
      %820 = vmatmul.mubr.bf16.gmra.mxu0 %v516
      %v821 = vpop.f32.mrf.mxu0
      %v822 = vadd.f32 %v314, %v821
      %v823 = vpop.f32.mrf.mxu0
      %v824 = vpop.f32.mrf.mxu0
      %v825 = vadd.f32 %v314, %v824
      %v826 = vpop.f32.mrf.mxu0
      %827 = vmatprep.mubr.bf16.mxu0 %v675
      %828 = vmatmul.mubr.bf16.gmra.mxu0 %v518
      %v829 = vpop.f32.mrf.mxu0
      %v830 = vadd.f32 %v314, %v829
      %v831 = vpop.f32.mrf.mxu0
      %v832 = vpop.f32.mrf.mxu0
      %v833 = vadd.f32 %v314, %v832
      %v834 = vpop.f32.mrf.mxu0
      %835 = vmatprep.mubr.bf16.mxu0 %v678
      %836 = vmatmul.mubr.bf16.gmra.mxu0 %v520
      %v837 = vpop.f32.mrf.mxu0
      %v838 = vadd.f32 %v314, %v837
      %v839 = vpop.f32.mrf.mxu0
      %v840 = vpop.f32.mrf.mxu0
      %v841 = vadd.f32 %v314, %v840
      %v842 = vpop.f32.mrf.mxu0
      %843 = vmatprep.mubr.bf16.mxu0 %v681
      %844 = vmatmul.mubr.bf16.gmra.mxu0 %v522
      %v845 = vpop.f32.mrf.mxu0
      %v846 = vadd.f32 %v314, %v845
      %v847 = vpop.f32.mrf.mxu0
      %v848 = vpop.f32.mrf.mxu0
      %v849 = vadd.f32 %v314, %v848
      %v850 = vpop.f32.mrf.mxu0
      %851 = vmatprep.mubr.bf16.mxu0 %v684
      %852 = vmatmul.mubr.bf16.gmra.mxu0 %v524
      %v853 = vpop.f32.mrf.mxu0
      %v854 = vadd.f32 %v314, %v853
      %v855 = vpop.f32.mrf.mxu0
      %v856 = vpop.f32.mrf.mxu0
      %v857 = vadd.f32 %v314, %v856
      %v858 = vpop.f32.mrf.mxu0
      %859 = vmatprep.mubr.bf16.mxu0 %v687
      %860 = vmatmul.mubr.bf16.gmra.mxu0 %v526
      %v861 = vpop.f32.mrf.mxu0
      %v862 = vadd.f32 %v314, %v861
      %v863 = vpop.f32.mrf.mxu0
      %v864 = vpop.f32.mrf.mxu0
      %v865 = vadd.f32 %v314, %v864
      %v866 = vpop.f32.mrf.mxu0
      %867 = vmatprep.mubr.bf16.mxu0 %v690
      %868 = vmatmul.mubr.bf16.gmra.mxu0 %v528
      %v869 = vpop.f32.mrf.mxu0
      %v870 = vadd.f32 %v314, %v869
      %v871 = vpop.f32.mrf.mxu0
      %v872 = vpop.f32.mrf.mxu0
      %v873 = vadd.f32 %v314, %v872
      %v874 = vpop.f32.mrf.mxu0
      %875 = vmatprep.mubr.bf16.mxu0 %v693
      %876 = vmatmul.mubr.bf16.gmra.mxu0 %v530
      %v877 = vpop.f32.mrf.mxu0
      %v878 = vadd.f32 %v314, %v877
      %v879 = vpop.f32.mrf.mxu0
      %v880 = vpop.f32.mrf.mxu0
      %v881 = vadd.f32 %v314, %v880
      %v882 = vpop.f32.mrf.mxu0
      %883 = vmatprep.mubr.bf16.mxu0 %v696
      %884 = vmatmul.mubr.bf16.gmra.mxu0 %v532
      %v885 = vpop.f32.mrf.mxu0
      %v886 = vadd.f32 %v314, %v885
      %v887 = vpop.f32.mrf.mxu0
      %v888 = vpop.f32.mrf.mxu0
      %v889 = vadd.f32 %v314, %v888
      %v890 = vpop.f32.mrf.mxu0
      %891 = vmatprep.mubr.bf16.mxu0 %v699
      %892 = vmatmul.mubr.bf16.gmra.mxu0 %v534
      %v893 = vpop.f32.mrf.mxu0
      %v894 = vadd.f32 %v314, %v893
      %v895 = vpop.f32.mrf.mxu0
      %v896 = vpop.f32.mrf.mxu0
      %v897 = vadd.f32 %v314, %v896
      %v898 = vpop.f32.mrf.mxu0
      %899 = vmatprep.mubr.bf16.mxu0 %v702
      %900 = vmatmul.mubr.bf16.gmra.mxu0 %v536
      %v901 = vpop.f32.mrf.mxu0
      %v902 = vadd.f32 %v314, %v901
      %v903 = vpop.f32.mrf.mxu0
      %v904 = vpop.f32.mrf.mxu0
      %v905 = vadd.f32 %v314, %v904
      %v906 = vpop.f32.mrf.mxu0
      %907 = vmatprep.mubr.bf16.mxu0 %v705
      %908 = vmatmul.mubr.bf16.gmra.mxu0 %v538
      %v909 = vpop.f32.mrf.mxu0
      %v910 = vadd.f32 %v314, %v909
      %v911 = vpop.f32.mrf.mxu0
      %v912 = vpop.f32.mrf.mxu0
      %v913 = vadd.f32 %v314, %v912
      %v914 = vpop.f32.mrf.mxu0
      %915 = vmatprep.mubr.bf16.mxu0 %v708
      %916 = vmatmul.mubr.bf16.gmra.mxu0 %v540
      %v917 = vpop.f32.mrf.mxu0
      %v918 = vadd.f32 %v314, %v917
      %v919 = vpop.f32.mrf.mxu0
      %v920 = vpop.f32.mrf.mxu0
      %v921 = vadd.f32 %v314, %v920
      %v922 = vpop.f32.mrf.mxu0
      %923 = vmatprep.mubr.bf16.mxu0 %v711
      %924 = vmatmul.mubr.bf16.gmra.mxu0 %v542
      %v925 = vpop.f32.mrf.mxu0
      %v926 = vadd.f32 %v314, %v925
      %v927 = vpop.f32.mrf.mxu0
      %v928 = vpop.f32.mrf.mxu0
      %v929 = vadd.f32 %v314, %v928
      %v930 = vpop.f32.mrf.mxu0
      %931 = vmatprep.mubr.bf16.mxu0 %v714
      %932 = vmatmul.mubr.bf16.gmra.mxu0 %v544
      %v933 = vpop.f32.mrf.mxu0
      %v934 = vadd.f32 %v314, %v933
      %v935 = vpop.f32.mrf.mxu0
      %v936 = vpop.f32.mrf.mxu0
      %v937 = vadd.f32 %v314, %v936
      %v938 = vpop.f32.mrf.mxu0
      %939 = vmatprep.mubr.bf16.mxu0 %v717
      %940 = vmatmul.mubr.bf16.gmra.mxu0 %v546
      %v941 = vpop.f32.mrf.mxu0
      %v942 = vadd.f32 %v314, %v941
      %v943 = vpop.f32.mrf.mxu0
      %v944 = vpop.f32.mrf.mxu0
      %v945 = vadd.f32 %v314, %v944
      %v946 = vpop.f32.mrf.mxu0
      %947 = vmatprep.mubr.bf16.mxu0 %v720
      %948 = vmatmul.mubr.bf16.gmra.mxu0 %v548
      %v949 = vpop.f32.mrf.mxu0
      %v950 = vadd.f32 %v314, %v949
      %v951 = vpop.f32.mrf.mxu0
      %v952 = vpop.f32.mrf.mxu0
      %v953 = vadd.f32 %v314, %v952
      %v954 = vpop.f32.mrf.mxu0
      %955 = vmatprep.mubr.bf16.mxu0 %v723
      %956 = vmatmul.mubr.bf16.gmra.mxu0 %v550
      %v957 = vpop.f32.mrf.mxu0
      %v958 = vadd.f32 %v314, %v957
      %v959 = vpop.f32.mrf.mxu0
      %v960 = vpop.f32.mrf.mxu0
      %v961 = vadd.f32 %v314, %v960
      %v962 = vpop.f32.mrf.mxu0
      %963 = vmatprep.mubr.bf16.mxu0 %v726
      %964 = vmatmul.mubr.bf16.gmra.mxu0 %v552
      %v965 = vpop.f32.mrf.mxu0
      %v966 = vadd.f32 %v314, %v965
      %v967 = vpop.f32.mrf.mxu0
      %v968 = vpop.f32.mrf.mxu0
      %v969 = vadd.f32 %v314, %v968
      %v970 = vpop.f32.mrf.mxu0
      %971 = vmatprep.mubr.bf16.mxu0 %v729
      %972 = vmatmul.mubr.bf16.gmra.mxu0 %v554
      %v973 = vpop.f32.mrf.mxu0
      %v974 = vadd.f32 %v314, %v973
      %v975 = vpop.f32.mrf.mxu0
      %v976 = vpop.f32.mrf.mxu0
      %v977 = vadd.f32 %v314, %v976
      %v978 = vpop.f32.mrf.mxu0
      %979 = vmatprep.mubr.bf16.mxu0 %v732
      %980 = vmatmul.mubr.bf16.gmra.mxu0 %v556
      %v981 = vpop.f32.mrf.mxu0
      %v982 = vadd.f32 %v314, %v981
      %v983 = vpop.f32.mrf.mxu0
      %v984 = vpop.f32.mrf.mxu0
      %v985 = vadd.f32 %v314, %v984
      %v986 = vpop.f32.mrf.mxu0
      %987 = vmatprep.mubr.bf16.mxu0 %v735
      %988 = vmatmul.mubr.bf16.gmra.mxu0 %v558
      %v989 = vpop.f32.mrf.mxu0
      %v990 = vadd.f32 %v314, %v989
      %v991 = vpop.f32.mrf.mxu0
      %v992 = vpop.f32.mrf.mxu0
      %v993 = vadd.f32 %v314, %v992
      %v994 = vpop.f32.mrf.mxu0
      %995 = vmatprep.mubr.bf16.mxu0 %v738
      %996 = vmatmul.mubr.bf16.gmra.mxu0 %v560
      %v997 = vpop.f32.mrf.mxu0
      %v998 = vadd.f32 %v314, %v997
      %v999 = vpop.f32.mrf.mxu0
      %v1000 = vpop.f32.mrf.mxu0
      %v1001 = vadd.f32 %v314, %v1000
      %v1002 = vpop.f32.mrf.mxu0
      %1003 = vmatprep.mubr.bf16.mxu0 %v741
      %1004 = vmatmul.mubr.bf16.gmra.mxu0 %v562
      %v1005 = vpop.f32.mrf.mxu0
      %v1006 = vadd.f32 %v314, %v1005
      %v1007 = vpop.f32.mrf.mxu0
      %v1008 = vpop.f32.mrf.mxu0
      %v1009 = vadd.f32 %v314, %v1008
      %v1010 = vpop.f32.mrf.mxu0
      %1011 = vmatprep.mubr.bf16.mxu0 %v744
      %1012 = vmatmul.mubr.bf16.gmra.mxu0 %v564
      %v1013 = vpop.f32.mrf.mxu0
      %v1014 = vadd.f32 %v314, %v1013
      %v1015 = vpop.f32.mrf.mxu0
      %v1016 = vpop.f32.mrf.mxu0
      %v1017 = vadd.f32 %v314, %v1016
      %v1018 = vpop.f32.mrf.mxu0
      %1019 = vmatprep.mubr.bf16.mxu0 %v747
      %1020 = vmatmul.mubr.bf16.gmra.mxu0 %v566
      %v1021 = vpop.f32.mrf.mxu0
      %v1022 = vadd.f32 %v314, %v1021
      %v1023 = vpop.f32.mrf.mxu0
      %v1024 = vpop.f32.mrf.mxu0
      %v1025 = vadd.f32 %v314, %v1024
      %v1026 = vpop.f32.mrf.mxu0
      %1027 = vmatprep.mubr.bf16.mxu0 %v750
      %1028 = vmatmul.mubr.bf16.gmra.mxu0 %v568
      %v1029 = vpop.f32.mrf.mxu0
      %v1030 = vadd.f32 %v314, %v1029
      %v1031 = vpop.f32.mrf.mxu0
      %v1032 = vpop.f32.mrf.mxu0
      %v1033 = vadd.f32 %v314, %v1032
      %v1034 = vpop.f32.mrf.mxu0
      %1035 = vmatprep.mubr.bf16.mxu0 %v753
      %1036 = vmatmul.mubr.bf16.gmra.mxu0 %v570
      %v1037 = vpop.f32.mrf.mxu0
      %v1038 = vadd.f32 %v314, %v1037
      %v1039 = vpop.f32.mrf.mxu0
      %v1040 = vpop.f32.mrf.mxu0
      %v1041 = vadd.f32 %v314, %v1040
      %v1042 = vpop.f32.mrf.mxu0
      %1043 = vdwg.mxu0
      %v1044 = vld [vmem:[%s218] sm:$0xff]
      %v1045 = vld [vmem:[%s218 + $0x8] sm:$0xff]
      %v1046 = vld [vmem:[%s218 + $0x10] sm:$0xff]
      %v1047 = vld [vmem:[%s218 + $0x18] sm:$0xff]
      %v1048 = vld [vmem:[%s218 + $0x20] sm:$0xff]
      %v1049 = vld [vmem:[%s218 + $0x28] sm:$0xff]
      %v1050 = vld [vmem:[%s218 + $0x30] sm:$0xff]
      %v1051 = vld [vmem:[%s218 + $0x38] sm:$0xff]
      %v1052 = vld [vmem:[%s218 + $0x40] sm:$0xff]
      %v1053 = vld [vmem:[%s218 + $0x48] sm:$0xff]
      %v1054 = vld [vmem:[%s218 + $0x50] sm:$0xff]
      %v1055 = vld [vmem:[%s218 + $0x58] sm:$0xff]
      %v1056 = vld [vmem:[%s218 + $0x60] sm:$0xff]
      %v1057 = vld [vmem:[%s218 + $0x68] sm:$0xff]
      %v1058 = vld [vmem:[%s218 + $0x70] sm:$0xff]
      %v1059 = vld [vmem:[%s218 + $0x78] sm:$0xff]
      %v1060 = vld [vmem:[%s218 + $0x80] sm:$0xff]
      %v1061 = vld [vmem:[%s218 + $0x88] sm:$0xff]
      %v1062 = vld [vmem:[%s218 + $0x90] sm:$0xff]
      %v1063 = vld [vmem:[%s218 + $0x98] sm:$0xff]
      %v1064 = vld [vmem:[%s218 + $0xa0] sm:$0xff]
      %v1065 = vld [vmem:[%s218 + $0xa8] sm:$0xff]
      %v1066 = vld [vmem:[%s218 + $0xb0] sm:$0xff]
      %v1067 = vld [vmem:[%s218 + $0xb8] sm:$0xff]
      %v1068 = vld [vmem:[%s218 + $0xc0] sm:$0xff]
      %v1069 = vld [vmem:[%s218 + $0xc8] sm:$0xff]
      %v1070 = vld [vmem:[%s218 + $0xd0] sm:$0xff]
      %v1071 = vld [vmem:[%s218 + $0xd8] sm:$0xff]
      %v1072 = vld [vmem:[%s218 + $0xe0] sm:$0xff]
      %v1073 = vld [vmem:[%s218 + $0xe8] sm:$0xff]
      %v1074 = vld [vmem:[%s218 + $0xf0] sm:$0xff]
      %v1075 = vld [vmem:[%s218 + $0xf8] sm:$0xff]
      %v1076 = vld [vmem:[%s218 + $0x100] sm:$0xff]
      %v1077 = vld [vmem:[%s218 + $0x108] sm:$0xff]
      %v1078 = vld [vmem:[%s218 + $0x110] sm:$0xff]
      %v1079 = vld [vmem:[%s218 + $0x118] sm:$0xff]
      %v1080 = vld [vmem:[%s218 + $0x120] sm:$0xff]
      %v1081 = vld [vmem:[%s218 + $0x128] sm:$0xff]
      %v1082 = vld [vmem:[%s218 + $0x130] sm:$0xff]
      %v1083 = vld [vmem:[%s218 + $0x138] sm:$0xff]
      %v1084 = vld [vmem:[%s218 + $0x140] sm:$0xff]
      %v1085 = vld [vmem:[%s218 + $0x148] sm:$0xff]
      %v1086 = vld [vmem:[%s218 + $0x150] sm:$0xff]
      %v1087 = vld [vmem:[%s218 + $0x158] sm:$0xff]
      %v1088 = vld [vmem:[%s218 + $0x160] sm:$0xff]
      %v1089 = vld [vmem:[%s218 + $0x168] sm:$0xff]
      %v1090 = vld [vmem:[%s218 + $0x170] sm:$0xff]
      %v1091 = vld [vmem:[%s218 + $0x178] sm:$0xff]
      %v1092 = vld [vmem:[%s218 + $0x180] sm:$0xff]
      %v1093 = vld [vmem:[%s218 + $0x188] sm:$0xff]
      %v1094 = vld [vmem:[%s218 + $0x190] sm:$0xff]
      %v1095 = vld [vmem:[%s218 + $0x198] sm:$0xff]
      %v1096 = vld [vmem:[%s218 + $0x1a0] sm:$0xff]
      %v1097 = vld [vmem:[%s218 + $0x1a8] sm:$0xff]
      %v1098 = vld [vmem:[%s218 + $0x1b0] sm:$0xff]
      %v1099 = vld [vmem:[%s218 + $0x1b8] sm:$0xff]
      %v1100 = vld [vmem:[%s218 + $0x1c0] sm:$0xff]
      %v1101 = vld [vmem:[%s218 + $0x1c8] sm:$0xff]
      %v1102 = vld [vmem:[%s218 + $0x1d0] sm:$0xff]
      %v1103 = vld [vmem:[%s218 + $0x1d8] sm:$0xff]
      %v1104 = vld [vmem:[%s218 + $0x1e0] sm:$0xff]
      %v1105 = vld [vmem:[%s218 + $0x1e8] sm:$0xff]
      %v1106 = vld [vmem:[%s218 + $0x1f0] sm:$0xff]
      %v1107 = vld [vmem:[%s218 + $0x1f8] sm:$0xff]
      %v1108 = vmul.f32 %v790, %v1044
      %v1109 = vmul.f32 %v793, %v1045
      %v1110 = vmul.f32 %v798, %v1046
      %v1111 = vmul.f32 %v801, %v1047
      %v1112 = vmul.f32 %v806, %v1048
      %v1113 = vmul.f32 %v809, %v1049
      %v1114 = vmul.f32 %v814, %v1050
      %v1115 = vmul.f32 %v817, %v1051
      %v1116 = vmul.f32 %v822, %v1052
      %v1117 = vmul.f32 %v825, %v1053
      %v1118 = vmul.f32 %v830, %v1054
      %v1119 = vmul.f32 %v833, %v1055
      %v1120 = vmul.f32 %v838, %v1056
      %v1121 = vmul.f32 %v841, %v1057
      %v1122 = vmul.f32 %v846, %v1058
      %v1123 = vmul.f32 %v849, %v1059
      %v1124 = vmul.f32 %v854, %v1060
      %v1125 = vmul.f32 %v857, %v1061
      %v1126 = vmul.f32 %v862, %v1062
      %v1127 = vmul.f32 %v865, %v1063
      %v1128 = vmul.f32 %v870, %v1064
      %v1129 = vmul.f32 %v873, %v1065
      %v1130 = vmul.f32 %v878, %v1066
      %v1131 = vmul.f32 %v881, %v1067
      %v1132 = vmul.f32 %v886, %v1068
      %v1133 = vmul.f32 %v889, %v1069
      %v1134 = vmul.f32 %v894, %v1070
      %v1135 = vmul.f32 %v897, %v1071
      %v1136 = vmul.f32 %v902, %v1072
      %v1137 = vmul.f32 %v905, %v1073
      %v1138 = vmul.f32 %v910, %v1074
      %v1139 = vmul.f32 %v913, %v1075
      %v1140 = vmul.f32 %v918, %v1076
      %v1141 = vmul.f32 %v921, %v1077
      %v1142 = vmul.f32 %v926, %v1078
      %v1143 = vmul.f32 %v929, %v1079
      %v1144 = vmul.f32 %v934, %v1080
      %v1145 = vmul.f32 %v937, %v1081
      %v1146 = vmul.f32 %v942, %v1082
      %v1147 = vmul.f32 %v945, %v1083
      %v1148 = vmul.f32 %v950, %v1084
      %v1149 = vmul.f32 %v953, %v1085
      %v1150 = vmul.f32 %v958, %v1086
      %v1151 = vmul.f32 %v961, %v1087
      %v1152 = vmul.f32 %v966, %v1088
      %v1153 = vmul.f32 %v969, %v1089
      %v1154 = vmul.f32 %v974, %v1090
      %v1155 = vmul.f32 %v977, %v1091
      %v1156 = vmul.f32 %v982, %v1092
      %v1157 = vmul.f32 %v985, %v1093
      %v1158 = vmul.f32 %v990, %v1094
      %v1159 = vmul.f32 %v993, %v1095
      %v1160 = vmul.f32 %v998, %v1096
      %v1161 = vmul.f32 %v1001, %v1097
      %v1162 = vmul.f32 %v1006, %v1098
      %v1163 = vmul.f32 %v1009, %v1099
      %v1164 = vmul.f32 %v1014, %v1100
      %v1165 = vmul.f32 %v1017, %v1101
      %v1166 = vmul.f32 %v1022, %v1102
      %v1167 = vmul.f32 %v1025, %v1103
      %v1168 = vmul.f32 %v1030, %v1104
      %v1169 = vmul.f32 %v1033, %v1105
      %v1170 = vmul.f32 %v1038, %v1106
      %v1171 = vmul.f32 %v1041, %v1107
      %v1172 = vmax.f32 %v1108, 0.0
      %v1173 = vmax.f32 %v1109, 0.0
      %v1174 = vmax.f32 %v1110, 0.0
      %v1175 = vmax.f32 %v1111, 0.0
      %v1176 = vmax.f32 %v1112, 0.0
      %v1177 = vmax.f32 %v1113, 0.0
      %v1178 = vmax.f32 %v1114, 0.0
      %v1179 = vmax.f32 %v1115, 0.0
      %v1180 = vmax.f32 %v1116, 0.0
      %v1181 = vmax.f32 %v1117, 0.0
      %v1182 = vmax.f32 %v1118, 0.0
      %v1183 = vmax.f32 %v1119, 0.0
      %v1184 = vmax.f32 %v1120, 0.0
      %v1185 = vmax.f32 %v1121, 0.0
      %v1186 = vmax.f32 %v1122, 0.0
      %v1187 = vmax.f32 %v1123, 0.0
      %v1188 = vmax.f32 %v1124, 0.0
      %v1189 = vmax.f32 %v1125, 0.0
      %v1190 = vmax.f32 %v1126, 0.0
      %v1191 = vmax.f32 %v1127, 0.0
      %v1192 = vmax.f32 %v1128, 0.0
      %v1193 = vmax.f32 %v1129, 0.0
      %v1194 = vmax.f32 %v1130, 0.0
      %v1195 = vmax.f32 %v1131, 0.0
      %v1196 = vmax.f32 %v1132, 0.0
      %v1197 = vmax.f32 %v1133, 0.0
      %v1198 = vmax.f32 %v1134, 0.0
      %v1199 = vmax.f32 %v1135, 0.0
      %v1200 = vmax.f32 %v1136, 0.0
      %v1201 = vmax.f32 %v1137, 0.0
      %v1202 = vmax.f32 %v1138, 0.0
      %v1203 = vmax.f32 %v1139, 0.0
      %v1204 = vmax.f32 %v1140, 0.0
      %v1205 = vmax.f32 %v1141, 0.0
      %v1206 = vmax.f32 %v1142, 0.0
      %v1207 = vmax.f32 %v1143, 0.0
      %v1208 = vmax.f32 %v1144, 0.0
      %v1209 = vmax.f32 %v1145, 0.0
      %v1210 = vmax.f32 %v1146, 0.0
      %v1211 = vmax.f32 %v1147, 0.0
      %v1212 = vmax.f32 %v1148, 0.0
      %v1213 = vmax.f32 %v1149, 0.0
      %v1214 = vmax.f32 %v1150, 0.0
      %v1215 = vmax.f32 %v1151, 0.0
      %v1216 = vmax.f32 %v1152, 0.0
      %v1217 = vmax.f32 %v1153, 0.0
      %v1218 = vmax.f32 %v1154, 0.0
      %v1219 = vmax.f32 %v1155, 0.0
      %v1220 = vmax.f32 %v1156, 0.0
      %v1221 = vmax.f32 %v1157, 0.0
      %v1222 = vmax.f32 %v1158, 0.0
      %v1223 = vmax.f32 %v1159, 0.0
      %v1224 = vmax.f32 %v1160, 0.0
      %v1225 = vmax.f32 %v1161, 0.0
      %v1226 = vmax.f32 %v1162, 0.0
      %v1227 = vmax.f32 %v1163, 0.0
      %v1228 = vmax.f32 %v1164, 0.0
      %v1229 = vmax.f32 %v1165, 0.0
      %v1230 = vmax.f32 %v1166, 0.0
      %v1231 = vmax.f32 %v1167, 0.0
      %v1232 = vmax.f32 %v1168, 0.0
      %v1233 = vmax.f32 %v1169, 0.0
      %v1234 = vmax.f32 %v1170, 0.0
      %v1235 = vmax.f32 %v1171, 0.0
      %v1236 = vadd.f32 %v790, %v1172
      %v1237 = vadd.f32 %v793, %v1173
      %v1238 = vadd.f32 %v798, %v1174
      %v1239 = vadd.f32 %v801, %v1175
      %v1240 = vadd.f32 %v806, %v1176
      %v1241 = vadd.f32 %v809, %v1177
      %v1242 = vadd.f32 %v814, %v1178
      %v1243 = vadd.f32 %v817, %v1179
      %v1244 = vadd.f32 %v822, %v1180
      %v1245 = vadd.f32 %v825, %v1181
      %v1246 = vadd.f32 %v830, %v1182
      %v1247 = vadd.f32 %v833, %v1183
      %v1248 = vadd.f32 %v838, %v1184
      %v1249 = vadd.f32 %v841, %v1185
      %v1250 = vadd.f32 %v846, %v1186
      %v1251 = vadd.f32 %v849, %v1187
      %v1252 = vadd.f32 %v854, %v1188
      %v1253 = vadd.f32 %v857, %v1189
      %v1254 = vadd.f32 %v862, %v1190
      %v1255 = vadd.f32 %v865, %v1191
      %v1256 = vadd.f32 %v870, %v1192
      %v1257 = vadd.f32 %v873, %v1193
      %v1258 = vadd.f32 %v878, %v1194
      %v1259 = vadd.f32 %v881, %v1195
      %v1260 = vadd.f32 %v886, %v1196
      %v1261 = vadd.f32 %v889, %v1197
      %v1262 = vadd.f32 %v894, %v1198
      %v1263 = vadd.f32 %v897, %v1199
      %v1264 = vadd.f32 %v902, %v1200
      %v1265 = vadd.f32 %v905, %v1201
      %v1266 = vadd.f32 %v910, %v1202
      %v1267 = vadd.f32 %v913, %v1203
      %v1268 = vadd.f32 %v918, %v1204
      %v1269 = vadd.f32 %v921, %v1205
      %v1270 = vadd.f32 %v926, %v1206
      %v1271 = vadd.f32 %v929, %v1207
      %v1272 = vadd.f32 %v934, %v1208
      %v1273 = vadd.f32 %v937, %v1209
      %v1274 = vadd.f32 %v942, %v1210
      %v1275 = vadd.f32 %v945, %v1211
      %v1276 = vadd.f32 %v950, %v1212
      %v1277 = vadd.f32 %v953, %v1213
      %v1278 = vadd.f32 %v958, %v1214
      %v1279 = vadd.f32 %v961, %v1215
      %v1280 = vadd.f32 %v966, %v1216
      %v1281 = vadd.f32 %v969, %v1217
      %v1282 = vadd.f32 %v974, %v1218
      %v1283 = vadd.f32 %v977, %v1219
      %v1284 = vadd.f32 %v982, %v1220
      %v1285 = vadd.f32 %v985, %v1221
      %v1286 = vadd.f32 %v990, %v1222
      %v1287 = vadd.f32 %v993, %v1223
      %v1288 = vadd.f32 %v998, %v1224
      %v1289 = vadd.f32 %v1001, %v1225
      %v1290 = vadd.f32 %v1006, %v1226
      %v1291 = vadd.f32 %v1009, %v1227
      %v1292 = vadd.f32 %v1014, %v1228
      %v1293 = vadd.f32 %v1017, %v1229
      %v1294 = vadd.f32 %v1022, %v1230
      %v1295 = vadd.f32 %v1025, %v1231
      %v1296 = vadd.f32 %v1030, %v1232
      %v1297 = vadd.f32 %v1033, %v1233
      %v1298 = vadd.f32 %v1038, %v1234
      %v1299 = vadd.f32 %v1041, %v1235
      %v1300 = vmax.f32 %v1236, 0.0
      %v1301 = vmax.f32 %v1237, 0.0
      %v1302 = vmax.f32 %v1238, 0.0
      %v1303 = vmax.f32 %v1239, 0.0
      %v1304 = vmax.f32 %v1240, 0.0
      %v1305 = vmax.f32 %v1241, 0.0
      %v1306 = vmax.f32 %v1242, 0.0
      %v1307 = vmax.f32 %v1243, 0.0
      %v1308 = vmax.f32 %v1244, 0.0
      %v1309 = vmax.f32 %v1245, 0.0
      %v1310 = vmax.f32 %v1246, 0.0
      %v1311 = vmax.f32 %v1247, 0.0
      %v1312 = vmax.f32 %v1248, 0.0
      %v1313 = vmax.f32 %v1249, 0.0
      %v1314 = vmax.f32 %v1250, 0.0
      %v1315 = vmax.f32 %v1251, 0.0
      %v1316 = vmax.f32 %v1252, 0.0
      %v1317 = vmax.f32 %v1253, 0.0
      %v1318 = vmax.f32 %v1254, 0.0
      %v1319 = vmax.f32 %v1255, 0.0
      %v1320 = vmax.f32 %v1256, 0.0
      %v1321 = vmax.f32 %v1257, 0.0
      %v1322 = vmax.f32 %v1258, 0.0
      %v1323 = vmax.f32 %v1259, 0.0
      %v1324 = vmax.f32 %v1260, 0.0
      %v1325 = vmax.f32 %v1261, 0.0
      %v1326 = vmax.f32 %v1262, 0.0
      %v1327 = vmax.f32 %v1263, 0.0
      %v1328 = vmax.f32 %v1264, 0.0
      %v1329 = vmax.f32 %v1265, 0.0
      %v1330 = vmax.f32 %v1266, 0.0
      %v1331 = vmax.f32 %v1267, 0.0
      %v1332 = vmax.f32 %v1268, 0.0
      %v1333 = vmax.f32 %v1269, 0.0
      %v1334 = vmax.f32 %v1270, 0.0
      %v1335 = vmax.f32 %v1271, 0.0
      %v1336 = vmax.f32 %v1272, 0.0
      %v1337 = vmax.f32 %v1273, 0.0
      %v1338 = vmax.f32 %v1274, 0.0
      %v1339 = vmax.f32 %v1275, 0.0
      %v1340 = vmax.f32 %v1276, 0.0
      %v1341 = vmax.f32 %v1277, 0.0
      %v1342 = vmax.f32 %v1278, 0.0
      %v1343 = vmax.f32 %v1279, 0.0
      %v1344 = vmax.f32 %v1280, 0.0
      %v1345 = vmax.f32 %v1281, 0.0
      %v1346 = vmax.f32 %v1282, 0.0
      %v1347 = vmax.f32 %v1283, 0.0
      %v1348 = vmax.f32 %v1284, 0.0
      %v1349 = vmax.f32 %v1285, 0.0
      %v1350 = vmax.f32 %v1286, 0.0
      %v1351 = vmax.f32 %v1287, 0.0
      %v1352 = vmax.f32 %v1288, 0.0
      %v1353 = vmax.f32 %v1289, 0.0
      %v1354 = vmax.f32 %v1290, 0.0
      %v1355 = vmax.f32 %v1291, 0.0
      %v1356 = vmax.f32 %v1292, 0.0
      %v1357 = vmax.f32 %v1293, 0.0
      %v1358 = vmax.f32 %v1294, 0.0
      %v1359 = vmax.f32 %v1295, 0.0
      %v1360 = vmax.f32 %v1296, 0.0
      %v1361 = vmax.f32 %v1297, 0.0
      %v1362 = vmax.f32 %v1298, 0.0
      %v1363 = vmax.f32 %v1299, 0.0
      %v1364 = vadd.f32 %v790, %v1300
      %v1365 = vadd.f32 %v793, %v1301
      %v1366 = vadd.f32 %v798, %v1302
      %v1367 = vadd.f32 %v801, %v1303
      %v1368 = vadd.f32 %v806, %v1304
      %v1369 = vadd.f32 %v809, %v1305
      %v1370 = vadd.f32 %v814, %v1306
      %v1371 = vadd.f32 %v817, %v1307
      %v1372 = vadd.f32 %v822, %v1308
      %v1373 = vadd.f32 %v825, %v1309
      %v1374 = vadd.f32 %v830, %v1310
      %v1375 = vadd.f32 %v833, %v1311
      %v1376 = vadd.f32 %v838, %v1312
      %v1377 = vadd.f32 %v841, %v1313
      %v1378 = vadd.f32 %v846, %v1314
      %v1379 = vadd.f32 %v849, %v1315
      %v1380 = vadd.f32 %v854, %v1316
      %v1381 = vadd.f32 %v857, %v1317
      %v1382 = vadd.f32 %v862, %v1318
      %v1383 = vadd.f32 %v865, %v1319
      %v1384 = vadd.f32 %v870, %v1320
      %v1385 = vadd.f32 %v873, %v1321
      %v1386 = vadd.f32 %v878, %v1322
      %v1387 = vadd.f32 %v881, %v1323
      %v1388 = vadd.f32 %v886, %v1324
      %v1389 = vadd.f32 %v889, %v1325
      %v1390 = vadd.f32 %v894, %v1326
      %v1391 = vadd.f32 %v897, %v1327
      %v1392 = vadd.f32 %v902, %v1328
      %v1393 = vadd.f32 %v905, %v1329
      %v1394 = vadd.f32 %v910, %v1330
      %v1395 = vadd.f32 %v913, %v1331
      %v1396 = vadd.f32 %v918, %v1332
      %v1397 = vadd.f32 %v921, %v1333
      %v1398 = vadd.f32 %v926, %v1334
      %v1399 = vadd.f32 %v929, %v1335
      %v1400 = vadd.f32 %v934, %v1336
      %v1401 = vadd.f32 %v937, %v1337
      %v1402 = vadd.f32 %v942, %v1338
      %v1403 = vadd.f32 %v945, %v1339
      %v1404 = vadd.f32 %v950, %v1340
      %v1405 = vadd.f32 %v953, %v1341
      %v1406 = vadd.f32 %v958, %v1342
      %v1407 = vadd.f32 %v961, %v1343
      %v1408 = vadd.f32 %v966, %v1344
      %v1409 = vadd.f32 %v969, %v1345
      %v1410 = vadd.f32 %v974, %v1346
      %v1411 = vadd.f32 %v977, %v1347
      %v1412 = vadd.f32 %v982, %v1348
      %v1413 = vadd.f32 %v985, %v1349
      %v1414 = vadd.f32 %v990, %v1350
      %v1415 = vadd.f32 %v993, %v1351
      %v1416 = vadd.f32 %v998, %v1352
      %v1417 = vadd.f32 %v1001, %v1353
      %v1418 = vadd.f32 %v1006, %v1354
      %v1419 = vadd.f32 %v1009, %v1355
      %v1420 = vadd.f32 %v1014, %v1356
      %v1421 = vadd.f32 %v1017, %v1357
      %v1422 = vadd.f32 %v1022, %v1358
      %v1423 = vadd.f32 %v1025, %v1359
      %v1424 = vadd.f32 %v1030, %v1360
      %v1425 = vadd.f32 %v1033, %v1361
      %v1426 = vadd.f32 %v1038, %v1362
      %v1427 = vadd.f32 %v1041, %v1363
      %vm1428 = vcmask 523264
      %1429 = vst.msk [vmem:[%s224] sm:$0xff] %vm1428, %v1364
      %1430 = vst.msk [vmem:[%s224 + $0x8] sm:$0xff] %vm1428, %v1365
      %1431 = vst.msk [vmem:[%s224 + $0x10] sm:$0xff] %vm1428, %v1366
      %1432 = vst.msk [vmem:[%s224 + $0x18] sm:$0xff] %vm1428, %v1367
      %1433 = vst.msk [vmem:[%s224 + $0x20] sm:$0xff] %vm1428, %v1368
      %1434 = vst.msk [vmem:[%s224 + $0x28] sm:$0xff] %vm1428, %v1369
      %1435 = vst.msk [vmem:[%s224 + $0x30] sm:$0xff] %vm1428, %v1370
      %1436 = vst.msk [vmem:[%s224 + $0x38] sm:$0xff] %vm1428, %v1371
      %1437 = vst.msk [vmem:[%s224 + $0x40] sm:$0xff] %vm1428, %v1372
      %1438 = vst.msk [vmem:[%s224 + $0x48] sm:$0xff] %vm1428, %v1373
      %1439 = vst.msk [vmem:[%s224 + $0x50] sm:$0xff] %vm1428, %v1374
      %1440 = vst.msk [vmem:[%s224 + $0x58] sm:$0xff] %vm1428, %v1375
      %1441 = vst.msk [vmem:[%s224 + $0x60] sm:$0xff] %vm1428, %v1376
      %1442 = vst.msk [vmem:[%s224 + $0x68] sm:$0xff] %vm1428, %v1377
      %1443 = vst.msk [vmem:[%s224 + $0x70] sm:$0xff] %vm1428, %v1378
      %1444 = vst.msk [vmem:[%s224 + $0x78] sm:$0xff] %vm1428, %v1379
      %1445 = vst.msk [vmem:[%s224 + $0x80] sm:$0xff] %vm1428, %v1380
      %1446 = vst.msk [vmem:[%s224 + $0x88] sm:$0xff] %vm1428, %v1381
      %1447 = vst.msk [vmem:[%s224 + $0x90] sm:$0xff] %vm1428, %v1382
      %1448 = vst.msk [vmem:[%s224 + $0x98] sm:$0xff] %vm1428, %v1383
      %1449 = vst.msk [vmem:[%s224 + $0xa0] sm:$0xff] %vm1428, %v1384
      %1450 = vst.msk [vmem:[%s224 + $0xa8] sm:$0xff] %vm1428, %v1385
      %1451 = vst.msk [vmem:[%s224 + $0xb0] sm:$0xff] %vm1428, %v1386
      %1452 = vst.msk [vmem:[%s224 + $0xb8] sm:$0xff] %vm1428, %v1387
      %1453 = vst.msk [vmem:[%s224 + $0xc0] sm:$0xff] %vm1428, %v1388
      %1454 = vst.msk [vmem:[%s224 + $0xc8] sm:$0xff] %vm1428, %v1389
      %1455 = vst.msk [vmem:[%s224 + $0xd0] sm:$0xff] %vm1428, %v1390
      %1456 = vst.msk [vmem:[%s224 + $0xd8] sm:$0xff] %vm1428, %v1391
      %1457 = vst.msk [vmem:[%s224 + $0xe0] sm:$0xff] %vm1428, %v1392
      %1458 = vst.msk [vmem:[%s224 + $0xe8] sm:$0xff] %vm1428, %v1393
      %1459 = vst.msk [vmem:[%s224 + $0xf0] sm:$0xff] %vm1428, %v1394
      %1460 = vst.msk [vmem:[%s224 + $0xf8] sm:$0xff] %vm1428, %v1395
      %1461 = vst.msk [vmem:[%s224 + $0x100] sm:$0xff] %vm1428, %v1396
      %1462 = vst.msk [vmem:[%s224 + $0x108] sm:$0xff] %vm1428, %v1397
      %1463 = vst.msk [vmem:[%s224 + $0x110] sm:$0xff] %vm1428, %v1398
      %1464 = vst.msk [vmem:[%s224 + $0x118] sm:$0xff] %vm1428, %v1399
      %1465 = vst.msk [vmem:[%s224 + $0x120] sm:$0xff] %vm1428, %v1400
      %1466 = vst.msk [vmem:[%s224 + $0x128] sm:$0xff] %vm1428, %v1401
      %1467 = vst.msk [vmem:[%s224 + $0x130] sm:$0xff] %vm1428, %v1402
      %1468 = vst.msk [vmem:[%s224 + $0x138] sm:$0xff] %vm1428, %v1403
      %1469 = vst.msk [vmem:[%s224 + $0x140] sm:$0xff] %vm1428, %v1404
      %1470 = vst.msk [vmem:[%s224 + $0x148] sm:$0xff] %vm1428, %v1405
      %1471 = vst.msk [vmem:[%s224 + $0x150] sm:$0xff] %vm1428, %v1406
      %1472 = vst.msk [vmem:[%s224 + $0x158] sm:$0xff] %vm1428, %v1407
      %1473 = vst.msk [vmem:[%s224 + $0x160] sm:$0xff] %vm1428, %v1408
      %1474 = vst.msk [vmem:[%s224 + $0x168] sm:$0xff] %vm1428, %v1409
      %1475 = vst.msk [vmem:[%s224 + $0x170] sm:$0xff] %vm1428, %v1410
      %1476 = vst.msk [vmem:[%s224 + $0x178] sm:$0xff] %vm1428, %v1411
      %1477 = vst.msk [vmem:[%s224 + $0x180] sm:$0xff] %vm1428, %v1412
      %1478 = vst.msk [vmem:[%s224 + $0x188] sm:$0xff] %vm1428, %v1413
      %1479 = vst.msk [vmem:[%s224 + $0x190] sm:$0xff] %vm1428, %v1414
      %1480 = vst.msk [vmem:[%s224 + $0x198] sm:$0xff] %vm1428, %v1415
      %1481 = vst.msk [vmem:[%s224 + $0x1a0] sm:$0xff] %vm1428, %v1416
      %1482 = vst.msk [vmem:[%s224 + $0x1a8] sm:$0xff] %vm1428, %v1417
      %1483 = vst.msk [vmem:[%s224 + $0x1b0] sm:$0xff] %vm1428, %v1418
      %1484 = vst.msk [vmem:[%s224 + $0x1b8] sm:$0xff] %vm1428, %v1419
      %1485 = vst.msk [vmem:[%s224 + $0x1c0] sm:$0xff] %vm1428, %v1420
      %1486 = vst.msk [vmem:[%s224 + $0x1c8] sm:$0xff] %vm1428, %v1421
      %1487 = vst.msk [vmem:[%s224 + $0x1d0] sm:$0xff] %vm1428, %v1422
      %1488 = vst.msk [vmem:[%s224 + $0x1d8] sm:$0xff] %vm1428, %v1423
      %1489 = vst.msk [vmem:[%s224 + $0x1e0] sm:$0xff] %vm1428, %v1424
      %1490 = vst.msk [vmem:[%s224 + $0x1e8] sm:$0xff] %vm1428, %v1425
      %1491 = vst.msk [vmem:[%s224 + $0x1f0] sm:$0xff] %vm1428, %v1426
      %1492 = vst.msk [vmem:[%s224 + $0x1f8] sm:$0xff] %vm1428, %v1427
      %s1493 = smul.u32 64, %s15
      %p1494 = scmp.lt.s32.totalorder %s1493, 255
      %s1495 = scalar_select %p1494, %s1493, 255
      %s1496 = smul.addr %s1495, 8
      %s1497 = scalar_lea.vmem %s4, %s1496
      // Predicated region
      $region37: #{a_call__.3} parent=35 // pred_check
        %p1498 = pneg %p127
      $region38: #{a_call__.3} parent=35 // pred_check_branch
        %1500 = sbr.rel (%p1498) target = $region40
      $region39: #{a_call__.3} parent=35 // pred_region
        %s1501 = smul.u32 64, %s15
      $region40: #{a_call__.3} parent=35 // pred_fallthru
        _
    $region36: #{a_call__.3} parent=5 // pred_fallthru
      _
    %p1502 = scmp.le.s32.totalorder 2, %s10
    // Predicated region
    $region41: #{a_call__.3} parent=5 // pred_check
      %p1503 = pneg %p1502
    $region42: #{a_call__.3} parent=5 // pred_check_branch
      %1505 = sbr.rel (%p1503) target = $region44
    $region43: #{a_call__.3} parent=5 // pred_region
      %s1506 = ssub.s32 %s10, 2
      // Predicated region
      $region45: #{a_call__.3} parent=43 // pred_check
        %p1507 = pneg %p133
      $region46: #{a_call__.3} parent=43 // pred_check_branch
        %1509 = sbr.rel (%p1507) target = $region48
      $region47: #{a_call__.3} parent=43 // pred_region
        %s1510 = smul.u32 64, %s16
        %p1511 = scmp.lt.s32.totalorder %s1510, 255
        %s1512 = scalar_select %p1511, %s1510, 255
        %s1513 = smul.addr %s1512, 8
        %s1514 = scalar_lea.vmem %s4, %s1513
      $region48: #{a_call__.3} parent=43 // pred_fallthru
        _
    $region44: #{a_call__.3} parent=5 // pred_fallthru
      _
  $region6: #{a_call__.3} parent=0 // loop_footer
    %s14 = sadd.s32 1, %s10
  $region7: #{a_call__.3} parent=0 // loop_footer_branch
    %9 = sbr.rel target = $region3
  $region8: #{a_call__.3} parent=0 // loop_exit
    _

// kernel: a_call__.4
$region0: #{a_call__.4}
  #allocation0 [shape = 'u32[]', space=smem, size = 0x4, offset = 0x4, fixed_abs, tag = 'smem constant byte address 0x4 - core index']
  #allocation1 [shape = 'u32[144,128]{1,0:T(1,128)}', space=vmem, size = 0x12000, scoped, tag = 'internal scratch']
  %s0 = inlined_call_operand.vmem [shape: bf16[512,576], index: 0, kind: input, shape index: {}]
  %s1 = inlined_call_operand.vmem [shape: bf16[576,128], index: 1, kind: input, shape index: {}]
  %s2 = inlined_call_operand.vmem [shape: f32[1,128], index: 2, kind: input, shape index: {}]
  %s3 = inlined_call_operand.vmem [shape: f32[512,128], index: 3, kind: input, shape index: {}]
  %s4 = inlined_call_operand.vmem [shape: f32[512,128], index: 4, kind: output, shape index: {}]
  %s5 = sld [smem:[#allocation0]]
  $region26: #{a_call__.4} parent=0
    _
  %s7 = ssub.s32 1, %s5
  %s8 = scalar_select 0, %s7, %s5
  // Predicated region
  $region2: #{a_call__.4} parent=0 // pred_check
    _
  $region3: #{a_call__.4} parent=0 // pred_check_branch
    %10 = sbr.rel (0) target = $region5
  $region4: #{a_call__.4} parent=0 // pred_region
    _
  $region5: #{a_call__.4} parent=0 // pred_fallthru
    _
  // Predicated region
  $region6: #{a_call__.4} parent=0 // pred_check
    _
  $region7: #{a_call__.4} parent=0 // pred_check_branch
    %12 = sbr.rel (0) target = $region9
  $region8: #{a_call__.4} parent=0 // pred_region
    _
  $region9: #{a_call__.4} parent=0 // pred_fallthru
    _
  // Predicated region
  $region10: #{a_call__.4} parent=0 // pred_check
    _
  $region11: #{a_call__.4} parent=0 // pred_check_branch
    %14 = sbr.rel (0) target = $region13
  $region12: #{a_call__.4} parent=0 // pred_region
    _
  $region13: #{a_call__.4} parent=0 // pred_fallthru
    _
  // Predicated region
  $region14: #{a_call__.4} parent=0 // pred_check
    _
  $region15: #{a_call__.4} parent=0 // pred_check_branch
    %16 = sbr.rel (0) target = $region17
  $region16: #{a_call__.4} parent=0 // pred_region
    _
  $region17: #{a_call__.4} parent=0 // pred_fallthru
    _
  %v18 = vld [vmem:[%s0] sm:$0xff]
  %v19 = vld [vmem:[%s0 + $0x8] sm:$0xff]
  %v20 = vld [vmem:[%s0 + $0x10] sm:$0xf]
  %v21 = vld [vmem:[%s0 + $0x14] sm:$0xff]
  %v22 = vld [vmem:[%s0 + $0x1c] sm:$0xff]
  %v23 = vld [vmem:[%s0 + $0x24] sm:$0xf]
  %v24 = vld [vmem:[%s0 + $0x28] sm:$0xff]
  %v25 = vld [vmem:[%s0 + $0x30] sm:$0xff]
  %v26 = vld [vmem:[%s0 + $0x38] sm:$0xf]
  %v27 = vld [vmem:[%s0 + $0x3c] sm:$0xff]
  %v28 = vld [vmem:[%s0 + $0x44] sm:$0xff]
  %v29 = vld [vmem:[%s0 + $0x4c] sm:$0xf]
  %v30 = vld [vmem:[%s0 + $0x50] sm:$0xff]
  %v31 = vld [vmem:[%s0 + $0x58] sm:$0xff]
  %v32 = vld [vmem:[%s0 + $0x60] sm:$0xf]
  %v33 = vld [vmem:[%s0 + $0x64] sm:$0xff]
  %v34 = vld [vmem:[%s0 + $0x6c] sm:$0xff]
  %v35 = vld [vmem:[%s0 + $0x74] sm:$0xf]
  %v36 = vld [vmem:[%s0 + $0x78] sm:$0xff]
  %v37 = vld [vmem:[%s0 + $0x80] sm:$0xff]
  %v38 = vld [vmem:[%s0 + $0x88] sm:$0xf]
  %v39 = vld [vmem:[%s0 + $0x8c] sm:$0xff]
  %v40 = vld [vmem:[%s0 + $0x94] sm:$0xff]
  %v41 = vld [vmem:[%s0 + $0x9c] sm:$0xf]
  %v42 = vld [vmem:[%s0 + $0xa0] sm:$0xff]
  %v43 = vld [vmem:[%s0 + $0xa8] sm:$0xff]
  %v44 = vld [vmem:[%s0 + $0xb0] sm:$0xf]
  %v45 = vld [vmem:[%s0 + $0xb4] sm:$0xff]
  %v46 = vld [vmem:[%s0 + $0xbc] sm:$0xff]
  %v47 = vld [vmem:[%s0 + $0xc4] sm:$0xf]
  %v48 = vld [vmem:[%s0 + $0xc8] sm:$0xff]
  %v49 = vld [vmem:[%s0 + $0xd0] sm:$0xff]
  %v50 = vld [vmem:[%s0 + $0xd8] sm:$0xf]
  %v51 = vld [vmem:[%s0 + $0xdc] sm:$0xff]
  %v52 = vld [vmem:[%s0 + $0xe4] sm:$0xff]
  %v53 = vld [vmem:[%s0 + $0xec] sm:$0xf]
  %v54 = vld [vmem:[%s0 + $0xf0] sm:$0xff]
  %v55 = vld [vmem:[%s0 + $0xf8] sm:$0xff]
  %v56 = vld [vmem:[%s0 + $0x100] sm:$0xf]
  %v57 = vld [vmem:[%s0 + $0x104] sm:$0xff]
  %v58 = vld [vmem:[%s0 + $0x10c] sm:$0xff]
  %v59 = vld [vmem:[%s0 + $0x114] sm:$0xf]
  %v60 = vld [vmem:[%s0 + $0x118] sm:$0xff]
  %v61 = vld [vmem:[%s0 + $0x120] sm:$0xff]
  %v62 = vld [vmem:[%s0 + $0x128] sm:$0xf]
  %v63 = vld [vmem:[%s0 + $0x12c] sm:$0xff]
  %v64 = vld [vmem:[%s0 + $0x134] sm:$0xff]
  %v65 = vld [vmem:[%s0 + $0x13c] sm:$0xf]
  %v66 = vld [vmem:[%s0 + $0x140] sm:$0xff]
  %v67 = vld [vmem:[%s0 + $0x148] sm:$0xff]
  %v68 = vld [vmem:[%s0 + $0x150] sm:$0xf]
  %v69 = vld [vmem:[%s0 + $0x154] sm:$0xff]
  %v70 = vld [vmem:[%s0 + $0x15c] sm:$0xff]
  %v71 = vld [vmem:[%s0 + $0x164] sm:$0xf]
  %v72 = vld [vmem:[%s0 + $0x168] sm:$0xff]
  %v73 = vld [vmem:[%s0 + $0x170] sm:$0xff]
  %v74 = vld [vmem:[%s0 + $0x178] sm:$0xf]
  %v75 = vld [vmem:[%s0 + $0x17c] sm:$0xff]
  %v76 = vld [vmem:[%s0 + $0x184] sm:$0xff]
  %v77 = vld [vmem:[%s0 + $0x18c] sm:$0xf]
  %v78 = vld [vmem:[%s0 + $0x190] sm:$0xff]
  %v79 = vld [vmem:[%s0 + $0x198] sm:$0xff]
  %v80 = vld [vmem:[%s0 + $0x1a0] sm:$0xf]
  %v81 = vld [vmem:[%s0 + $0x1a4] sm:$0xff]
  %v82 = vld [vmem:[%s0 + $0x1ac] sm:$0xff]
  %v83 = vld [vmem:[%s0 + $0x1b4] sm:$0xf]
  %v84 = vld [vmem:[%s0 + $0x1b8] sm:$0xff]
  %v85 = vld [vmem:[%s0 + $0x1c0] sm:$0xff]
  %v86 = vld [vmem:[%s0 + $0x1c8] sm:$0xf]
  %v87 = vld [vmem:[%s0 + $0x1cc] sm:$0xff]
  %v88 = vld [vmem:[%s0 + $0x1d4] sm:$0xff]
  %v89 = vld [vmem:[%s0 + $0x1dc] sm:$0xf]
  %v90 = vld [vmem:[%s0 + $0x1e0] sm:$0xff]
  %v91 = vld [vmem:[%s0 + $0x1e8] sm:$0xff]
  %v92 = vld [vmem:[%s0 + $0x1f0] sm:$0xf]
  %v93 = vld [vmem:[%s0 + $0x1f4] sm:$0xff]
  %v94 = vld [vmem:[%s0 + $0x1fc] sm:$0xff]
  %v95 = vld [vmem:[%s0 + $0x204] sm:$0xf]
  %v96 = vld [vmem:[%s0 + $0x208] sm:$0xff]
  %v97 = vld [vmem:[%s0 + $0x210] sm:$0xff]
  %v98 = vld [vmem:[%s0 + $0x218] sm:$0xf]
  %v99 = vld [vmem:[%s0 + $0x21c] sm:$0xff]
  %v100 = vld [vmem:[%s0 + $0x224] sm:$0xff]
  %v101 = vld [vmem:[%s0 + $0x22c] sm:$0xf]
  %v102 = vld [vmem:[%s0 + $0x230] sm:$0xff]
  %v103 = vld [vmem:[%s0 + $0x238] sm:$0xff]
  %v104 = vld [vmem:[%s0 + $0x240] sm:$0xf]
  %v105 = vld [vmem:[%s0 + $0x244] sm:$0xff]
  %v106 = vld [vmem:[%s0 + $0x24c] sm:$0xff]
  %v107 = vld [vmem:[%s0 + $0x254] sm:$0xf]
  %v108 = vld [vmem:[%s0 + $0x258] sm:$0xff]
  %v109 = vld [vmem:[%s0 + $0x260] sm:$0xff]
  %v110 = vld [vmem:[%s0 + $0x268] sm:$0xf]
  %v111 = vld [vmem:[%s0 + $0x26c] sm:$0xff]
  %v112 = vld [vmem:[%s0 + $0x274] sm:$0xff]
  %v113 = vld [vmem:[%s0 + $0x27c] sm:$0xf]
  %v114 = vld [vmem:[%s0 + $0x280] sm:$0xff]
  %v115 = vld [vmem:[%s0 + $0x288] sm:$0xff]
  %v116 = vld [vmem:[%s0 + $0x290] sm:$0xf]
  %v117 = vld [vmem:[%s0 + $0x294] sm:$0xff]
  %v118 = vld [vmem:[%s0 + $0x29c] sm:$0xff]
  %v119 = vld [vmem:[%s0 + $0x2a4] sm:$0xf]
  %v120 = vld [vmem:[%s0 + $0x2a8] sm:$0xff]
  %v121 = vld [vmem:[%s0 + $0x2b0] sm:$0xff]
  %v122 = vld [vmem:[%s0 + $0x2b8] sm:$0xf]
  %v123 = vld [vmem:[%s0 + $0x2bc] sm:$0xff]
  %v124 = vld [vmem:[%s0 + $0x2c4] sm:$0xff]
  %v125 = vld [vmem:[%s0 + $0x2cc] sm:$0xf]
  %v126 = vld [vmem:[%s0 + $0x2d0] sm:$0xff]
  %v127 = vld [vmem:[%s0 + $0x2d8] sm:$0xff]
  %v128 = vld [vmem:[%s0 + $0x2e0] sm:$0xf]
  %v129 = vld [vmem:[%s0 + $0x2e4] sm:$0xff]
  %v130 = vld [vmem:[%s0 + $0x2ec] sm:$0xff]
  %v131 = vld [vmem:[%s0 + $0x2f4] sm:$0xf]
  %v132 = vld [vmem:[%s0 + $0x2f8] sm:$0xff]
  %v133 = vld [vmem:[%s0 + $0x300] sm:$0xff]
  %v134 = vld [vmem:[%s0 + $0x308] sm:$0xf]
  %v135 = vld [vmem:[%s0 + $0x30c] sm:$0xff]
  %v136 = vld [vmem:[%s0 + $0x314] sm:$0xff]
  %v137 = vld [vmem:[%s0 + $0x31c] sm:$0xf]
  %v138 = vld [vmem:[%s0 + $0x320] sm:$0xff]
  %v139 = vld [vmem:[%s0 + $0x328] sm:$0xff]
  %v140 = vld [vmem:[%s0 + $0x330] sm:$0xf]
  %v141 = vld [vmem:[%s0 + $0x334] sm:$0xff]
  %v142 = vld [vmem:[%s0 + $0x33c] sm:$0xff]
  %v143 = vld [vmem:[%s0 + $0x344] sm:$0xf]
  %v144 = vld [vmem:[%s0 + $0x348] sm:$0xff]
  %v145 = vld [vmem:[%s0 + $0x350] sm:$0xff]
  %v146 = vld [vmem:[%s0 + $0x358] sm:$0xf]
  %v147 = vld [vmem:[%s0 + $0x35c] sm:$0xff]
  %v148 = vld [vmem:[%s0 + $0x364] sm:$0xff]
  %v149 = vld [vmem:[%s0 + $0x36c] sm:$0xf]
  %v150 = vld [vmem:[%s0 + $0x370] sm:$0xff]
  %v151 = vld [vmem:[%s0 + $0x378] sm:$0xff]
  %v152 = vld [vmem:[%s0 + $0x380] sm:$0xf]
  %v153 = vld [vmem:[%s0 + $0x384] sm:$0xff]
  %v154 = vld [vmem:[%s0 + $0x38c] sm:$0xff]
  %v155 = vld [vmem:[%s0 + $0x394] sm:$0xf]
  %v156 = vld [vmem:[%s0 + $0x398] sm:$0xff]
  %v157 = vld [vmem:[%s0 + $0x3a0] sm:$0xff]
  %v158 = vld [vmem:[%s0 + $0x3a8] sm:$0xf]
  %v159 = vld [vmem:[%s0 + $0x3ac] sm:$0xff]
  %v160 = vld [vmem:[%s0 + $0x3b4] sm:$0xff]
  %v161 = vld [vmem:[%s0 + $0x3bc] sm:$0xf]
  %v162 = vld [vmem:[%s0 + $0x3c0] sm:$0xff]
  %v163 = vld [vmem:[%s0 + $0x3c8] sm:$0xff]
  %v164 = vld [vmem:[%s0 + $0x3d0] sm:$0xf]
  %v165 = vld [vmem:[%s0 + $0x3d4] sm:$0xff]
  %v166 = vld [vmem:[%s0 + $0x3dc] sm:$0xff]
  %v167 = vld [vmem:[%s0 + $0x3e4] sm:$0xf]
  %v168 = vld [vmem:[%s0 + $0x3e8] sm:$0xff]
  %v169 = vld [vmem:[%s0 + $0x3f0] sm:$0xff]
  %v170 = vld [vmem:[%s0 + $0x3f8] sm:$0xf]
  %v171 = vld [vmem:[%s0 + $0x3fc] sm:$0xff]
  %v172 = vld [vmem:[%s0 + $0x404] sm:$0xff]
  %v173 = vld [vmem:[%s0 + $0x40c] sm:$0xf]
  %v174 = vld [vmem:[%s0 + $0x410] sm:$0xff]
  %v175 = vld [vmem:[%s0 + $0x418] sm:$0xff]
  %v176 = vld [vmem:[%s0 + $0x420] sm:$0xf]
  %v177 = vld [vmem:[%s0 + $0x424] sm:$0xff]
  %v178 = vld [vmem:[%s0 + $0x42c] sm:$0xff]
  %v179 = vld [vmem:[%s0 + $0x434] sm:$0xf]
  %v180 = vld [vmem:[%s0 + $0x438] sm:$0xff]
  %v181 = vld [vmem:[%s0 + $0x440] sm:$0xff]
  %v182 = vld [vmem:[%s0 + $0x448] sm:$0xf]
  %v183 = vld [vmem:[%s0 + $0x44c] sm:$0xff]
  %v184 = vld [vmem:[%s0 + $0x454] sm:$0xff]
  %v185 = vld [vmem:[%s0 + $0x45c] sm:$0xf]
  %v186 = vld [vmem:[%s0 + $0x460] sm:$0xff]
  %v187 = vld [vmem:[%s0 + $0x468] sm:$0xff]
  %v188 = vld [vmem:[%s0 + $0x470] sm:$0xf]
  %v189 = vld [vmem:[%s0 + $0x474] sm:$0xff]
  %v190 = vld [vmem:[%s0 + $0x47c] sm:$0xff]
  %v191 = vld [vmem:[%s0 + $0x484] sm:$0xf]
  %v192 = vld [vmem:[%s0 + $0x488] sm:$0xff]
  %v193 = vld [vmem:[%s0 + $0x490] sm:$0xff]
  %v194 = vld [vmem:[%s0 + $0x498] sm:$0xf]
  %v195 = vld [vmem:[%s0 + $0x49c] sm:$0xff]
  %v196 = vld [vmem:[%s0 + $0x4a4] sm:$0xff]
  %v197 = vld [vmem:[%s0 + $0x4ac] sm:$0xf]
  %v198 = vld [vmem:[%s0 + $0x4b0] sm:$0xff]
  %v199 = vld [vmem:[%s0 + $0x4b8] sm:$0xff]
  %v200 = vld [vmem:[%s0 + $0x4c0] sm:$0xf]
  %v201 = vld [vmem:[%s0 + $0x4c4] sm:$0xff]
  %v202 = vld [vmem:[%s0 + $0x4cc] sm:$0xff]
  %v203 = vld [vmem:[%s0 + $0x4d4] sm:$0xf]
  %v204 = vld [vmem:[%s0 + $0x4d8] sm:$0xff]
  %v205 = vld [vmem:[%s0 + $0x4e0] sm:$0xff]
  %v206 = vld [vmem:[%s0 + $0x4e8] sm:$0xf]
  %v207 = vld [vmem:[%s0 + $0x4ec] sm:$0xff]
  %v208 = vld [vmem:[%s0 + $0x4f4] sm:$0xff]
  %v209 = vld [vmem:[%s0 + $0x4fc] sm:$0xf]
  %v210 = vld [vmem:[%s1] sm:$0xf]
  %v211 = vld [vmem:[%s1 + $0x4] sm:$0xf]
  %v212 = vld [vmem:[%s1 + $0x8] sm:$0xf]
  %v213 = vld [vmem:[%s1 + $0xc] sm:$0xf]
  %v214 = vld [vmem:[%s1 + $0x10] sm:$0xf]
  %v215 = vld [vmem:[%s1 + $0x14] sm:$0xf]
  %v216 = vld [vmem:[%s1 + $0x18] sm:$0xf]
  %v217 = vld [vmem:[%s1 + $0x1c] sm:$0xf]
  %v218 = vld [vmem:[%s1 + $0x20] sm:$0xf]
  %v219 = vld [vmem:[%s1 + $0x24] sm:$0xf]
  %v220 = vld [vmem:[%s1 + $0x28] sm:$0xf]
  %v221 = vld [vmem:[%s1 + $0x2c] sm:$0xf]
  %v222 = vld [vmem:[%s1 + $0x30] sm:$0xf]
  %v223 = vld [vmem:[%s1 + $0x34] sm:$0xf]
  %v224 = vld [vmem:[%s1 + $0x38] sm:$0xf]
  %v225 = vld [vmem:[%s1 + $0x3c] sm:$0xf]
  %v226 = vld [vmem:[%s1 + $0x40] sm:$0xf]
  %v227 = vld [vmem:[%s1 + $0x44] sm:$0xf]
  %v228 = vld [vmem:[%s1 + $0x48] sm:$0xf]
  %v229 = vld [vmem:[%s1 + $0x4c] sm:$0xf]
  %v230 = vld [vmem:[%s1 + $0x50] sm:$0xf]
  %v231 = vld [vmem:[%s1 + $0x54] sm:$0xf]
  %v232 = vld [vmem:[%s1 + $0x58] sm:$0xf]
  %v233 = vld [vmem:[%s1 + $0x5c] sm:$0xf]
  %v234 = vld [vmem:[%s1 + $0x60] sm:$0xf]
  %v235 = vld [vmem:[%s1 + $0x64] sm:$0xf]
  %v236 = vld [vmem:[%s1 + $0x68] sm:$0xf]
  %v237 = vld [vmem:[%s1 + $0x6c] sm:$0xf]
  %v238 = vld [vmem:[%s1 + $0x70] sm:$0xf]
  %v239 = vld [vmem:[%s1 + $0x74] sm:$0xf]
  %v240 = vld [vmem:[%s1 + $0x78] sm:$0xf]
  %v241 = vld [vmem:[%s1 + $0x7c] sm:$0xf]
  %v242 = vld [vmem:[%s1 + $0x80] sm:$0xf]
  %v243 = vld [vmem:[%s1 + $0x84] sm:$0xf]
  %v244 = vld [vmem:[%s1 + $0x88] sm:$0xf]
  %v245 = vld [vmem:[%s1 + $0x8c] sm:$0xf]
  %v246 = vld [vmem:[%s1 + $0x90] sm:$0xf]
  %v247 = vld [vmem:[%s1 + $0x94] sm:$0xf]
  %v248 = vld [vmem:[%s1 + $0x98] sm:$0xf]
  %v249 = vld [vmem:[%s1 + $0x9c] sm:$0xf]
  %v250 = vld [vmem:[%s1 + $0xa0] sm:$0xf]
  %v251 = vld [vmem:[%s1 + $0xa4] sm:$0xf]
  %v252 = vld [vmem:[%s1 + $0xa8] sm:$0xf]
  %v253 = vld [vmem:[%s1 + $0xac] sm:$0xf]
  %v254 = vld [vmem:[%s1 + $0xb0] sm:$0xf]
  %v255 = vld [vmem:[%s1 + $0xb4] sm:$0xf]
  %v256 = vld [vmem:[%s1 + $0xb8] sm:$0xf]
  %v257 = vld [vmem:[%s1 + $0xbc] sm:$0xf]
  %v258 = vld [vmem:[%s1 + $0xc0] sm:$0xf]
  %v259 = vld [vmem:[%s1 + $0xc4] sm:$0xf]
  %v260 = vld [vmem:[%s1 + $0xc8] sm:$0xf]
  %v261 = vld [vmem:[%s1 + $0xcc] sm:$0xf]
  %v262 = vld [vmem:[%s1 + $0xd0] sm:$0xf]
  %v263 = vld [vmem:[%s1 + $0xd4] sm:$0xf]
  %v264 = vld [vmem:[%s1 + $0xd8] sm:$0xf]
  %v265 = vld [vmem:[%s1 + $0xdc] sm:$0xf]
  %v266 = vld [vmem:[%s1 + $0xe0] sm:$0xf]
  %v267 = vld [vmem:[%s1 + $0xe4] sm:$0xf]
  %v268 = vld [vmem:[%s1 + $0xe8] sm:$0xf]
  %v269 = vld [vmem:[%s1 + $0xec] sm:$0xf]
  %v270 = vld [vmem:[%s1 + $0xf0] sm:$0xf]
  %v271 = vld [vmem:[%s1 + $0xf4] sm:$0xf]
  %v272 = vld [vmem:[%s1 + $0xf8] sm:$0xf]
  %v273 = vld [vmem:[%s1 + $0xfc] sm:$0xf]
  %v274 = vld [vmem:[%s1 + $0x100] sm:$0xf]
  %v275 = vld [vmem:[%s1 + $0x104] sm:$0xf]
  %v276 = vld [vmem:[%s1 + $0x108] sm:$0xf]
  %v277 = vld [vmem:[%s1 + $0x10c] sm:$0xf]
  %v278 = vld [vmem:[%s1 + $0x110] sm:$0xf]
  %v279 = vld [vmem:[%s1 + $0x114] sm:$0xf]
  %v280 = vld [vmem:[%s1 + $0x118] sm:$0xf]
  %v281 = vld [vmem:[%s1 + $0x11c] sm:$0xf]
  %v282 = vld [vmem:[%s2] sm:$0x1]
  %v284 = vlaneseq
  %v285 = vshrl.u32 %v284, 7
  %v286 = vsub.s32 0, %v285
  %v287 = vrot.slane %v282, %v286
  %v481 = vunpack.c.l.b16 %v18
  %v482 = vunpack.c.h.b16 %v18
  %v483 = vunpack.c.l.b16 %v19
  %v484 = vunpack.c.h.b16 %v19
  %v485 = vunpack.c.l.b16 %v20
  %v486 = vunpack.c.l.b16 %v21
  %v487 = vunpack.c.h.b16 %v21
  %v488 = vunpack.c.l.b16 %v22
  %v489 = vunpack.c.h.b16 %v22
  %v490 = vunpack.c.l.b16 %v23
  %v491 = vunpack.c.l.b16 %v24
  %v492 = vunpack.c.h.b16 %v24
  %v493 = vunpack.c.l.b16 %v25
  %v494 = vunpack.c.h.b16 %v25
  %v495 = vunpack.c.l.b16 %v26
  %v496 = vunpack.c.l.b16 %v27
  %v497 = vunpack.c.h.b16 %v27
  %v498 = vunpack.c.l.b16 %v28
  %v499 = vunpack.c.h.b16 %v28
  %v500 = vunpack.c.l.b16 %v29
  %v501 = vunpack.c.l.b16 %v30
  %v502 = vunpack.c.h.b16 %v30
  %v503 = vunpack.c.l.b16 %v31
  %v504 = vunpack.c.h.b16 %v31
  %v505 = vunpack.c.l.b16 %v32
  %v506 = vunpack.c.l.b16 %v33
  %v507 = vunpack.c.h.b16 %v33
  %v508 = vunpack.c.l.b16 %v34
  %v509 = vunpack.c.h.b16 %v34
  %v510 = vunpack.c.l.b16 %v35
  %v511 = vunpack.c.l.b16 %v36
  %v512 = vunpack.c.h.b16 %v36
  %v513 = vunpack.c.l.b16 %v37
  %v514 = vunpack.c.h.b16 %v37
  %v515 = vunpack.c.l.b16 %v38
  %v516 = vunpack.c.l.b16 %v39
  %v517 = vunpack.c.h.b16 %v39
  %v518 = vunpack.c.l.b16 %v40
  %v519 = vunpack.c.h.b16 %v40
  %v520 = vunpack.c.l.b16 %v41
  %v521 = vunpack.c.l.b16 %v42
  %v522 = vunpack.c.h.b16 %v42
  %v523 = vunpack.c.l.b16 %v43
  %v524 = vunpack.c.h.b16 %v43
  %v525 = vunpack.c.l.b16 %v44
  %v526 = vunpack.c.l.b16 %v45
  %v527 = vunpack.c.h.b16 %v45
  %v528 = vunpack.c.l.b16 %v46
  %v529 = vunpack.c.h.b16 %v46
  %v530 = vunpack.c.l.b16 %v47
  %v531 = vunpack.c.l.b16 %v48
  %v532 = vunpack.c.h.b16 %v48
  %v533 = vunpack.c.l.b16 %v49
  %v534 = vunpack.c.h.b16 %v49
  %v535 = vunpack.c.l.b16 %v50
  %v536 = vunpack.c.l.b16 %v51
  %v537 = vunpack.c.h.b16 %v51
  %v538 = vunpack.c.l.b16 %v52
  %v539 = vunpack.c.h.b16 %v52
  %v540 = vunpack.c.l.b16 %v53
  %v541 = vunpack.c.l.b16 %v54
  %v542 = vunpack.c.h.b16 %v54
  %v543 = vunpack.c.l.b16 %v55
  %v544 = vunpack.c.h.b16 %v55
  %v545 = vunpack.c.l.b16 %v56
  %v546 = vunpack.c.l.b16 %v57
  %v547 = vunpack.c.h.b16 %v57
  %v548 = vunpack.c.l.b16 %v58
  %v549 = vunpack.c.h.b16 %v58
  %v550 = vunpack.c.l.b16 %v59
  %v551 = vunpack.c.l.b16 %v60
  %v552 = vunpack.c.h.b16 %v60
  %v553 = vunpack.c.l.b16 %v61
  %v554 = vunpack.c.h.b16 %v61
  %v555 = vunpack.c.l.b16 %v62
  %v556 = vunpack.c.l.b16 %v63
  %v557 = vunpack.c.h.b16 %v63
  %v558 = vunpack.c.l.b16 %v64
  %v559 = vunpack.c.h.b16 %v64
  %v560 = vunpack.c.l.b16 %v65
  %v561 = vunpack.c.l.b16 %v66
  %v562 = vunpack.c.h.b16 %v66
  %v563 = vunpack.c.l.b16 %v67
  %v564 = vunpack.c.h.b16 %v67
  %v565 = vunpack.c.l.b16 %v68
  %v566 = vunpack.c.l.b16 %v69
  %v567 = vunpack.c.h.b16 %v69
  %v568 = vunpack.c.l.b16 %v70
  %v569 = vunpack.c.h.b16 %v70
  %v570 = vunpack.c.l.b16 %v71
  %v571 = vunpack.c.l.b16 %v72
  %v572 = vunpack.c.h.b16 %v72
  %v573 = vunpack.c.l.b16 %v73
  %v574 = vunpack.c.h.b16 %v73
  %v575 = vunpack.c.l.b16 %v74
  %v576 = vunpack.c.l.b16 %v75
  %v577 = vunpack.c.h.b16 %v75
  %v578 = vunpack.c.l.b16 %v76
  %v579 = vunpack.c.h.b16 %v76
  %v580 = vunpack.c.l.b16 %v77
  %v581 = vunpack.c.l.b16 %v78
  %v582 = vunpack.c.h.b16 %v78
  %v583 = vunpack.c.l.b16 %v79
  %v584 = vunpack.c.h.b16 %v79
  %v585 = vunpack.c.l.b16 %v80
  %v586 = vunpack.c.l.b16 %v81
  %v587 = vunpack.c.h.b16 %v81
  %v588 = vunpack.c.l.b16 %v82
  %v589 = vunpack.c.h.b16 %v82
  %v590 = vunpack.c.l.b16 %v83
  %v591 = vunpack.c.l.b16 %v84
  %v592 = vunpack.c.h.b16 %v84
  %v593 = vunpack.c.l.b16 %v85
  %v594 = vunpack.c.h.b16 %v85
  %v595 = vunpack.c.l.b16 %v86
  %v596 = vunpack.c.l.b16 %v87
  %v597 = vunpack.c.h.b16 %v87
  %v598 = vunpack.c.l.b16 %v88
  %v599 = vunpack.c.h.b16 %v88
  %v600 = vunpack.c.l.b16 %v89
  %v601 = vunpack.c.l.b16 %v90
  %v602 = vunpack.c.h.b16 %v90
  %v603 = vunpack.c.l.b16 %v91
  %v604 = vunpack.c.h.b16 %v91
  %v605 = vunpack.c.l.b16 %v92
  %v606 = vunpack.c.l.b16 %v93
  %v607 = vunpack.c.h.b16 %v93
  %v608 = vunpack.c.l.b16 %v94
  %v609 = vunpack.c.h.b16 %v94
  %v610 = vunpack.c.l.b16 %v95
  %v611 = vunpack.c.l.b16 %v96
  %v612 = vunpack.c.h.b16 %v96
  %v613 = vunpack.c.l.b16 %v97
  %v614 = vunpack.c.h.b16 %v97
  %v615 = vunpack.c.l.b16 %v98
  %v616 = vunpack.c.l.b16 %v99
  %v617 = vunpack.c.h.b16 %v99
  %v618 = vunpack.c.l.b16 %v100
  %v619 = vunpack.c.h.b16 %v100
  %v620 = vunpack.c.l.b16 %v101
  %v621 = vunpack.c.l.b16 %v102
  %v622 = vunpack.c.h.b16 %v102
  %v623 = vunpack.c.l.b16 %v103
  %v624 = vunpack.c.h.b16 %v103
  %v625 = vunpack.c.l.b16 %v104
  %v626 = vunpack.c.l.b16 %v105
  %v627 = vunpack.c.h.b16 %v105
  %v628 = vunpack.c.l.b16 %v106
  %v629 = vunpack.c.h.b16 %v106
  %v630 = vunpack.c.l.b16 %v107
  %v631 = vunpack.c.l.b16 %v108
  %v632 = vunpack.c.h.b16 %v108
  %v633 = vunpack.c.l.b16 %v109
  %v634 = vunpack.c.h.b16 %v109
  %v635 = vunpack.c.l.b16 %v110
  %v636 = vunpack.c.l.b16 %v111
  %v637 = vunpack.c.h.b16 %v111
  %v638 = vunpack.c.l.b16 %v112
  %v639 = vunpack.c.h.b16 %v112
  %v640 = vunpack.c.l.b16 %v113
  %v641 = vunpack.c.l.b16 %v114
  %v642 = vunpack.c.h.b16 %v114
  %v643 = vunpack.c.l.b16 %v115
  %v644 = vunpack.c.h.b16 %v115
  %v645 = vunpack.c.l.b16 %v116
  %v646 = vunpack.c.l.b16 %v117
  %v647 = vunpack.c.h.b16 %v117
  %v648 = vunpack.c.l.b16 %v118
  %v649 = vunpack.c.h.b16 %v118
  %v650 = vunpack.c.l.b16 %v119
  %v651 = vunpack.c.l.b16 %v120
  %v652 = vunpack.c.h.b16 %v120
  %v653 = vunpack.c.l.b16 %v121
  %v654 = vunpack.c.h.b16 %v121
  %v655 = vunpack.c.l.b16 %v122
  %v656 = vunpack.c.l.b16 %v123
  %v657 = vunpack.c.h.b16 %v123
  %v658 = vunpack.c.l.b16 %v124
  %v659 = vunpack.c.h.b16 %v124
  %v660 = vunpack.c.l.b16 %v125
  %v661 = vunpack.c.l.b16 %v126
  %v662 = vunpack.c.h.b16 %v126
  %v663 = vunpack.c.l.b16 %v127
  %v664 = vunpack.c.h.b16 %v127
  %v665 = vunpack.c.l.b16 %v128
  %v666 = vunpack.c.l.b16 %v129
  %v667 = vunpack.c.h.b16 %v129
  %v668 = vunpack.c.l.b16 %v130
  %v669 = vunpack.c.h.b16 %v130
  %v670 = vunpack.c.l.b16 %v131
  %v671 = vunpack.c.l.b16 %v132
  %v672 = vunpack.c.h.b16 %v132
  %v673 = vunpack.c.l.b16 %v133
  %v674 = vunpack.c.h.b16 %v133
  %v675 = vunpack.c.l.b16 %v134
  %v676 = vunpack.c.l.b16 %v135
  %v677 = vunpack.c.h.b16 %v135
  %v678 = vunpack.c.l.b16 %v136
  %v679 = vunpack.c.h.b16 %v136
  %v680 = vunpack.c.l.b16 %v137
  %v681 = vunpack.c.l.b16 %v138
  %v682 = vunpack.c.h.b16 %v138
  %v683 = vunpack.c.l.b16 %v139
  %v684 = vunpack.c.h.b16 %v139
  %v685 = vunpack.c.l.b16 %v140
  %v686 = vunpack.c.l.b16 %v141
  %v687 = vunpack.c.h.b16 %v141
  %v688 = vunpack.c.l.b16 %v142
  %v689 = vunpack.c.h.b16 %v142
  %v690 = vunpack.c.l.b16 %v143
  %v691 = vunpack.c.l.b16 %v144
  %v692 = vunpack.c.h.b16 %v144
  %v693 = vunpack.c.l.b16 %v145
  %v694 = vunpack.c.h.b16 %v145
  %v695 = vunpack.c.l.b16 %v146
  %v696 = vunpack.c.l.b16 %v147
  %v697 = vunpack.c.h.b16 %v147
  %v698 = vunpack.c.l.b16 %v148
  %v699 = vunpack.c.h.b16 %v148
  %v700 = vunpack.c.l.b16 %v149
  %v701 = vunpack.c.l.b16 %v150
  %v702 = vunpack.c.h.b16 %v150
  %v703 = vunpack.c.l.b16 %v151
  %v704 = vunpack.c.h.b16 %v151
  %v705 = vunpack.c.l.b16 %v152
  %v706 = vunpack.c.l.b16 %v153
  %v707 = vunpack.c.h.b16 %v153
  %v708 = vunpack.c.l.b16 %v154
  %v709 = vunpack.c.h.b16 %v154
  %v710 = vunpack.c.l.b16 %v155
  %v711 = vunpack.c.l.b16 %v156
  %v712 = vunpack.c.h.b16 %v156
  %v713 = vunpack.c.l.b16 %v157
  %v714 = vunpack.c.h.b16 %v157
  %v715 = vunpack.c.l.b16 %v158
  %v716 = vunpack.c.l.b16 %v159
  %v717 = vunpack.c.h.b16 %v159
  %v718 = vunpack.c.l.b16 %v160
  %v719 = vunpack.c.h.b16 %v160
  %v720 = vunpack.c.l.b16 %v161
  %v721 = vunpack.c.l.b16 %v162
  %v722 = vunpack.c.h.b16 %v162
  %v723 = vunpack.c.l.b16 %v163
  %v724 = vunpack.c.h.b16 %v163
  %v725 = vunpack.c.l.b16 %v164
  %v726 = vunpack.c.l.b16 %v165
  %v727 = vunpack.c.h.b16 %v165
  %v728 = vunpack.c.l.b16 %v166
  %v729 = vunpack.c.h.b16 %v166
  %v730 = vunpack.c.l.b16 %v167
  %v731 = vunpack.c.l.b16 %v168
  %v732 = vunpack.c.h.b16 %v168
  %v733 = vunpack.c.l.b16 %v169
  %v734 = vunpack.c.h.b16 %v169
  %v735 = vunpack.c.l.b16 %v170
  %v736 = vunpack.c.l.b16 %v171
  %v737 = vunpack.c.h.b16 %v171
  %v738 = vunpack.c.l.b16 %v172
  %v739 = vunpack.c.h.b16 %v172
  %v740 = vunpack.c.l.b16 %v173
  %v741 = vunpack.c.l.b16 %v174
  %v742 = vunpack.c.h.b16 %v174
  %v743 = vunpack.c.l.b16 %v175
  %v744 = vunpack.c.h.b16 %v175
  %v745 = vunpack.c.l.b16 %v176
  %v746 = vunpack.c.l.b16 %v177
  %v747 = vunpack.c.h.b16 %v177
  %v748 = vunpack.c.l.b16 %v178
  %v749 = vunpack.c.h.b16 %v178
  %v750 = vunpack.c.l.b16 %v179
  %v751 = vunpack.c.l.b16 %v180
  %v752 = vunpack.c.h.b16 %v180
  %v753 = vunpack.c.l.b16 %v181
  %v754 = vunpack.c.h.b16 %v181
  %v755 = vunpack.c.l.b16 %v182
  %v756 = vunpack.c.l.b16 %v183
  %v757 = vunpack.c.h.b16 %v183
  %v758 = vunpack.c.l.b16 %v184
  %v759 = vunpack.c.h.b16 %v184
  %v760 = vunpack.c.l.b16 %v185
  %v761 = vunpack.c.l.b16 %v186
  %v762 = vunpack.c.h.b16 %v186
  %v763 = vunpack.c.l.b16 %v187
  %v764 = vunpack.c.h.b16 %v187
  %v765 = vunpack.c.l.b16 %v188
  %v766 = vunpack.c.l.b16 %v189
  %v767 = vunpack.c.h.b16 %v189
  %v768 = vunpack.c.l.b16 %v190
  %v769 = vunpack.c.h.b16 %v190
  %v770 = vunpack.c.l.b16 %v191
  %v771 = vunpack.c.l.b16 %v192
  %v772 = vunpack.c.h.b16 %v192
  %v773 = vunpack.c.l.b16 %v193
  %v774 = vunpack.c.h.b16 %v193
  %v775 = vunpack.c.l.b16 %v194
  %v776 = vunpack.c.l.b16 %v195
  %v777 = vunpack.c.h.b16 %v195
  %v778 = vunpack.c.l.b16 %v196
  %v779 = vunpack.c.h.b16 %v196
  %v780 = vunpack.c.l.b16 %v197
  %v781 = vunpack.c.l.b16 %v198
  %v782 = vunpack.c.h.b16 %v198
  %v783 = vunpack.c.l.b16 %v199
  %v784 = vunpack.c.h.b16 %v199
  %v785 = vunpack.c.l.b16 %v200
  %v786 = vunpack.c.l.b16 %v201
  %v787 = vunpack.c.h.b16 %v201
  %v788 = vunpack.c.l.b16 %v202
  %v789 = vunpack.c.h.b16 %v202
  %v790 = vunpack.c.l.b16 %v203
  %v791 = vunpack.c.l.b16 %v204
  %v792 = vunpack.c.h.b16 %v204
  %v793 = vunpack.c.l.b16 %v205
  %v794 = vunpack.c.h.b16 %v205
  %v795 = vunpack.c.l.b16 %v206
  %v796 = vunpack.c.l.b16 %v207
  %v797 = vunpack.c.h.b16 %v207
  %v798 = vunpack.c.l.b16 %v208
  %v799 = vunpack.c.h.b16 %v208
  %v800 = vunpack.c.l.b16 %v209
  %v801 = vpack.c.b16 %v486, %v481
  %v802 = vpack.c.b16 %v487, %v482
  %v803 = vpack.c.b16 %v488, %v483
  %v804 = vpack.c.b16 %v489, %v484
  %v805 = vpack.c.b16 %v490, %v485
  %v806 = vpack.c.b16 %v496, %v491
  %v807 = vpack.c.b16 %v497, %v492
  %v808 = vpack.c.b16 %v498, %v493
  %v809 = vpack.c.b16 %v499, %v494
  %v810 = vpack.c.b16 %v500, %v495
  %v811 = vpack.c.b16 %v506, %v501
  %v812 = vpack.c.b16 %v507, %v502
  %v813 = vpack.c.b16 %v508, %v503
  %v814 = vpack.c.b16 %v509, %v504
  %v815 = vpack.c.b16 %v510, %v505
  %v816 = vpack.c.b16 %v516, %v511
  %v817 = vpack.c.b16 %v517, %v512
  %v818 = vpack.c.b16 %v518, %v513
  %v819 = vpack.c.b16 %v519, %v514
  %v820 = vpack.c.b16 %v520, %v515
  %v821 = vpack.c.b16 %v526, %v521
  %v822 = vpack.c.b16 %v527, %v522
  %v823 = vpack.c.b16 %v528, %v523
  %v824 = vpack.c.b16 %v529, %v524
  %v825 = vpack.c.b16 %v530, %v525
  %v826 = vpack.c.b16 %v536, %v531
  %v827 = vpack.c.b16 %v537, %v532
  %v828 = vpack.c.b16 %v538, %v533
  %v829 = vpack.c.b16 %v539, %v534
  %v830 = vpack.c.b16 %v540, %v535
  %v831 = vpack.c.b16 %v546, %v541
  %v832 = vpack.c.b16 %v547, %v542
  %v833 = vpack.c.b16 %v548, %v543
  %v834 = vpack.c.b16 %v549, %v544
  %v835 = vpack.c.b16 %v550, %v545
  %v836 = vpack.c.b16 %v556, %v551
  %v837 = vpack.c.b16 %v557, %v552
  %v838 = vpack.c.b16 %v558, %v553
  %v839 = vpack.c.b16 %v559, %v554
  %v840 = vpack.c.b16 %v560, %v555
  %v841 = vpack.c.b16 %v566, %v561
  %v842 = vpack.c.b16 %v567, %v562
  %v843 = vpack.c.b16 %v568, %v563
  %v844 = vpack.c.b16 %v569, %v564
  %v845 = vpack.c.b16 %v570, %v565
  %v846 = vpack.c.b16 %v576, %v571
  %v847 = vpack.c.b16 %v577, %v572
  %v848 = vpack.c.b16 %v578, %v573
  %v849 = vpack.c.b16 %v579, %v574
  %v850 = vpack.c.b16 %v580, %v575
  %v851 = vpack.c.b16 %v586, %v581
  %v852 = vpack.c.b16 %v587, %v582
  %v853 = vpack.c.b16 %v588, %v583
  %v854 = vpack.c.b16 %v589, %v584
  %v855 = vpack.c.b16 %v590, %v585
  %v856 = vpack.c.b16 %v596, %v591
  %v857 = vpack.c.b16 %v597, %v592
  %v858 = vpack.c.b16 %v598, %v593
  %v859 = vpack.c.b16 %v599, %v594
  %v860 = vpack.c.b16 %v600, %v595
  %v861 = vpack.c.b16 %v606, %v601
  %v862 = vpack.c.b16 %v607, %v602
  %v863 = vpack.c.b16 %v608, %v603
  %v864 = vpack.c.b16 %v609, %v604
  %v865 = vpack.c.b16 %v610, %v605
  %v866 = vpack.c.b16 %v616, %v611
  %v867 = vpack.c.b16 %v617, %v612
  %v868 = vpack.c.b16 %v618, %v613
  %v869 = vpack.c.b16 %v619, %v614
  %v870 = vpack.c.b16 %v620, %v615
  %v871 = vpack.c.b16 %v626, %v621
  %v872 = vpack.c.b16 %v627, %v622
  %v873 = vpack.c.b16 %v628, %v623
  %v874 = vpack.c.b16 %v629, %v624
  %v875 = vpack.c.b16 %v630, %v625
  %v876 = vpack.c.b16 %v636, %v631
  %v877 = vpack.c.b16 %v637, %v632
  %v878 = vpack.c.b16 %v638, %v633
  %v879 = vpack.c.b16 %v639, %v634
  %v880 = vpack.c.b16 %v640, %v635
  %v881 = vpack.c.b16 %v646, %v641
  %v882 = vpack.c.b16 %v647, %v642
  %v883 = vpack.c.b16 %v648, %v643
  %v884 = vpack.c.b16 %v649, %v644
  %v885 = vpack.c.b16 %v650, %v645
  %v886 = vpack.c.b16 %v656, %v651
  %v887 = vpack.c.b16 %v657, %v652
  %v888 = vpack.c.b16 %v658, %v653
  %v889 = vpack.c.b16 %v659, %v654
  %v890 = vpack.c.b16 %v660, %v655
  %v891 = vpack.c.b16 %v666, %v661
  %v892 = vpack.c.b16 %v667, %v662
  %v893 = vpack.c.b16 %v668, %v663
  %v894 = vpack.c.b16 %v669, %v664
  %v895 = vpack.c.b16 %v670, %v665
  %v896 = vpack.c.b16 %v676, %v671
  %v897 = vpack.c.b16 %v677, %v672
  %v898 = vpack.c.b16 %v678, %v673
  %v899 = vpack.c.b16 %v679, %v674
  %v900 = vpack.c.b16 %v680, %v675
  %v901 = vpack.c.b16 %v686, %v681
  %v902 = vpack.c.b16 %v687, %v682
  %v903 = vpack.c.b16 %v688, %v683
  %v904 = vpack.c.b16 %v689, %v684
  %v905 = vpack.c.b16 %v690, %v685
  %v906 = vpack.c.b16 %v696, %v691
  %v907 = vpack.c.b16 %v697, %v692
  %v908 = vpack.c.b16 %v698, %v693
  %v909 = vpack.c.b16 %v699, %v694
  %v910 = vpack.c.b16 %v700, %v695
  %v911 = vpack.c.b16 %v706, %v701
  %v912 = vpack.c.b16 %v707, %v702
  %v913 = vpack.c.b16 %v708, %v703
  %v914 = vpack.c.b16 %v709, %v704
  %v915 = vpack.c.b16 %v710, %v705
  %v916 = vpack.c.b16 %v716, %v711
  %v917 = vpack.c.b16 %v717, %v712
  %v918 = vpack.c.b16 %v718, %v713
  %v919 = vpack.c.b16 %v719, %v714
  %v920 = vpack.c.b16 %v720, %v715
  %v921 = vpack.c.b16 %v726, %v721
  %v922 = vpack.c.b16 %v727, %v722
  %v923 = vpack.c.b16 %v728, %v723
  %v924 = vpack.c.b16 %v729, %v724
  %v925 = vpack.c.b16 %v730, %v725
  %v926 = vpack.c.b16 %v736, %v731
  %v927 = vpack.c.b16 %v737, %v732
  %v928 = vpack.c.b16 %v738, %v733
  %v929 = vpack.c.b16 %v739, %v734
  %v930 = vpack.c.b16 %v740, %v735
  %v931 = vpack.c.b16 %v746, %v741
  %v932 = vpack.c.b16 %v747, %v742
  %v933 = vpack.c.b16 %v748, %v743
  %v934 = vpack.c.b16 %v749, %v744
  %v935 = vpack.c.b16 %v750, %v745
  %v936 = vpack.c.b16 %v756, %v751
  %v937 = vpack.c.b16 %v757, %v752
  %v938 = vpack.c.b16 %v758, %v753
  %v939 = vpack.c.b16 %v759, %v754
  %v940 = vpack.c.b16 %v760, %v755
  %v941 = vpack.c.b16 %v766, %v761
  %v942 = vpack.c.b16 %v767, %v762
  %v943 = vpack.c.b16 %v768, %v763
  %v944 = vpack.c.b16 %v769, %v764
  %v945 = vpack.c.b16 %v770, %v765
  %v946 = vpack.c.b16 %v776, %v771
  %v947 = vpack.c.b16 %v777, %v772
  %v948 = vpack.c.b16 %v778, %v773
  %v949 = vpack.c.b16 %v779, %v774
  %v950 = vpack.c.b16 %v780, %v775
  %v951 = vpack.c.b16 %v786, %v781
  %v952 = vpack.c.b16 %v787, %v782
  %v953 = vpack.c.b16 %v788, %v783
  %v954 = vpack.c.b16 %v789, %v784
  %v955 = vpack.c.b16 %v790, %v785
  %v956 = vpack.c.b16 %v796, %v791
  %v957 = vpack.c.b16 %v797, %v792
  %v958 = vpack.c.b16 %v798, %v793
  %v959 = vpack.c.b16 %v799, %v794
  %v960 = vpack.c.b16 %v800, %v795
  %v1161 = vunpack.c.l.b16 %v210
  %v1162 = vunpack.c.l.b16 %v211
  %v1163 = vunpack.c.l.b16 %v212
  %v1164 = vunpack.c.l.b16 %v213
  %v1165 = vunpack.c.l.b16 %v214
  %v1166 = vunpack.c.l.b16 %v215
  %v1167 = vunpack.c.l.b16 %v216
  %v1168 = vunpack.c.l.b16 %v217
  %v1169 = vunpack.c.l.b16 %v218
  %v1170 = vunpack.c.l.b16 %v219
  %v1171 = vunpack.c.l.b16 %v220
  %v1172 = vunpack.c.l.b16 %v221
  %v1173 = vunpack.c.l.b16 %v222
  %v1174 = vunpack.c.l.b16 %v223
  %v1175 = vunpack.c.l.b16 %v224
  %v1176 = vunpack.c.l.b16 %v225
  %v1177 = vunpack.c.l.b16 %v226
  %v1178 = vunpack.c.l.b16 %v227
  %v1179 = vunpack.c.l.b16 %v228
  %v1180 = vunpack.c.l.b16 %v229
  %v1181 = vunpack.c.l.b16 %v230
  %v1182 = vunpack.c.l.b16 %v231
  %v1183 = vunpack.c.l.b16 %v232
  %v1184 = vunpack.c.l.b16 %v233
  %v1185 = vunpack.c.l.b16 %v234
  %v1186 = vunpack.c.l.b16 %v235
  %v1187 = vunpack.c.l.b16 %v236
  %v1188 = vunpack.c.l.b16 %v237
  %v1189 = vunpack.c.l.b16 %v238
  %v1190 = vunpack.c.l.b16 %v239
  %v1191 = vunpack.c.l.b16 %v240
  %v1192 = vunpack.c.l.b16 %v241
  %v1193 = vunpack.c.l.b16 %v242
  %v1194 = vunpack.c.l.b16 %v243
  %v1195 = vunpack.c.l.b16 %v244
  %v1196 = vunpack.c.l.b16 %v245
  %v1197 = vunpack.c.l.b16 %v246
  %v1198 = vunpack.c.l.b16 %v247
  %v1199 = vunpack.c.l.b16 %v248
  %v1200 = vunpack.c.l.b16 %v249
  %v1201 = vunpack.c.l.b16 %v250
  %v1202 = vunpack.c.l.b16 %v251
  %v1203 = vunpack.c.l.b16 %v252
  %v1204 = vunpack.c.l.b16 %v253
  %v1205 = vunpack.c.l.b16 %v254
  %v1206 = vunpack.c.l.b16 %v255
  %v1207 = vunpack.c.l.b16 %v256
  %v1208 = vunpack.c.l.b16 %v257
  %v1209 = vunpack.c.l.b16 %v258
  %v1210 = vunpack.c.l.b16 %v259
  %v1211 = vunpack.c.l.b16 %v260
  %v1212 = vunpack.c.l.b16 %v261
  %v1213 = vunpack.c.l.b16 %v262
  %v1214 = vunpack.c.l.b16 %v263
  %v1215 = vunpack.c.l.b16 %v264
  %v1216 = vunpack.c.l.b16 %v265
  %v1217 = vunpack.c.l.b16 %v266
  %v1218 = vunpack.c.l.b16 %v267
  %v1219 = vunpack.c.l.b16 %v268
  %v1220 = vunpack.c.l.b16 %v269
  %v1221 = vunpack.c.l.b16 %v270
  %v1222 = vunpack.c.l.b16 %v271
  %v1223 = vunpack.c.l.b16 %v272
  %v1224 = vunpack.c.l.b16 %v273
  %v1225 = vunpack.c.l.b16 %v274
  %v1226 = vunpack.c.l.b16 %v275
  %v1227 = vunpack.c.l.b16 %v276
  %v1228 = vunpack.c.l.b16 %v277
  %v1229 = vunpack.c.l.b16 %v278
  %v1230 = vunpack.c.l.b16 %v279
  %v1231 = vunpack.c.l.b16 %v280
  %v1232 = vunpack.c.l.b16 %v281
  %v1233 = vpack.c.b16 %v1162, %v1161
  %v1234 = vpack.c.b16 %v1164, %v1163
  %v1235 = vpack.c.b16 %v1166, %v1165
  %v1236 = vpack.c.b16 %v1168, %v1167
  %v1237 = vpack.c.b16 %v1170, %v1169
  %v1238 = vpack.c.b16 %v1172, %v1171
  %v1239 = vpack.c.b16 %v1174, %v1173
  %v1240 = vpack.c.b16 %v1176, %v1175
  %v1241 = vpack.c.b16 %v1178, %v1177
  %v1242 = vpack.c.b16 %v1180, %v1179
  %v1243 = vpack.c.b16 %v1182, %v1181
  %v1244 = vpack.c.b16 %v1184, %v1183
  %v1245 = vpack.c.b16 %v1186, %v1185
  %v1246 = vpack.c.b16 %v1188, %v1187
  %v1247 = vpack.c.b16 %v1190, %v1189
  %v1248 = vpack.c.b16 %v1192, %v1191
  %v1249 = vpack.c.b16 %v1194, %v1193
  %v1250 = vpack.c.b16 %v1196, %v1195
  %v1251 = vpack.c.b16 %v1198, %v1197
  %v1252 = vpack.c.b16 %v1200, %v1199
  %v1253 = vpack.c.b16 %v1202, %v1201
  %v1254 = vpack.c.b16 %v1204, %v1203
  %v1255 = vpack.c.b16 %v1206, %v1205
  %v1256 = vpack.c.b16 %v1208, %v1207
  %v1257 = vpack.c.b16 %v1210, %v1209
  %v1258 = vpack.c.b16 %v1212, %v1211
  %v1259 = vpack.c.b16 %v1214, %v1213
  %v1260 = vpack.c.b16 %v1216, %v1215
  %v1261 = vpack.c.b16 %v1218, %v1217
  %v1262 = vpack.c.b16 %v1220, %v1219
  %v1263 = vpack.c.b16 %v1222, %v1221
  %v1264 = vpack.c.b16 %v1224, %v1223
  %v1265 = vpack.c.b16 %v1226, %v1225
  %v1266 = vpack.c.b16 %v1228, %v1227
  %v1267 = vpack.c.b16 %v1230, %v1229
  %v1268 = vpack.c.b16 %v1232, %v1231
  %vm1305 = vcmask 523264
  %v1307 = vsel %vm1305, %v805, 0
  %v1310 = vsel %vm1305, %v810, 0
  %v1313 = vsel %vm1305, %v815, 0
  %v1316 = vsel %vm1305, %v820, 0
  %v1319 = vsel %vm1305, %v825, 0
  %v1322 = vsel %vm1305, %v830, 0
  %v1325 = vsel %vm1305, %v835, 0
  %v1328 = vsel %vm1305, %v840, 0
  %v1331 = vsel %vm1305, %v845, 0
  %v1334 = vsel %vm1305, %v850, 0
  %v1337 = vsel %vm1305, %v855, 0
  %v1340 = vsel %vm1305, %v860, 0
  %v1343 = vsel %vm1305, %v865, 0
  %v1346 = vsel %vm1305, %v870, 0
  %v1349 = vsel %vm1305, %v875, 0
  %v1352 = vsel %vm1305, %v880, 0
  %v1355 = vsel %vm1305, %v885, 0
  %v1358 = vsel %vm1305, %v890, 0
  %v1361 = vsel %vm1305, %v895, 0
  %v1364 = vsel %vm1305, %v900, 0
  %v1367 = vsel %vm1305, %v905, 0
  %v1370 = vsel %vm1305, %v910, 0
  %v1373 = vsel %vm1305, %v915, 0
  %v1376 = vsel %vm1305, %v920, 0
  %v1379 = vsel %vm1305, %v925, 0
  %v1382 = vsel %vm1305, %v930, 0
  %v1385 = vsel %vm1305, %v935, 0
  %v1388 = vsel %vm1305, %v940, 0
  %v1391 = vsel %vm1305, %v945, 0
  %v1394 = vsel %vm1305, %v950, 0
  %v1397 = vsel %vm1305, %v955, 0
  %v1400 = vsel %vm1305, %v960, 0
  %1402 = vmatprep.subr.bf16.mxu0 0
  %1403 = vmatpush1.bf16.msra.mxu0 %v1240
  %1404 = vmatprep.subr.bf16.mxu0 0
  %1405 = vmatpush1.bf16.msra.mxu0 %v1239
  %1406 = vmatprep.subr.bf16.mxu0 0
  %1407 = vmatpush1.bf16.msra.mxu0 %v1238
  %1408 = vmatprep.subr.bf16.mxu0 0
  %1409 = vmatpush1.bf16.msra.mxu0 %v1237
  %1410 = vmatprep.subr.bf16.mxu0 0
  %1411 = vmatpush1.bf16.msra.mxu0 %v1236
  %1412 = vmatprep.subr.bf16.mxu0 0
  %1413 = vmatpush1.bf16.msra.mxu0 %v1235
  %1414 = vmatprep.subr.bf16.mxu0 0
  %1415 = vmatpush1.bf16.msra.mxu0 %v1234
  %1416 = vmatprep.subr.bf16.mxu0 0
  %1417 = vmatpush1.bf16.msra.mxu0 %v1233
  %1418 = vmatprep.subr.bf16.mxu0 0
  %1419 = vmatpush2.bf16.msra.mxu0 %v1248
  %1420 = vmatprep.subr.bf16.mxu0 0
  %1421 = vmatpush2.bf16.msra.mxu0 %v1247
  %1422 = vmatprep.subr.bf16.mxu0 0
  %1423 = vmatpush2.bf16.msra.mxu0 %v1246
  %1424 = vmatprep.subr.bf16.mxu0 0
  %1425 = vmatpush2.bf16.msra.mxu0 %v1245
  %1426 = vmatprep.subr.bf16.mxu0 0
  %1427 = vmatpush2.bf16.msra.mxu0 %v1244
  %1428 = vmatprep.subr.bf16.mxu0 0
  %1429 = vmatpush2.bf16.msra.mxu0 %v1243
  %1430 = vmatprep.subr.bf16.mxu0 0
  %1431 = vmatpush2.bf16.msra.mxu0 %v1242
  %1432 = vmatprep.subr.bf16.mxu0 0
  %1433 = vmatpush2.bf16.msra.mxu0 %v1241
  %1434 = vmatprep.mubr.bf16.mxu0 %v802
  %1435 = vmatmul.mubr.bf16.gmra.mxu0 %v801
  %v1436 = vpop.f32.mrf.mxu0
  %v1437 = vadd.f32 %v287, %v1436
  %v1438 = vpop.f32.mrf.mxu0
  %v1439 = vpop.f32.mrf.mxu0
  %v1440 = vadd.f32 %v287, %v1439
  %v1441 = vpop.f32.mrf.mxu0
  %1442 = vmatprep.mubr.bf16.mxu0 %v807
  %1443 = vmatmul.mubr.bf16.gmra.mxu0 %v806
  %v1444 = vpop.f32.mrf.mxu0
  %v1445 = vadd.f32 %v287, %v1444
  %v1446 = vpop.f32.mrf.mxu0
  %v1447 = vpop.f32.mrf.mxu0
  %v1448 = vadd.f32 %v287, %v1447
  %v1449 = vpop.f32.mrf.mxu0
  %1450 = vmatprep.mubr.bf16.mxu0 %v812
  %1451 = vmatmul.mubr.bf16.gmra.mxu0 %v811
  %v1452 = vpop.f32.mrf.mxu0
  %v1453 = vadd.f32 %v287, %v1452
  %v1454 = vpop.f32.mrf.mxu0
  %v1455 = vpop.f32.mrf.mxu0
  %v1456 = vadd.f32 %v287, %v1455
  %v1457 = vpop.f32.mrf.mxu0
  %1458 = vmatprep.mubr.bf16.mxu0 %v817
  %1459 = vmatmul.mubr.bf16.gmra.mxu0 %v816
  %v1460 = vpop.f32.mrf.mxu0
  %v1461 = vadd.f32 %v287, %v1460
  %v1462 = vpop.f32.mrf.mxu0
  %v1463 = vpop.f32.mrf.mxu0
  %v1464 = vadd.f32 %v287, %v1463
  %v1465 = vpop.f32.mrf.mxu0
  %1466 = vmatprep.mubr.bf16.mxu0 %v822
  %1467 = vmatmul.mubr.bf16.gmra.mxu0 %v821
  %v1468 = vpop.f32.mrf.mxu0
  %v1469 = vadd.f32 %v287, %v1468
  %v1470 = vpop.f32.mrf.mxu0
  %v1471 = vpop.f32.mrf.mxu0
  %v1472 = vadd.f32 %v287, %v1471
  %v1473 = vpop.f32.mrf.mxu0
  %1474 = vmatprep.mubr.bf16.mxu0 %v827
  %1475 = vmatmul.mubr.bf16.gmra.mxu0 %v826
  %v1476 = vpop.f32.mrf.mxu0
  %v1477 = vadd.f32 %v287, %v1476
  %v1478 = vpop.f32.mrf.mxu0
  %v1479 = vpop.f32.mrf.mxu0
  %v1480 = vadd.f32 %v287, %v1479
  %v1481 = vpop.f32.mrf.mxu0
  %1482 = vmatprep.mubr.bf16.mxu0 %v832
  %1483 = vmatmul.mubr.bf16.gmra.mxu0 %v831
  %v1484 = vpop.f32.mrf.mxu0
  %v1485 = vadd.f32 %v287, %v1484
  %v1486 = vpop.f32.mrf.mxu0
  %v1487 = vpop.f32.mrf.mxu0
  %v1488 = vadd.f32 %v287, %v1487
  %v1489 = vpop.f32.mrf.mxu0
  %1490 = vmatprep.mubr.bf16.mxu0 %v837
  %1491 = vmatmul.mubr.bf16.gmra.mxu0 %v836
  %v1492 = vpop.f32.mrf.mxu0
  %v1493 = vadd.f32 %v287, %v1492
  %v1494 = vpop.f32.mrf.mxu0
  %v1495 = vpop.f32.mrf.mxu0
  %v1496 = vadd.f32 %v287, %v1495
  %v1497 = vpop.f32.mrf.mxu0
  %1498 = vmatprep.mubr.bf16.mxu0 %v842
  %1499 = vmatmul.mubr.bf16.gmra.mxu0 %v841
  %v1500 = vpop.f32.mrf.mxu0
  %v1501 = vadd.f32 %v287, %v1500
  %v1502 = vpop.f32.mrf.mxu0
  %v1503 = vpop.f32.mrf.mxu0
  %v1504 = vadd.f32 %v287, %v1503
  %v1505 = vpop.f32.mrf.mxu0
  %1506 = vmatprep.mubr.bf16.mxu0 %v847
  %1507 = vmatmul.mubr.bf16.gmra.mxu0 %v846
  %v1508 = vpop.f32.mrf.mxu0
  %v1509 = vadd.f32 %v287, %v1508
  %v1510 = vpop.f32.mrf.mxu0
  %v1511 = vpop.f32.mrf.mxu0
  %v1512 = vadd.f32 %v287, %v1511
  %v1513 = vpop.f32.mrf.mxu0
  %1514 = vmatprep.mubr.bf16.mxu0 %v852
  %1515 = vmatmul.mubr.bf16.gmra.mxu0 %v851
  %v1516 = vpop.f32.mrf.mxu0
  %v1517 = vadd.f32 %v287, %v1516
  %v1518 = vpop.f32.mrf.mxu0
  %v1519 = vpop.f32.mrf.mxu0
  %v1520 = vadd.f32 %v287, %v1519
  %v1521 = vpop.f32.mrf.mxu0
  %1522 = vmatprep.mubr.bf16.mxu0 %v857
  %1523 = vmatmul.mubr.bf16.gmra.mxu0 %v856
  %v1524 = vpop.f32.mrf.mxu0
  %v1525 = vadd.f32 %v287, %v1524
  %v1526 = vpop.f32.mrf.mxu0
  %v1527 = vpop.f32.mrf.mxu0
  %v1528 = vadd.f32 %v287, %v1527
  %v1529 = vpop.f32.mrf.mxu0
  %1530 = vmatprep.mubr.bf16.mxu0 %v862
  %1531 = vmatmul.mubr.bf16.gmra.mxu0 %v861
  %v1532 = vpop.f32.mrf.mxu0
  %v1533 = vadd.f32 %v287, %v1532
  %v1534 = vpop.f32.mrf.mxu0
  %v1535 = vpop.f32.mrf.mxu0
  %v1536 = vadd.f32 %v287, %v1535
  %v1537 = vpop.f32.mrf.mxu0
  %1538 = vmatprep.mubr.bf16.mxu0 %v867
  %1539 = vmatmul.mubr.bf16.gmra.mxu0 %v866
  %v1540 = vpop.f32.mrf.mxu0
  %v1541 = vadd.f32 %v287, %v1540
  %v1542 = vpop.f32.mrf.mxu0
  %v1543 = vpop.f32.mrf.mxu0
  %v1544 = vadd.f32 %v287, %v1543
  %v1545 = vpop.f32.mrf.mxu0
  %1546 = vmatprep.mubr.bf16.mxu0 %v872
  %1547 = vmatmul.mubr.bf16.gmra.mxu0 %v871
  %v1548 = vpop.f32.mrf.mxu0
  %v1549 = vadd.f32 %v287, %v1548
  %v1550 = vpop.f32.mrf.mxu0
  %v1551 = vpop.f32.mrf.mxu0
  %v1552 = vadd.f32 %v287, %v1551
  %v1553 = vpop.f32.mrf.mxu0
  %1554 = vmatprep.mubr.bf16.mxu0 %v877
  %1555 = vmatmul.mubr.bf16.gmra.mxu0 %v876
  %v1556 = vpop.f32.mrf.mxu0
  %v1557 = vadd.f32 %v287, %v1556
  %v1558 = vpop.f32.mrf.mxu0
  %v1559 = vpop.f32.mrf.mxu0
  %v1560 = vadd.f32 %v287, %v1559
  %v1561 = vpop.f32.mrf.mxu0
  %1562 = vmatprep.mubr.bf16.mxu0 %v882
  %1563 = vmatmul.mubr.bf16.gmra.mxu0 %v881
  %v1564 = vpop.f32.mrf.mxu0
  %v1565 = vadd.f32 %v287, %v1564
  %v1566 = vpop.f32.mrf.mxu0
  %v1567 = vpop.f32.mrf.mxu0
  %v1568 = vadd.f32 %v287, %v1567
  %v1569 = vpop.f32.mrf.mxu0
  %1570 = vmatprep.mubr.bf16.mxu0 %v887
  %1571 = vmatmul.mubr.bf16.gmra.mxu0 %v886
  %v1572 = vpop.f32.mrf.mxu0
  %v1573 = vadd.f32 %v287, %v1572
  %v1574 = vpop.f32.mrf.mxu0
  %v1575 = vpop.f32.mrf.mxu0
  %v1576 = vadd.f32 %v287, %v1575
  %v1577 = vpop.f32.mrf.mxu0
  %1578 = vmatprep.mubr.bf16.mxu0 %v892
  %1579 = vmatmul.mubr.bf16.gmra.mxu0 %v891
  %v1580 = vpop.f32.mrf.mxu0
  %v1581 = vadd.f32 %v287, %v1580
  %v1582 = vpop.f32.mrf.mxu0
  %v1583 = vpop.f32.mrf.mxu0
  %v1584 = vadd.f32 %v287, %v1583
  %v1585 = vpop.f32.mrf.mxu0
  %1586 = vmatprep.mubr.bf16.mxu0 %v897
  %1587 = vmatmul.mubr.bf16.gmra.mxu0 %v896
  %v1588 = vpop.f32.mrf.mxu0
  %v1589 = vadd.f32 %v287, %v1588
  %v1590 = vpop.f32.mrf.mxu0
  %v1591 = vpop.f32.mrf.mxu0
  %v1592 = vadd.f32 %v287, %v1591
  %v1593 = vpop.f32.mrf.mxu0
  %1594 = vmatprep.mubr.bf16.mxu0 %v902
  %1595 = vmatmul.mubr.bf16.gmra.mxu0 %v901
  %v1596 = vpop.f32.mrf.mxu0
  %v1597 = vadd.f32 %v287, %v1596
  %v1598 = vpop.f32.mrf.mxu0
  %v1599 = vpop.f32.mrf.mxu0
  %v1600 = vadd.f32 %v287, %v1599
  %v1601 = vpop.f32.mrf.mxu0
  %1602 = vmatprep.mubr.bf16.mxu0 %v907
  %1603 = vmatmul.mubr.bf16.gmra.mxu0 %v906
  %v1604 = vpop.f32.mrf.mxu0
  %v1605 = vadd.f32 %v287, %v1604
  %v1606 = vpop.f32.mrf.mxu0
  %v1607 = vpop.f32.mrf.mxu0
  %v1608 = vadd.f32 %v287, %v1607
  %v1609 = vpop.f32.mrf.mxu0
  %1610 = vmatprep.mubr.bf16.mxu0 %v912
  %1611 = vmatmul.mubr.bf16.gmra.mxu0 %v911
  %v1612 = vpop.f32.mrf.mxu0
  %v1613 = vadd.f32 %v287, %v1612
  %v1614 = vpop.f32.mrf.mxu0
  %v1615 = vpop.f32.mrf.mxu0
  %v1616 = vadd.f32 %v287, %v1615
  %v1617 = vpop.f32.mrf.mxu0
  %1618 = vmatprep.mubr.bf16.mxu0 %v917
  %1619 = vmatmul.mubr.bf16.gmra.mxu0 %v916
  %v1620 = vpop.f32.mrf.mxu0
  %v1621 = vadd.f32 %v287, %v1620
  %v1622 = vpop.f32.mrf.mxu0
  %v1623 = vpop.f32.mrf.mxu0
  %v1624 = vadd.f32 %v287, %v1623
  %v1625 = vpop.f32.mrf.mxu0
  %1626 = vmatprep.mubr.bf16.mxu0 %v922
  %1627 = vmatmul.mubr.bf16.gmra.mxu0 %v921
  %v1628 = vpop.f32.mrf.mxu0
  %v1629 = vadd.f32 %v287, %v1628
  %v1630 = vpop.f32.mrf.mxu0
  %v1631 = vpop.f32.mrf.mxu0
  %v1632 = vadd.f32 %v287, %v1631
  %v1633 = vpop.f32.mrf.mxu0
  %1634 = vmatprep.mubr.bf16.mxu0 %v927
  %1635 = vmatmul.mubr.bf16.gmra.mxu0 %v926
  %v1636 = vpop.f32.mrf.mxu0
  %v1637 = vadd.f32 %v287, %v1636
  %v1638 = vpop.f32.mrf.mxu0
  %v1639 = vpop.f32.mrf.mxu0
  %v1640 = vadd.f32 %v287, %v1639
  %v1641 = vpop.f32.mrf.mxu0
  %1642 = vmatprep.mubr.bf16.mxu0 %v932
  %1643 = vmatmul.mubr.bf16.gmra.mxu0 %v931
  %v1644 = vpop.f32.mrf.mxu0
  %v1645 = vadd.f32 %v287, %v1644
  %v1646 = vpop.f32.mrf.mxu0
  %v1647 = vpop.f32.mrf.mxu0
  %v1648 = vadd.f32 %v287, %v1647
  %v1649 = vpop.f32.mrf.mxu0
  %1650 = vmatprep.mubr.bf16.mxu0 %v937
  %1651 = vmatmul.mubr.bf16.gmra.mxu0 %v936
  %v1652 = vpop.f32.mrf.mxu0
  %v1653 = vadd.f32 %v287, %v1652
  %v1654 = vpop.f32.mrf.mxu0
  %v1655 = vpop.f32.mrf.mxu0
  %v1656 = vadd.f32 %v287, %v1655
  %v1657 = vpop.f32.mrf.mxu0
  %1658 = vmatprep.mubr.bf16.mxu0 %v942
  %1659 = vmatmul.mubr.bf16.gmra.mxu0 %v941
  %v1660 = vpop.f32.mrf.mxu0
  %v1661 = vadd.f32 %v287, %v1660
  %v1662 = vpop.f32.mrf.mxu0
  %v1663 = vpop.f32.mrf.mxu0
  %v1664 = vadd.f32 %v287, %v1663
  %v1665 = vpop.f32.mrf.mxu0
  %1666 = vmatprep.mubr.bf16.mxu0 %v947
  %1667 = vmatmul.mubr.bf16.gmra.mxu0 %v946
  %v1668 = vpop.f32.mrf.mxu0
  %v1669 = vadd.f32 %v287, %v1668
  %v1670 = vpop.f32.mrf.mxu0
  %v1671 = vpop.f32.mrf.mxu0
  %v1672 = vadd.f32 %v287, %v1671
  %v1673 = vpop.f32.mrf.mxu0
  %1674 = vmatprep.mubr.bf16.mxu0 %v952
  %1675 = vmatmul.mubr.bf16.gmra.mxu0 %v951
  %v1676 = vpop.f32.mrf.mxu0
  %v1677 = vadd.f32 %v287, %v1676
  %v1678 = vpop.f32.mrf.mxu0
  %v1679 = vpop.f32.mrf.mxu0
  %v1680 = vadd.f32 %v287, %v1679
  %v1681 = vpop.f32.mrf.mxu0
  %1682 = vmatprep.mubr.bf16.mxu0 %v957
  %1683 = vmatmul.mubr.bf16.gmra.mxu0 %v956
  %v1684 = vpop.f32.mrf.mxu0
  %v1685 = vadd.f32 %v287, %v1684
  %v1686 = vpop.f32.mrf.mxu0
  %v1687 = vpop.f32.mrf.mxu0
  %v1688 = vadd.f32 %v287, %v1687
  %v1689 = vpop.f32.mrf.mxu0
  %1690 = vdwg.mxu0
  %1691 = vmatprep.subr.bf16.mxu0 0
  %1692 = vmatpush1.bf16.msra.mxu0 %v1256
  %1693 = vmatprep.subr.bf16.mxu0 0
  %1694 = vmatpush1.bf16.msra.mxu0 %v1255
  %1695 = vmatprep.subr.bf16.mxu0 0
  %1696 = vmatpush1.bf16.msra.mxu0 %v1254
  %1697 = vmatprep.subr.bf16.mxu0 0
  %1698 = vmatpush1.bf16.msra.mxu0 %v1253
  %1699 = vmatprep.subr.bf16.mxu0 0
  %1700 = vmatpush1.bf16.msra.mxu0 %v1252
  %1701 = vmatprep.subr.bf16.mxu0 0
  %1702 = vmatpush1.bf16.msra.mxu0 %v1251
  %1703 = vmatprep.subr.bf16.mxu0 0
  %1704 = vmatpush1.bf16.msra.mxu0 %v1250
  %1705 = vmatprep.subr.bf16.mxu0 0
  %1706 = vmatpush1.bf16.msra.mxu0 %v1249
  %1707 = vmatprep.subr.bf16.mxu0 0
  %1708 = vmatpush2.bf16.msra.mxu0 %v1264
  %1709 = vmatprep.subr.bf16.mxu0 0
  %1710 = vmatpush2.bf16.msra.mxu0 %v1263
  %1711 = vmatprep.subr.bf16.mxu0 0
  %1712 = vmatpush2.bf16.msra.mxu0 %v1262
  %1713 = vmatprep.subr.bf16.mxu0 0
  %1714 = vmatpush2.bf16.msra.mxu0 %v1261
  %1715 = vmatprep.subr.bf16.mxu0 0
  %1716 = vmatpush2.bf16.msra.mxu0 %v1260
  %1717 = vmatprep.subr.bf16.mxu0 0
  %1718 = vmatpush2.bf16.msra.mxu0 %v1259
  %1719 = vmatprep.subr.bf16.mxu0 0
  %1720 = vmatpush2.bf16.msra.mxu0 %v1258
  %1721 = vmatprep.subr.bf16.mxu0 0
  %1722 = vmatpush2.bf16.msra.mxu0 %v1257
  %1723 = vmatprep.mubr.bf16.mxu0 %v804
  %1724 = vmatmul.mubr.bf16.gmra.mxu0 %v803
  %v1725 = vpop.f32.mrf.mxu0
  %v1726 = vadd.f32 %v1437, %v1725
  %v1727 = vpop.f32.mrf.mxu0
  %v1728 = vpop.f32.mrf.mxu0
  %v1729 = vadd.f32 %v1440, %v1728
  %v1730 = vpop.f32.mrf.mxu0
  %1731 = vmatprep.mubr.bf16.mxu0 %v809
  %1732 = vmatmul.mubr.bf16.gmra.mxu0 %v808
  %v1733 = vpop.f32.mrf.mxu0
  %v1734 = vadd.f32 %v1445, %v1733
  %v1735 = vpop.f32.mrf.mxu0
  %v1736 = vpop.f32.mrf.mxu0
  %v1737 = vadd.f32 %v1448, %v1736
  %v1738 = vpop.f32.mrf.mxu0
  %1739 = vmatprep.mubr.bf16.mxu0 %v814
  %1740 = vmatmul.mubr.bf16.gmra.mxu0 %v813
  %v1741 = vpop.f32.mrf.mxu0
  %v1742 = vadd.f32 %v1453, %v1741
  %v1743 = vpop.f32.mrf.mxu0
  %v1744 = vpop.f32.mrf.mxu0
  %v1745 = vadd.f32 %v1456, %v1744
  %v1746 = vpop.f32.mrf.mxu0
  %1747 = vmatprep.mubr.bf16.mxu0 %v819
  %1748 = vmatmul.mubr.bf16.gmra.mxu0 %v818
  %v1749 = vpop.f32.mrf.mxu0
  %v1750 = vadd.f32 %v1461, %v1749
  %v1751 = vpop.f32.mrf.mxu0
  %v1752 = vpop.f32.mrf.mxu0
  %v1753 = vadd.f32 %v1464, %v1752
  %v1754 = vpop.f32.mrf.mxu0
  %1755 = vmatprep.mubr.bf16.mxu0 %v824
  %1756 = vmatmul.mubr.bf16.gmra.mxu0 %v823
  %v1757 = vpop.f32.mrf.mxu0
  %v1758 = vadd.f32 %v1469, %v1757
  %v1759 = vpop.f32.mrf.mxu0
  %v1760 = vpop.f32.mrf.mxu0
  %v1761 = vadd.f32 %v1472, %v1760
  %v1762 = vpop.f32.mrf.mxu0
  %1763 = vmatprep.mubr.bf16.mxu0 %v829
  %1764 = vmatmul.mubr.bf16.gmra.mxu0 %v828
  %v1765 = vpop.f32.mrf.mxu0
  %v1766 = vadd.f32 %v1477, %v1765
  %v1767 = vpop.f32.mrf.mxu0
  %v1768 = vpop.f32.mrf.mxu0
  %v1769 = vadd.f32 %v1480, %v1768
  %v1770 = vpop.f32.mrf.mxu0
  %1771 = vmatprep.mubr.bf16.mxu0 %v834
  %1772 = vmatmul.mubr.bf16.gmra.mxu0 %v833
  %v1773 = vpop.f32.mrf.mxu0
  %v1774 = vadd.f32 %v1485, %v1773
  %v1775 = vpop.f32.mrf.mxu0
  %v1776 = vpop.f32.mrf.mxu0
  %v1777 = vadd.f32 %v1488, %v1776
  %v1778 = vpop.f32.mrf.mxu0
  %1779 = vmatprep.mubr.bf16.mxu0 %v839
  %1780 = vmatmul.mubr.bf16.gmra.mxu0 %v838
  %v1781 = vpop.f32.mrf.mxu0
  %v1782 = vadd.f32 %v1493, %v1781
  %v1783 = vpop.f32.mrf.mxu0
  %v1784 = vpop.f32.mrf.mxu0
  %v1785 = vadd.f32 %v1496, %v1784
  %v1786 = vpop.f32.mrf.mxu0
  %1787 = vmatprep.mubr.bf16.mxu0 %v844
  %1788 = vmatmul.mubr.bf16.gmra.mxu0 %v843
  %v1789 = vpop.f32.mrf.mxu0
  %v1790 = vadd.f32 %v1501, %v1789
  %v1791 = vpop.f32.mrf.mxu0
  %v1792 = vpop.f32.mrf.mxu0
  %v1793 = vadd.f32 %v1504, %v1792
  %v1794 = vpop.f32.mrf.mxu0
  %1795 = vmatprep.mubr.bf16.mxu0 %v849
  %1796 = vmatmul.mubr.bf16.gmra.mxu0 %v848
  %v1797 = vpop.f32.mrf.mxu0
  %v1798 = vadd.f32 %v1509, %v1797
  %v1799 = vpop.f32.mrf.mxu0
  %v1800 = vpop.f32.mrf.mxu0
  %v1801 = vadd.f32 %v1512, %v1800
  %v1802 = vpop.f32.mrf.mxu0
  %1803 = vmatprep.mubr.bf16.mxu0 %v854
  %1804 = vmatmul.mubr.bf16.gmra.mxu0 %v853
  %v1805 = vpop.f32.mrf.mxu0
  %v1806 = vadd.f32 %v1517, %v1805
  %v1807 = vpop.f32.mrf.mxu0
  %v1808 = vpop.f32.mrf.mxu0
  %v1809 = vadd.f32 %v1520, %v1808
  %v1810 = vpop.f32.mrf.mxu0
  %1811 = vmatprep.mubr.bf16.mxu0 %v859
  %1812 = vmatmul.mubr.bf16.gmra.mxu0 %v858
  %v1813 = vpop.f32.mrf.mxu0
  %v1814 = vadd.f32 %v1525, %v1813
  %v1815 = vpop.f32.mrf.mxu0
  %v1816 = vpop.f32.mrf.mxu0
  %v1817 = vadd.f32 %v1528, %v1816
  %v1818 = vpop.f32.mrf.mxu0
  %1819 = vmatprep.mubr.bf16.mxu0 %v864
  %1820 = vmatmul.mubr.bf16.gmra.mxu0 %v863
  %v1821 = vpop.f32.mrf.mxu0
  %v1822 = vadd.f32 %v1533, %v1821
  %v1823 = vpop.f32.mrf.mxu0
  %v1824 = vpop.f32.mrf.mxu0
  %v1825 = vadd.f32 %v1536, %v1824
  %v1826 = vpop.f32.mrf.mxu0
  %1827 = vmatprep.mubr.bf16.mxu0 %v869
  %1828 = vmatmul.mubr.bf16.gmra.mxu0 %v868
  %v1829 = vpop.f32.mrf.mxu0
  %v1830 = vadd.f32 %v1541, %v1829
  %v1831 = vpop.f32.mrf.mxu0
  %v1832 = vpop.f32.mrf.mxu0
  %v1833 = vadd.f32 %v1544, %v1832
  %v1834 = vpop.f32.mrf.mxu0
  %1835 = vmatprep.mubr.bf16.mxu0 %v874
  %1836 = vmatmul.mubr.bf16.gmra.mxu0 %v873
  %v1837 = vpop.f32.mrf.mxu0
  %v1838 = vadd.f32 %v1549, %v1837
  %v1839 = vpop.f32.mrf.mxu0
  %v1840 = vpop.f32.mrf.mxu0
  %v1841 = vadd.f32 %v1552, %v1840
  %v1842 = vpop.f32.mrf.mxu0
  %1843 = vmatprep.mubr.bf16.mxu0 %v879
  %1844 = vmatmul.mubr.bf16.gmra.mxu0 %v878
  %v1845 = vpop.f32.mrf.mxu0
  %v1846 = vadd.f32 %v1557, %v1845
  %v1847 = vpop.f32.mrf.mxu0
  %v1848 = vpop.f32.mrf.mxu0
  %v1849 = vadd.f32 %v1560, %v1848
  %v1850 = vpop.f32.mrf.mxu0
  %1851 = vmatprep.mubr.bf16.mxu0 %v884
  %1852 = vmatmul.mubr.bf16.gmra.mxu0 %v883
  %v1853 = vpop.f32.mrf.mxu0
  %v1854 = vadd.f32 %v1565, %v1853
  %v1855 = vpop.f32.mrf.mxu0
  %v1856 = vpop.f32.mrf.mxu0
  %v1857 = vadd.f32 %v1568, %v1856
  %v1858 = vpop.f32.mrf.mxu0
  %1859 = vmatprep.mubr.bf16.mxu0 %v889
  %1860 = vmatmul.mubr.bf16.gmra.mxu0 %v888
  %v1861 = vpop.f32.mrf.mxu0
  %v1862 = vadd.f32 %v1573, %v1861
  %v1863 = vpop.f32.mrf.mxu0
  %v1864 = vpop.f32.mrf.mxu0
  %v1865 = vadd.f32 %v1576, %v1864
  %v1866 = vpop.f32.mrf.mxu0
  %1867 = vmatprep.mubr.bf16.mxu0 %v894
  %1868 = vmatmul.mubr.bf16.gmra.mxu0 %v893
  %v1869 = vpop.f32.mrf.mxu0
  %v1870 = vadd.f32 %v1581, %v1869
  %v1871 = vpop.f32.mrf.mxu0
  %v1872 = vpop.f32.mrf.mxu0
  %v1873 = vadd.f32 %v1584, %v1872
  %v1874 = vpop.f32.mrf.mxu0
  %1875 = vmatprep.mubr.bf16.mxu0 %v899
  %1876 = vmatmul.mubr.bf16.gmra.mxu0 %v898
  %v1877 = vpop.f32.mrf.mxu0
  %v1878 = vadd.f32 %v1589, %v1877
  %v1879 = vpop.f32.mrf.mxu0
  %v1880 = vpop.f32.mrf.mxu0
  %v1881 = vadd.f32 %v1592, %v1880
  %v1882 = vpop.f32.mrf.mxu0
  %1883 = vmatprep.mubr.bf16.mxu0 %v904
  %1884 = vmatmul.mubr.bf16.gmra.mxu0 %v903
  %v1885 = vpop.f32.mrf.mxu0
  %v1886 = vadd.f32 %v1597, %v1885
  %v1887 = vpop.f32.mrf.mxu0
  %v1888 = vpop.f32.mrf.mxu0
  %v1889 = vadd.f32 %v1600, %v1888
  %v1890 = vpop.f32.mrf.mxu0
  %1891 = vmatprep.mubr.bf16.mxu0 %v909
  %1892 = vmatmul.mubr.bf16.gmra.mxu0 %v908
  %v1893 = vpop.f32.mrf.mxu0
  %v1894 = vadd.f32 %v1605, %v1893
  %v1895 = vpop.f32.mrf.mxu0
  %v1896 = vpop.f32.mrf.mxu0
  %v1897 = vadd.f32 %v1608, %v1896
  %v1898 = vpop.f32.mrf.mxu0
  %1899 = vmatprep.mubr.bf16.mxu0 %v914
  %1900 = vmatmul.mubr.bf16.gmra.mxu0 %v913
  %v1901 = vpop.f32.mrf.mxu0
  %v1902 = vadd.f32 %v1613, %v1901
  %v1903 = vpop.f32.mrf.mxu0
  %v1904 = vpop.f32.mrf.mxu0
  %v1905 = vadd.f32 %v1616, %v1904
  %v1906 = vpop.f32.mrf.mxu0
  %1907 = vmatprep.mubr.bf16.mxu0 %v919
  %1908 = vmatmul.mubr.bf16.gmra.mxu0 %v918
  %v1909 = vpop.f32.mrf.mxu0
  %v1910 = vadd.f32 %v1621, %v1909
  %v1911 = vpop.f32.mrf.mxu0
  %v1912 = vpop.f32.mrf.mxu0
  %v1913 = vadd.f32 %v1624, %v1912
  %v1914 = vpop.f32.mrf.mxu0
  %1915 = vmatprep.mubr.bf16.mxu0 %v924
  %1916 = vmatmul.mubr.bf16.gmra.mxu0 %v923
  %v1917 = vpop.f32.mrf.mxu0
  %v1918 = vadd.f32 %v1629, %v1917
  %v1919 = vpop.f32.mrf.mxu0
  %v1920 = vpop.f32.mrf.mxu0
  %v1921 = vadd.f32 %v1632, %v1920
  %v1922 = vpop.f32.mrf.mxu0
  %1923 = vmatprep.mubr.bf16.mxu0 %v929
  %1924 = vmatmul.mubr.bf16.gmra.mxu0 %v928
  %v1925 = vpop.f32.mrf.mxu0
  %v1926 = vadd.f32 %v1637, %v1925
  %v1927 = vpop.f32.mrf.mxu0
  %v1928 = vpop.f32.mrf.mxu0
  %v1929 = vadd.f32 %v1640, %v1928
  %v1930 = vpop.f32.mrf.mxu0
  %1931 = vmatprep.mubr.bf16.mxu0 %v934
  %1932 = vmatmul.mubr.bf16.gmra.mxu0 %v933
  %v1933 = vpop.f32.mrf.mxu0
  %v1934 = vadd.f32 %v1645, %v1933
  %v1935 = vpop.f32.mrf.mxu0
  %v1936 = vpop.f32.mrf.mxu0
  %v1937 = vadd.f32 %v1648, %v1936
  %v1938 = vpop.f32.mrf.mxu0
  %1939 = vmatprep.mubr.bf16.mxu0 %v939
  %1940 = vmatmul.mubr.bf16.gmra.mxu0 %v938
  %v1941 = vpop.f32.mrf.mxu0
  %v1942 = vadd.f32 %v1653, %v1941
  %v1943 = vpop.f32.mrf.mxu0
  %v1944 = vpop.f32.mrf.mxu0
  %v1945 = vadd.f32 %v1656, %v1944
  %v1946 = vpop.f32.mrf.mxu0
  %1947 = vmatprep.mubr.bf16.mxu0 %v944
  %1948 = vmatmul.mubr.bf16.gmra.mxu0 %v943
  %v1949 = vpop.f32.mrf.mxu0
  %v1950 = vadd.f32 %v1661, %v1949
  %v1951 = vpop.f32.mrf.mxu0
  %v1952 = vpop.f32.mrf.mxu0
  %v1953 = vadd.f32 %v1664, %v1952
  %v1954 = vpop.f32.mrf.mxu0
  %1955 = vmatprep.mubr.bf16.mxu0 %v949
  %1956 = vmatmul.mubr.bf16.gmra.mxu0 %v948
  %v1957 = vpop.f32.mrf.mxu0
  %v1958 = vadd.f32 %v1669, %v1957
  %v1959 = vpop.f32.mrf.mxu0
  %v1960 = vpop.f32.mrf.mxu0
  %v1961 = vadd.f32 %v1672, %v1960
  %v1962 = vpop.f32.mrf.mxu0
  %1963 = vmatprep.mubr.bf16.mxu0 %v954
  %1964 = vmatmul.mubr.bf16.gmra.mxu0 %v953
  %v1965 = vpop.f32.mrf.mxu0
  %v1966 = vadd.f32 %v1677, %v1965
  %v1967 = vpop.f32.mrf.mxu0
  %v1968 = vpop.f32.mrf.mxu0
  %v1969 = vadd.f32 %v1680, %v1968
  %v1970 = vpop.f32.mrf.mxu0
  %1971 = vmatprep.mubr.bf16.mxu0 %v959
  %1972 = vmatmul.mubr.bf16.gmra.mxu0 %v958
  %v1973 = vpop.f32.mrf.mxu0
  %v1974 = vadd.f32 %v1685, %v1973
  %v1975 = vpop.f32.mrf.mxu0
  %v1976 = vpop.f32.mrf.mxu0
  %v1977 = vadd.f32 %v1688, %v1976
  %v1978 = vpop.f32.mrf.mxu0
  %1979 = vdwg.mxu0
  %1980 = vmatprep.subr.bf16.mxu0 0
  %1981 = vmatpush1.bf16.msra.mxu0 0
  %1982 = vmatprep.subr.bf16.mxu0 0
  %1983 = vmatpush1.bf16.msra.mxu0 0
  %1984 = vmatprep.subr.bf16.mxu0 0
  %1985 = vmatpush1.bf16.msra.mxu0 0
  %1986 = vmatprep.subr.bf16.mxu0 0
  %1987 = vmatpush1.bf16.msra.mxu0 0
  %1988 = vmatprep.subr.bf16.mxu0 0
  %1989 = vmatpush1.bf16.msra.mxu0 %v1268
  %1990 = vmatprep.subr.bf16.mxu0 0
  %1991 = vmatpush1.bf16.msra.mxu0 %v1267
  %1992 = vmatprep.subr.bf16.mxu0 0
  %1993 = vmatpush1.bf16.msra.mxu0 %v1266
  %1994 = vmatprep.subr.bf16.mxu0 0
  %1995 = vmatpush1.bf16.msra.mxu0 %v1265
  %1996 = vmatprep.subr.bf16.mxu0 0
  %1997 = vmatpush2.bf16.msra.mxu0 0
  %1998 = vmatprep.subr.bf16.mxu0 0
  %1999 = vmatpush2.bf16.msra.mxu0 0
  %2000 = vmatprep.subr.bf16.mxu0 0
  %2001 = vmatpush2.bf16.msra.mxu0 0
  %2002 = vmatprep.subr.bf16.mxu0 0
  %2003 = vmatpush2.bf16.msra.mxu0 0
  %2004 = vmatprep.subr.bf16.mxu0 0
  %2005 = vmatpush2.bf16.msra.mxu0 0
  %2006 = vmatprep.subr.bf16.mxu0 0
  %2007 = vmatpush2.bf16.msra.mxu0 0
  %2008 = vmatprep.subr.bf16.mxu0 0
  %2009 = vmatpush2.bf16.msra.mxu0 0
  %2010 = vmatprep.subr.bf16.mxu0 0
  %2011 = vmatpush2.bf16.msra.mxu0 0
  %2012 = vmatprep.mubr.bf16.mxu0 0
  %2013 = vmatmul.mubr.bf16.gmra.mxu0 %v1307
  %v2014 = vpop.f32.mrf.mxu0
  %v2015 = vadd.f32 %v1726, %v2014
  %v2016 = vpop.f32.mrf.mxu0
  %v2017 = vpop.f32.mrf.mxu0
  %v2018 = vadd.f32 %v1729, %v2017
  %v2019 = vpop.f32.mrf.mxu0
  %2020 = vmatprep.mubr.bf16.mxu0 0
  %2021 = vmatmul.mubr.bf16.gmra.mxu0 %v1310
  %v2022 = vpop.f32.mrf.mxu0
  %v2023 = vadd.f32 %v1734, %v2022
  %v2024 = vpop.f32.mrf.mxu0
  %v2025 = vpop.f32.mrf.mxu0
  %v2026 = vadd.f32 %v1737, %v2025
  %v2027 = vpop.f32.mrf.mxu0
  %2028 = vmatprep.mubr.bf16.mxu0 0
  %2029 = vmatmul.mubr.bf16.gmra.mxu0 %v1313
  %v2030 = vpop.f32.mrf.mxu0
  %v2031 = vadd.f32 %v1742, %v2030
  %v2032 = vpop.f32.mrf.mxu0
  %v2033 = vpop.f32.mrf.mxu0
  %v2034 = vadd.f32 %v1745, %v2033
  %v2035 = vpop.f32.mrf.mxu0
  %2036 = vmatprep.mubr.bf16.mxu0 0
  %2037 = vmatmul.mubr.bf16.gmra.mxu0 %v1316
  %v2038 = vpop.f32.mrf.mxu0
  %v2039 = vadd.f32 %v1750, %v2038
  %v2040 = vpop.f32.mrf.mxu0
  %v2041 = vpop.f32.mrf.mxu0
  %v2042 = vadd.f32 %v1753, %v2041
  %v2043 = vpop.f32.mrf.mxu0
  %2044 = vmatprep.mubr.bf16.mxu0 0
  %2045 = vmatmul.mubr.bf16.gmra.mxu0 %v1319
  %v2046 = vpop.f32.mrf.mxu0
  %v2047 = vadd.f32 %v1758, %v2046
  %v2048 = vpop.f32.mrf.mxu0
  %v2049 = vpop.f32.mrf.mxu0
  %v2050 = vadd.f32 %v1761, %v2049
  %v2051 = vpop.f32.mrf.mxu0
  %2052 = vmatprep.mubr.bf16.mxu0 0
  %2053 = vmatmul.mubr.bf16.gmra.mxu0 %v1322
  %v2054 = vpop.f32.mrf.mxu0
  %v2055 = vadd.f32 %v1766, %v2054
  %v2056 = vpop.f32.mrf.mxu0
  %v2057 = vpop.f32.mrf.mxu0
  %v2058 = vadd.f32 %v1769, %v2057
  %v2059 = vpop.f32.mrf.mxu0
  %2060 = vmatprep.mubr.bf16.mxu0 0
  %2061 = vmatmul.mubr.bf16.gmra.mxu0 %v1325
  %v2062 = vpop.f32.mrf.mxu0
  %v2063 = vadd.f32 %v1774, %v2062
  %v2064 = vpop.f32.mrf.mxu0
  %v2065 = vpop.f32.mrf.mxu0
  %v2066 = vadd.f32 %v1777, %v2065
  %v2067 = vpop.f32.mrf.mxu0
  %2068 = vmatprep.mubr.bf16.mxu0 0
  %2069 = vmatmul.mubr.bf16.gmra.mxu0 %v1328
  %v2070 = vpop.f32.mrf.mxu0
  %v2071 = vadd.f32 %v1782, %v2070
  %v2072 = vpop.f32.mrf.mxu0
  %v2073 = vpop.f32.mrf.mxu0
  %v2074 = vadd.f32 %v1785, %v2073
  %v2075 = vpop.f32.mrf.mxu0
  %2076 = vmatprep.mubr.bf16.mxu0 0
  %2077 = vmatmul.mubr.bf16.gmra.mxu0 %v1331
  %v2078 = vpop.f32.mrf.mxu0
  %v2079 = vadd.f32 %v1790, %v2078
  %v2080 = vpop.f32.mrf.mxu0
  %v2081 = vpop.f32.mrf.mxu0
  %v2082 = vadd.f32 %v1793, %v2081
  %v2083 = vpop.f32.mrf.mxu0
  %2084 = vmatprep.mubr.bf16.mxu0 0
  %2085 = vmatmul.mubr.bf16.gmra.mxu0 %v1334
  %v2086 = vpop.f32.mrf.mxu0
  %v2087 = vadd.f32 %v1798, %v2086
  %v2088 = vpop.f32.mrf.mxu0
  %v2089 = vpop.f32.mrf.mxu0
  %v2090 = vadd.f32 %v1801, %v2089
  %v2091 = vpop.f32.mrf.mxu0
  %2092 = vmatprep.mubr.bf16.mxu0 0
  %2093 = vmatmul.mubr.bf16.gmra.mxu0 %v1337
  %v2094 = vpop.f32.mrf.mxu0
  %v2095 = vadd.f32 %v1806, %v2094
  %v2096 = vpop.f32.mrf.mxu0
  %v2097 = vpop.f32.mrf.mxu0
  %v2098 = vadd.f32 %v1809, %v2097
  %v2099 = vpop.f32.mrf.mxu0
  %2100 = vmatprep.mubr.bf16.mxu0 0
  %2101 = vmatmul.mubr.bf16.gmra.mxu0 %v1340
  %v2102 = vpop.f32.mrf.mxu0
  %v2103 = vadd.f32 %v1814, %v2102
  %v2104 = vpop.f32.mrf.mxu0
  %v2105 = vpop.f32.mrf.mxu0
  %v2106 = vadd.f32 %v1817, %v2105
  %v2107 = vpop.f32.mrf.mxu0
  %2108 = vmatprep.mubr.bf16.mxu0 0
  %2109 = vmatmul.mubr.bf16.gmra.mxu0 %v1343
  %v2110 = vpop.f32.mrf.mxu0
  %v2111 = vadd.f32 %v1822, %v2110
  %v2112 = vpop.f32.mrf.mxu0
  %v2113 = vpop.f32.mrf.mxu0
  %v2114 = vadd.f32 %v1825, %v2113
  %v2115 = vpop.f32.mrf.mxu0
  %2116 = vmatprep.mubr.bf16.mxu0 0
  %2117 = vmatmul.mubr.bf16.gmra.mxu0 %v1346
  %v2118 = vpop.f32.mrf.mxu0
  %v2119 = vadd.f32 %v1830, %v2118
  %v2120 = vpop.f32.mrf.mxu0
  %v2121 = vpop.f32.mrf.mxu0
  %v2122 = vadd.f32 %v1833, %v2121
  %v2123 = vpop.f32.mrf.mxu0
  %2124 = vmatprep.mubr.bf16.mxu0 0
  %2125 = vmatmul.mubr.bf16.gmra.mxu0 %v1349
  %v2126 = vpop.f32.mrf.mxu0
  %v2127 = vadd.f32 %v1838, %v2126
  %v2128 = vpop.f32.mrf.mxu0
  %v2129 = vpop.f32.mrf.mxu0
  %v2130 = vadd.f32 %v1841, %v2129
  %v2131 = vpop.f32.mrf.mxu0
  %2132 = vmatprep.mubr.bf16.mxu0 0
  %2133 = vmatmul.mubr.bf16.gmra.mxu0 %v1352
  %v2134 = vpop.f32.mrf.mxu0
  %v2135 = vadd.f32 %v1846, %v2134
  %v2136 = vpop.f32.mrf.mxu0
  %v2137 = vpop.f32.mrf.mxu0
  %v2138 = vadd.f32 %v1849, %v2137
  %v2139 = vpop.f32.mrf.mxu0
  %2140 = vmatprep.mubr.bf16.mxu0 0
  %2141 = vmatmul.mubr.bf16.gmra.mxu0 %v1355
  %v2142 = vpop.f32.mrf.mxu0
  %v2143 = vadd.f32 %v1854, %v2142
  %v2144 = vpop.f32.mrf.mxu0
  %v2145 = vpop.f32.mrf.mxu0
  %v2146 = vadd.f32 %v1857, %v2145
  %v2147 = vpop.f32.mrf.mxu0
  %2148 = vmatprep.mubr.bf16.mxu0 0
  %2149 = vmatmul.mubr.bf16.gmra.mxu0 %v1358
  %v2150 = vpop.f32.mrf.mxu0
  %v2151 = vadd.f32 %v1862, %v2150
  %v2152 = vpop.f32.mrf.mxu0
  %v2153 = vpop.f32.mrf.mxu0
  %v2154 = vadd.f32 %v1865, %v2153
  %v2155 = vpop.f32.mrf.mxu0
  %2156 = vmatprep.mubr.bf16.mxu0 0
  %2157 = vmatmul.mubr.bf16.gmra.mxu0 %v1361
  %v2158 = vpop.f32.mrf.mxu0
  %v2159 = vadd.f32 %v1870, %v2158
  %v2160 = vpop.f32.mrf.mxu0
  %v2161 = vpop.f32.mrf.mxu0
  %v2162 = vadd.f32 %v1873, %v2161
  %v2163 = vpop.f32.mrf.mxu0
  %2164 = vmatprep.mubr.bf16.mxu0 0
  %2165 = vmatmul.mubr.bf16.gmra.mxu0 %v1364
  %v2166 = vpop.f32.mrf.mxu0
  %v2167 = vadd.f32 %v1878, %v2166
  %v2168 = vpop.f32.mrf.mxu0
  %v2169 = vpop.f32.mrf.mxu0
  %v2170 = vadd.f32 %v1881, %v2169
  %v2171 = vpop.f32.mrf.mxu0
  %2172 = vmatprep.mubr.bf16.mxu0 0
  %2173 = vmatmul.mubr.bf16.gmra.mxu0 %v1367
  %v2174 = vpop.f32.mrf.mxu0
  %v2175 = vadd.f32 %v1886, %v2174
  %v2176 = vpop.f32.mrf.mxu0
  %v2177 = vpop.f32.mrf.mxu0
  %v2178 = vadd.f32 %v1889, %v2177
  %v2179 = vpop.f32.mrf.mxu0
  %2180 = vmatprep.mubr.bf16.mxu0 0
  %2181 = vmatmul.mubr.bf16.gmra.mxu0 %v1370
  %v2182 = vpop.f32.mrf.mxu0
  %v2183 = vadd.f32 %v1894, %v2182
  %v2184 = vpop.f32.mrf.mxu0
  %v2185 = vpop.f32.mrf.mxu0
  %v2186 = vadd.f32 %v1897, %v2185
  %v2187 = vpop.f32.mrf.mxu0
  %2188 = vmatprep.mubr.bf16.mxu0 0
  %2189 = vmatmul.mubr.bf16.gmra.mxu0 %v1373
  %v2190 = vpop.f32.mrf.mxu0
  %v2191 = vadd.f32 %v1902, %v2190
  %v2192 = vpop.f32.mrf.mxu0
  %v2193 = vpop.f32.mrf.mxu0
  %v2194 = vadd.f32 %v1905, %v2193
  %v2195 = vpop.f32.mrf.mxu0
  %2196 = vmatprep.mubr.bf16.mxu0 0
  %2197 = vmatmul.mubr.bf16.gmra.mxu0 %v1376
  %v2198 = vpop.f32.mrf.mxu0
  %v2199 = vadd.f32 %v1910, %v2198
  %v2200 = vpop.f32.mrf.mxu0
  %v2201 = vpop.f32.mrf.mxu0
  %v2202 = vadd.f32 %v1913, %v2201
  %v2203 = vpop.f32.mrf.mxu0
  %2204 = vmatprep.mubr.bf16.mxu0 0
  %2205 = vmatmul.mubr.bf16.gmra.mxu0 %v1379
  %v2206 = vpop.f32.mrf.mxu0
  %v2207 = vadd.f32 %v1918, %v2206
  %v2208 = vpop.f32.mrf.mxu0
  %v2209 = vpop.f32.mrf.mxu0
  %v2210 = vadd.f32 %v1921, %v2209
  %v2211 = vpop.f32.mrf.mxu0
  %2212 = vmatprep.mubr.bf16.mxu0 0
  %2213 = vmatmul.mubr.bf16.gmra.mxu0 %v1382
  %v2214 = vpop.f32.mrf.mxu0
  %v2215 = vadd.f32 %v1926, %v2214
  %v2216 = vpop.f32.mrf.mxu0
  %v2217 = vpop.f32.mrf.mxu0
  %v2218 = vadd.f32 %v1929, %v2217
  %v2219 = vpop.f32.mrf.mxu0
  %2220 = vmatprep.mubr.bf16.mxu0 0
  %2221 = vmatmul.mubr.bf16.gmra.mxu0 %v1385
  %v2222 = vpop.f32.mrf.mxu0
  %v2223 = vadd.f32 %v1934, %v2222
  %v2224 = vpop.f32.mrf.mxu0
  %v2225 = vpop.f32.mrf.mxu0
  %v2226 = vadd.f32 %v1937, %v2225
  %v2227 = vpop.f32.mrf.mxu0
  %2228 = vmatprep.mubr.bf16.mxu0 0
  %2229 = vmatmul.mubr.bf16.gmra.mxu0 %v1388
  %v2230 = vpop.f32.mrf.mxu0
  %v2231 = vadd.f32 %v1942, %v2230
  %v2232 = vpop.f32.mrf.mxu0
  %v2233 = vpop.f32.mrf.mxu0
  %v2234 = vadd.f32 %v1945, %v2233
  %v2235 = vpop.f32.mrf.mxu0
  %2236 = vmatprep.mubr.bf16.mxu0 0
  %2237 = vmatmul.mubr.bf16.gmra.mxu0 %v1391
  %v2238 = vpop.f32.mrf.mxu0
  %v2239 = vadd.f32 %v1950, %v2238
  %v2240 = vpop.f32.mrf.mxu0
  %v2241 = vpop.f32.mrf.mxu0
  %v2242 = vadd.f32 %v1953, %v2241
  %v2243 = vpop.f32.mrf.mxu0
  %2244 = vmatprep.mubr.bf16.mxu0 0
  %2245 = vmatmul.mubr.bf16.gmra.mxu0 %v1394
  %v2246 = vpop.f32.mrf.mxu0
  %v2247 = vadd.f32 %v1958, %v2246
  %v2248 = vpop.f32.mrf.mxu0
  %v2249 = vpop.f32.mrf.mxu0
  %v2250 = vadd.f32 %v1961, %v2249
  %v2251 = vpop.f32.mrf.mxu0
  %2252 = vmatprep.mubr.bf16.mxu0 0
  %2253 = vmatmul.mubr.bf16.gmra.mxu0 %v1397
  %v2254 = vpop.f32.mrf.mxu0
  %v2255 = vadd.f32 %v1966, %v2254
  %v2256 = vpop.f32.mrf.mxu0
  %v2257 = vpop.f32.mrf.mxu0
  %v2258 = vadd.f32 %v1969, %v2257
  %v2259 = vpop.f32.mrf.mxu0
  %2260 = vmatprep.mubr.bf16.mxu0 0
  %2261 = vmatmul.mubr.bf16.gmra.mxu0 %v1400
  %v2262 = vpop.f32.mrf.mxu0
  %v2263 = vadd.f32 %v1974, %v2262
  %v2264 = vpop.f32.mrf.mxu0
  %v2265 = vpop.f32.mrf.mxu0
  %v2266 = vadd.f32 %v1977, %v2265
  %v2267 = vpop.f32.mrf.mxu0
  %2268 = vdwg.mxu0
  %v2269 = vld [vmem:[%s3] sm:$0xff]
  %v2270 = vld [vmem:[%s3 + $0x8] sm:$0xff]
  %v2271 = vld [vmem:[%s3 + $0x10] sm:$0xff]
  %v2272 = vld [vmem:[%s3 + $0x18] sm:$0xff]
  %v2273 = vld [vmem:[%s3 + $0x20] sm:$0xff]
  %v2274 = vld [vmem:[%s3 + $0x28] sm:$0xff]
  %v2275 = vld [vmem:[%s3 + $0x30] sm:$0xff]
  %v2276 = vld [vmem:[%s3 + $0x38] sm:$0xff]
  %v2277 = vld [vmem:[%s3 + $0x40] sm:$0xff]
  %v2278 = vld [vmem:[%s3 + $0x48] sm:$0xff]
  %v2279 = vld [vmem:[%s3 + $0x50] sm:$0xff]
  %v2280 = vld [vmem:[%s3 + $0x58] sm:$0xff]
  %v2281 = vld [vmem:[%s3 + $0x60] sm:$0xff]
  %v2282 = vld [vmem:[%s3 + $0x68] sm:$0xff]
  %v2283 = vld [vmem:[%s3 + $0x70] sm:$0xff]
  %v2284 = vld [vmem:[%s3 + $0x78] sm:$0xff]
  %v2285 = vld [vmem:[%s3 + $0x80] sm:$0xff]
  %v2286 = vld [vmem:[%s3 + $0x88] sm:$0xff]
  %v2287 = vld [vmem:[%s3 + $0x90] sm:$0xff]
  %v2288 = vld [vmem:[%s3 + $0x98] sm:$0xff]
  %v2289 = vld [vmem:[%s3 + $0xa0] sm:$0xff]
  %v2290 = vld [vmem:[%s3 + $0xa8] sm:$0xff]
  %v2291 = vld [vmem:[%s3 + $0xb0] sm:$0xff]
  %v2292 = vld [vmem:[%s3 + $0xb8] sm:$0xff]
  %v2293 = vld [vmem:[%s3 + $0xc0] sm:$0xff]
  %v2294 = vld [vmem:[%s3 + $0xc8] sm:$0xff]
  %v2295 = vld [vmem:[%s3 + $0xd0] sm:$0xff]
  %v2296 = vld [vmem:[%s3 + $0xd8] sm:$0xff]
  %v2297 = vld [vmem:[%s3 + $0xe0] sm:$0xff]
  %v2298 = vld [vmem:[%s3 + $0xe8] sm:$0xff]
  %v2299 = vld [vmem:[%s3 + $0xf0] sm:$0xff]
  %v2300 = vld [vmem:[%s3 + $0xf8] sm:$0xff]
  %v2301 = vld [vmem:[%s3 + $0x100] sm:$0xff]
  %v2302 = vld [vmem:[%s3 + $0x108] sm:$0xff]
  %v2303 = vld [vmem:[%s3 + $0x110] sm:$0xff]
  %v2304 = vld [vmem:[%s3 + $0x118] sm:$0xff]
  %v2305 = vld [vmem:[%s3 + $0x120] sm:$0xff]
  %v2306 = vld [vmem:[%s3 + $0x128] sm:$0xff]
  %v2307 = vld [vmem:[%s3 + $0x130] sm:$0xff]
  %v2308 = vld [vmem:[%s3 + $0x138] sm:$0xff]
  %v2309 = vld [vmem:[%s3 + $0x140] sm:$0xff]
  %v2310 = vld [vmem:[%s3 + $0x148] sm:$0xff]
  %v2311 = vld [vmem:[%s3 + $0x150] sm:$0xff]
  %v2312 = vld [vmem:[%s3 + $0x158] sm:$0xff]
  %v2313 = vld [vmem:[%s3 + $0x160] sm:$0xff]
  %v2314 = vld [vmem:[%s3 + $0x168] sm:$0xff]
  %v2315 = vld [vmem:[%s3 + $0x170] sm:$0xff]
  %v2316 = vld [vmem:[%s3 + $0x178] sm:$0xff]
  %v2317 = vld [vmem:[%s3 + $0x180] sm:$0xff]
  %v2318 = vld [vmem:[%s3 + $0x188] sm:$0xff]
  %v2319 = vld [vmem:[%s3 + $0x190] sm:$0xff]
  %v2320 = vld [vmem:[%s3 + $0x198] sm:$0xff]
  %v2321 = vld [vmem:[%s3 + $0x1a0] sm:$0xff]
  %v2322 = vld [vmem:[%s3 + $0x1a8] sm:$0xff]
  %v2323 = vld [vmem:[%s3 + $0x1b0] sm:$0xff]
  %v2324 = vld [vmem:[%s3 + $0x1b8] sm:$0xff]
  %v2325 = vld [vmem:[%s3 + $0x1c0] sm:$0xff]
  %v2326 = vld [vmem:[%s3 + $0x1c8] sm:$0xff]
  %v2327 = vld [vmem:[%s3 + $0x1d0] sm:$0xff]
  %v2328 = vld [vmem:[%s3 + $0x1d8] sm:$0xff]
  %v2329 = vld [vmem:[%s3 + $0x1e0] sm:$0xff]
  %v2330 = vld [vmem:[%s3 + $0x1e8] sm:$0xff]
  %v2331 = vld [vmem:[%s3 + $0x1f0] sm:$0xff]
  %v2332 = vld [vmem:[%s3 + $0x1f8] sm:$0xff]
  %v2333 = vmul.f32 %v2015, %v2269
  %v2334 = vmul.f32 %v2018, %v2270
  %v2335 = vmul.f32 %v2023, %v2271
  %v2336 = vmul.f32 %v2026, %v2272
  %v2337 = vmul.f32 %v2031, %v2273
  %v2338 = vmul.f32 %v2034, %v2274
  %v2339 = vmul.f32 %v2039, %v2275
  %v2340 = vmul.f32 %v2042, %v2276
  %v2341 = vmul.f32 %v2047, %v2277
  %v2342 = vmul.f32 %v2050, %v2278
  %v2343 = vmul.f32 %v2055, %v2279
  %v2344 = vmul.f32 %v2058, %v2280
  %v2345 = vmul.f32 %v2063, %v2281
  %v2346 = vmul.f32 %v2066, %v2282
  %v2347 = vmul.f32 %v2071, %v2283
  %v2348 = vmul.f32 %v2074, %v2284
  %v2349 = vmul.f32 %v2079, %v2285
  %v2350 = vmul.f32 %v2082, %v2286
  %v2351 = vmul.f32 %v2087, %v2287
  %v2352 = vmul.f32 %v2090, %v2288
  %v2353 = vmul.f32 %v2095, %v2289
  %v2354 = vmul.f32 %v2098, %v2290
  %v2355 = vmul.f32 %v2103, %v2291
  %v2356 = vmul.f32 %v2106, %v2292
  %v2357 = vmul.f32 %v2111, %v2293
  %v2358 = vmul.f32 %v2114, %v2294
  %v2359 = vmul.f32 %v2119, %v2295
  %v2360 = vmul.f32 %v2122, %v2296
  %v2361 = vmul.f32 %v2127, %v2297
  %v2362 = vmul.f32 %v2130, %v2298
  %v2363 = vmul.f32 %v2135, %v2299
  %v2364 = vmul.f32 %v2138, %v2300
  %v2365 = vmul.f32 %v2143, %v2301
  %v2366 = vmul.f32 %v2146, %v2302
  %v2367 = vmul.f32 %v2151, %v2303
  %v2368 = vmul.f32 %v2154, %v2304
  %v2369 = vmul.f32 %v2159, %v2305
  %v2370 = vmul.f32 %v2162, %v2306
  %v2371 = vmul.f32 %v2167, %v2307
  %v2372 = vmul.f32 %v2170, %v2308
  %v2373 = vmul.f32 %v2175, %v2309
  %v2374 = vmul.f32 %v2178, %v2310
  %v2375 = vmul.f32 %v2183, %v2311
  %v2376 = vmul.f32 %v2186, %v2312
  %v2377 = vmul.f32 %v2191, %v2313
  %v2378 = vmul.f32 %v2194, %v2314
  %v2379 = vmul.f32 %v2199, %v2315
  %v2380 = vmul.f32 %v2202, %v2316
  %v2381 = vmul.f32 %v2207, %v2317
  %v2382 = vmul.f32 %v2210, %v2318
  %v2383 = vmul.f32 %v2215, %v2319
  %v2384 = vmul.f32 %v2218, %v2320
  %v2385 = vmul.f32 %v2223, %v2321
  %v2386 = vmul.f32 %v2226, %v2322
  %v2387 = vmul.f32 %v2231, %v2323
  %v2388 = vmul.f32 %v2234, %v2324
  %v2389 = vmul.f32 %v2239, %v2325
  %v2390 = vmul.f32 %v2242, %v2326
  %v2391 = vmul.f32 %v2247, %v2327
  %v2392 = vmul.f32 %v2250, %v2328
  %v2393 = vmul.f32 %v2255, %v2329
  %v2394 = vmul.f32 %v2258, %v2330
  %v2395 = vmul.f32 %v2263, %v2331
  %v2396 = vmul.f32 %v2266, %v2332
  %v2397 = vmax.f32 %v2333, 0.0
  %v2398 = vmax.f32 %v2334, 0.0
  %v2399 = vmax.f32 %v2335, 0.0
  %v2400 = vmax.f32 %v2336, 0.0
  %v2401 = vmax.f32 %v2337, 0.0
  %v2402 = vmax.f32 %v2338, 0.0
  %v2403 = vmax.f32 %v2339, 0.0
  %v2404 = vmax.f32 %v2340, 0.0
  %v2405 = vmax.f32 %v2341, 0.0
  %v2406 = vmax.f32 %v2342, 0.0
  %v2407 = vmax.f32 %v2343, 0.0
  %v2408 = vmax.f32 %v2344, 0.0
  %v2409 = vmax.f32 %v2345, 0.0
  %v2410 = vmax.f32 %v2346, 0.0
  %v2411 = vmax.f32 %v2347, 0.0
  %v2412 = vmax.f32 %v2348, 0.0
  %v2413 = vmax.f32 %v2349, 0.0
  %v2414 = vmax.f32 %v2350, 0.0
  %v2415 = vmax.f32 %v2351, 0.0
  %v2416 = vmax.f32 %v2352, 0.0
  %v2417 = vmax.f32 %v2353, 0.0
  %v2418 = vmax.f32 %v2354, 0.0
  %v2419 = vmax.f32 %v2355, 0.0
  %v2420 = vmax.f32 %v2356, 0.0
  %v2421 = vmax.f32 %v2357, 0.0
  %v2422 = vmax.f32 %v2358, 0.0
  %v2423 = vmax.f32 %v2359, 0.0
  %v2424 = vmax.f32 %v2360, 0.0
  %v2425 = vmax.f32 %v2361, 0.0
  %v2426 = vmax.f32 %v2362, 0.0
  %v2427 = vmax.f32 %v2363, 0.0
  %v2428 = vmax.f32 %v2364, 0.0
  %v2429 = vmax.f32 %v2365, 0.0
  %v2430 = vmax.f32 %v2366, 0.0
  %v2431 = vmax.f32 %v2367, 0.0
  %v2432 = vmax.f32 %v2368, 0.0
  %v2433 = vmax.f32 %v2369, 0.0
  %v2434 = vmax.f32 %v2370, 0.0
  %v2435 = vmax.f32 %v2371, 0.0
  %v2436 = vmax.f32 %v2372, 0.0
  %v2437 = vmax.f32 %v2373, 0.0
  %v2438 = vmax.f32 %v2374, 0.0
  %v2439 = vmax.f32 %v2375, 0.0
  %v2440 = vmax.f32 %v2376, 0.0
  %v2441 = vmax.f32 %v2377, 0.0
  %v2442 = vmax.f32 %v2378, 0.0
  %v2443 = vmax.f32 %v2379, 0.0
  %v2444 = vmax.f32 %v2380, 0.0
  %v2445 = vmax.f32 %v2381, 0.0
  %v2446 = vmax.f32 %v2382, 0.0
  %v2447 = vmax.f32 %v2383, 0.0
  %v2448 = vmax.f32 %v2384, 0.0
  %v2449 = vmax.f32 %v2385, 0.0
  %v2450 = vmax.f32 %v2386, 0.0
  %v2451 = vmax.f32 %v2387, 0.0
  %v2452 = vmax.f32 %v2388, 0.0
  %v2453 = vmax.f32 %v2389, 0.0
  %v2454 = vmax.f32 %v2390, 0.0
  %v2455 = vmax.f32 %v2391, 0.0
  %v2456 = vmax.f32 %v2392, 0.0
  %v2457 = vmax.f32 %v2393, 0.0
  %v2458 = vmax.f32 %v2394, 0.0
  %v2459 = vmax.f32 %v2395, 0.0
  %v2460 = vmax.f32 %v2396, 0.0
  %v2461 = vadd.f32 %v2015, %v2397
  %v2462 = vadd.f32 %v2018, %v2398
  %v2463 = vadd.f32 %v2023, %v2399
  %v2464 = vadd.f32 %v2026, %v2400
  %v2465 = vadd.f32 %v2031, %v2401
  %v2466 = vadd.f32 %v2034, %v2402
  %v2467 = vadd.f32 %v2039, %v2403
  %v2468 = vadd.f32 %v2042, %v2404
  %v2469 = vadd.f32 %v2047, %v2405
  %v2470 = vadd.f32 %v2050, %v2406
  %v2471 = vadd.f32 %v2055, %v2407
  %v2472 = vadd.f32 %v2058, %v2408
  %v2473 = vadd.f32 %v2063, %v2409
  %v2474 = vadd.f32 %v2066, %v2410
  %v2475 = vadd.f32 %v2071, %v2411
  %v2476 = vadd.f32 %v2074, %v2412
  %v2477 = vadd.f32 %v2079, %v2413
  %v2478 = vadd.f32 %v2082, %v2414
  %v2479 = vadd.f32 %v2087, %v2415
  %v2480 = vadd.f32 %v2090, %v2416
  %v2481 = vadd.f32 %v2095, %v2417
  %v2482 = vadd.f32 %v2098, %v2418
  %v2483 = vadd.f32 %v2103, %v2419
  %v2484 = vadd.f32 %v2106, %v2420
  %v2485 = vadd.f32 %v2111, %v2421
  %v2486 = vadd.f32 %v2114, %v2422
  %v2487 = vadd.f32 %v2119, %v2423
  %v2488 = vadd.f32 %v2122, %v2424
  %v2489 = vadd.f32 %v2127, %v2425
  %v2490 = vadd.f32 %v2130, %v2426
  %v2491 = vadd.f32 %v2135, %v2427
  %v2492 = vadd.f32 %v2138, %v2428
  %v2493 = vadd.f32 %v2143, %v2429
  %v2494 = vadd.f32 %v2146, %v2430
  %v2495 = vadd.f32 %v2151, %v2431
  %v2496 = vadd.f32 %v2154, %v2432
  %v2497 = vadd.f32 %v2159, %v2433
  %v2498 = vadd.f32 %v2162, %v2434
  %v2499 = vadd.f32 %v2167, %v2435
  %v2500 = vadd.f32 %v2170, %v2436
  %v2501 = vadd.f32 %v2175, %v2437
  %v2502 = vadd.f32 %v2178, %v2438
  %v2503 = vadd.f32 %v2183, %v2439
  %v2504 = vadd.f32 %v2186, %v2440
  %v2505 = vadd.f32 %v2191, %v2441
  %v2506 = vadd.f32 %v2194, %v2442
  %v2507 = vadd.f32 %v2199, %v2443
  %v2508 = vadd.f32 %v2202, %v2444
  %v2509 = vadd.f32 %v2207, %v2445
  %v2510 = vadd.f32 %v2210, %v2446
  %v2511 = vadd.f32 %v2215, %v2447
  %v2512 = vadd.f32 %v2218, %v2448
  %v2513 = vadd.f32 %v2223, %v2449
  %v2514 = vadd.f32 %v2226, %v2450
  %v2515 = vadd.f32 %v2231, %v2451
  %v2516 = vadd.f32 %v2234, %v2452
  %v2517 = vadd.f32 %v2239, %v2453
  %v2518 = vadd.f32 %v2242, %v2454
  %v2519 = vadd.f32 %v2247, %v2455
  %v2520 = vadd.f32 %v2250, %v2456
  %v2521 = vadd.f32 %v2255, %v2457
  %v2522 = vadd.f32 %v2258, %v2458
  %v2523 = vadd.f32 %v2263, %v2459
  %v2524 = vadd.f32 %v2266, %v2460
  %v2525 = vmax.f32 %v2461, 0.0
  %v2526 = vmax.f32 %v2462, 0.0
  %v2527 = vmax.f32 %v2463, 0.0
  %v2528 = vmax.f32 %v2464, 0.0
  %v2529 = vmax.f32 %v2465, 0.0
  %v2530 = vmax.f32 %v2466, 0.0
  %v2531 = vmax.f32 %v2467, 0.0
  %v2532 = vmax.f32 %v2468, 0.0
  %v2533 = vmax.f32 %v2469, 0.0
  %v2534 = vmax.f32 %v2470, 0.0
  %v2535 = vmax.f32 %v2471, 0.0
  %v2536 = vmax.f32 %v2472, 0.0
  %v2537 = vmax.f32 %v2473, 0.0
  %v2538 = vmax.f32 %v2474, 0.0
  %v2539 = vmax.f32 %v2475, 0.0
  %v2540 = vmax.f32 %v2476, 0.0
  %v2541 = vmax.f32 %v2477, 0.0
  %v2542 = vmax.f32 %v2478, 0.0
  %v2543 = vmax.f32 %v2479, 0.0
  %v2544 = vmax.f32 %v2480, 0.0
  %v2545 = vmax.f32 %v2481, 0.0
  %v2546 = vmax.f32 %v2482, 0.0
  %v2547 = vmax.f32 %v2483, 0.0
  %v2548 = vmax.f32 %v2484, 0.0
  %v2549 = vmax.f32 %v2485, 0.0
  %v2550 = vmax.f32 %v2486, 0.0
  %v2551 = vmax.f32 %v2487, 0.0
  %v2552 = vmax.f32 %v2488, 0.0
  %v2553 = vmax.f32 %v2489, 0.0
  %v2554 = vmax.f32 %v2490, 0.0
  %v2555 = vmax.f32 %v2491, 0.0
  %v2556 = vmax.f32 %v2492, 0.0
  %v2557 = vmax.f32 %v2493, 0.0
  %v2558 = vmax.f32 %v2494, 0.0
  %v2559 = vmax.f32 %v2495, 0.0
  %v2560 = vmax.f32 %v2496, 0.0
  %v2561 = vmax.f32 %v2497, 0.0
  %v2562 = vmax.f32 %v2498, 0.0
  %v2563 = vmax.f32 %v2499, 0.0
  %v2564 = vmax.f32 %v2500, 0.0
  %v2565 = vmax.f32 %v2501, 0.0
  %v2566 = vmax.f32 %v2502, 0.0
  %v2567 = vmax.f32 %v2503, 0.0
  %v2568 = vmax.f32 %v2504, 0.0
  %v2569 = vmax.f32 %v2505, 0.0
  %v2570 = vmax.f32 %v2506, 0.0
  %v2571 = vmax.f32 %v2507, 0.0
  %v2572 = vmax.f32 %v2508, 0.0
  %v2573 = vmax.f32 %v2509, 0.0
  %v2574 = vmax.f32 %v2510, 0.0
  %v2575 = vmax.f32 %v2511, 0.0
  %v2576 = vmax.f32 %v2512, 0.0
  %v2577 = vmax.f32 %v2513, 0.0
  %v2578 = vmax.f32 %v2514, 0.0
  %v2579 = vmax.f32 %v2515, 0.0
  %v2580 = vmax.f32 %v2516, 0.0
  %v2581 = vmax.f32 %v2517, 0.0
  %v2582 = vmax.f32 %v2518, 0.0
  %v2583 = vmax.f32 %v2519, 0.0
  %v2584 = vmax.f32 %v2520, 0.0
  %v2585 = vmax.f32 %v2521, 0.0
  %v2586 = vmax.f32 %v2522, 0.0
  %v2587 = vmax.f32 %v2523, 0.0
  %v2588 = vmax.f32 %v2524, 0.0
  %2589 = vst [vmem:[%s4] sm:$0xff] %v2525
  %2590 = vst [vmem:[%s4 + $0x8] sm:$0xff] %v2526
  %2591 = vst [vmem:[%s4 + $0x10] sm:$0xff] %v2527
  %2592 = vst [vmem:[%s4 + $0x18] sm:$0xff] %v2528
  %2593 = vst [vmem:[%s4 + $0x20] sm:$0xff] %v2529
  %2594 = vst [vmem:[%s4 + $0x28] sm:$0xff] %v2530
  %2595 = vst [vmem:[%s4 + $0x30] sm:$0xff] %v2531
  %2596 = vst [vmem:[%s4 + $0x38] sm:$0xff] %v2532
  %2597 = vst [vmem:[%s4 + $0x40] sm:$0xff] %v2533
  %2598 = vst [vmem:[%s4 + $0x48] sm:$0xff] %v2534
  %2599 = vst [vmem:[%s4 + $0x50] sm:$0xff] %v2535
  %2600 = vst [vmem:[%s4 + $0x58] sm:$0xff] %v2536
  %2601 = vst [vmem:[%s4 + $0x60] sm:$0xff] %v2537
  %2602 = vst [vmem:[%s4 + $0x68] sm:$0xff] %v2538
  %2603 = vst [vmem:[%s4 + $0x70] sm:$0xff] %v2539
  %2604 = vst [vmem:[%s4 + $0x78] sm:$0xff] %v2540
  %2605 = vst [vmem:[%s4 + $0x80] sm:$0xff] %v2541
  %2606 = vst [vmem:[%s4 + $0x88] sm:$0xff] %v2542
  %2607 = vst [vmem:[%s4 + $0x90] sm:$0xff] %v2543
  %2608 = vst [vmem:[%s4 + $0x98] sm:$0xff] %v2544
  %2609 = vst [vmem:[%s4 + $0xa0] sm:$0xff] %v2545
  %2610 = vst [vmem:[%s4 + $0xa8] sm:$0xff] %v2546
  %2611 = vst [vmem:[%s4 + $0xb0] sm:$0xff] %v2547
  %2612 = vst [vmem:[%s4 + $0xb8] sm:$0xff] %v2548
  %2613 = vst [vmem:[%s4 + $0xc0] sm:$0xff] %v2549
  %2614 = vst [vmem:[%s4 + $0xc8] sm:$0xff] %v2550
  %2615 = vst [vmem:[%s4 + $0xd0] sm:$0xff] %v2551
  %2616 = vst [vmem:[%s4 + $0xd8] sm:$0xff] %v2552
  %2617 = vst [vmem:[%s4 + $0xe0] sm:$0xff] %v2553
  %2618 = vst [vmem:[%s4 + $0xe8] sm:$0xff] %v2554
  %2619 = vst [vmem:[%s4 + $0xf0] sm:$0xff] %v2555
  %2620 = vst [vmem:[%s4 + $0xf8] sm:$0xff] %v2556
  %2621 = vst [vmem:[%s4 + $0x100] sm:$0xff] %v2557
  %2622 = vst [vmem:[%s4 + $0x108] sm:$0xff] %v2558
  %2623 = vst [vmem:[%s4 + $0x110] sm:$0xff] %v2559
  %2624 = vst [vmem:[%s4 + $0x118] sm:$0xff] %v2560
  %2625 = vst [vmem:[%s4 + $0x120] sm:$0xff] %v2561
  %2626 = vst [vmem:[%s4 + $0x128] sm:$0xff] %v2562
  %2627 = vst [vmem:[%s4 + $0x130] sm:$0xff] %v2563
  %2628 = vst [vmem:[%s4 + $0x138] sm:$0xff] %v2564
  %2629 = vst [vmem:[%s4 + $0x140] sm:$0xff] %v2565
  %2630 = vst [vmem:[%s4 + $0x148] sm:$0xff] %v2566
  %2631 = vst [vmem:[%s4 + $0x150] sm:$0xff] %v2567
  %2632 = vst [vmem:[%s4 + $0x158] sm:$0xff] %v2568
  %2633 = vst [vmem:[%s4 + $0x160] sm:$0xff] %v2569
  %2634 = vst [vmem:[%s4 + $0x168] sm:$0xff] %v2570
  %2635 = vst [vmem:[%s4 + $0x170] sm:$0xff] %v2571
  %2636 = vst [vmem:[%s4 + $0x178] sm:$0xff] %v2572
  %2637 = vst [vmem:[%s4 + $0x180] sm:$0xff] %v2573
  %2638 = vst [vmem:[%s4 + $0x188] sm:$0xff] %v2574
  %2639 = vst [vmem:[%s4 + $0x190] sm:$0xff] %v2575
  %2640 = vst [vmem:[%s4 + $0x198] sm:$0xff] %v2576
  %2641 = vst [vmem:[%s4 + $0x1a0] sm:$0xff] %v2577
  %2642 = vst [vmem:[%s4 + $0x1a8] sm:$0xff] %v2578
  %2643 = vst [vmem:[%s4 + $0x1b0] sm:$0xff] %v2579
  %2644 = vst [vmem:[%s4 + $0x1b8] sm:$0xff] %v2580
  %2645 = vst [vmem:[%s4 + $0x1c0] sm:$0xff] %v2581
  %2646 = vst [vmem:[%s4 + $0x1c8] sm:$0xff] %v2582
  %2647 = vst [vmem:[%s4 + $0x1d0] sm:$0xff] %v2583
  %2648 = vst [vmem:[%s4 + $0x1d8] sm:$0xff] %v2584
  %2649 = vst [vmem:[%s4 + $0x1e0] sm:$0xff] %v2585
  %2650 = vst [vmem:[%s4 + $0x1e8] sm:$0xff] %v2586
  %2651 = vst [vmem:[%s4 + $0x1f0] sm:$0xff] %v2587
  %2652 = vst [vmem:[%s4 + $0x1f8] sm:$0xff] %v2588
  // Predicated region
  $region18: #{a_call__.4} parent=0 // pred_check
    _
  $region19: #{a_call__.4} parent=0 // pred_check_branch
    %2654 = sbr.rel (0) target = $region21
  $region20: #{a_call__.4} parent=0 // pred_region
    _
  $region21: #{a_call__.4} parent=0 // pred_fallthru
    _
  // Predicated region
  $region22: #{a_call__.4} parent=0 // pred_check
    _
  $region23: #{a_call__.4} parent=0 // pred_check_branch
    %2656 = sbr.rel (0) target = $region25
  $region24: #{a_call__.4} parent=0 // pred_region
    _
  $region25: #{a_call__.4} parent=0 // pred_fallthru
    _

// kernel: a_call__.5
$region0: #{a_call__.5}
  #allocation0 [shape = 'u32[]', space=smem, size = 0x4, offset = 0x4, fixed_abs, tag = 'smem constant byte address 0x4 - core index']
  #allocation1 [shape = 'u32[144,128]{1,0:T(1,128)}', space=vmem, size = 0x12000, scoped, tag = 'internal scratch']
  %s0 = inlined_call_operand.vmem [shape: bf16[128,1152], index: 0, kind: input, shape index: {}]
  %s1 = inlined_call_operand.vmem [shape: bf16[1152,128], index: 1, kind: input, shape index: {}]
  %s2 = inlined_call_operand.vmem [shape: f32[1,128], index: 2, kind: input, shape index: {}]
  %s3 = inlined_call_operand.hbm [shape: f32[128,128], index: 3, kind: output, shape index: {}]
  %s4 = sld [smem:[#allocation0]]
  $region22: #{a_call__.5} parent=0
    _
  %s6 = ssub.s32 1, %s4
  %s7 = scalar_select 0, %s6, %s4
  $region1: #{a_call__.5} parent=0
    #allocation2 [shape = 'u8[65536]{0}', space=vmem, size = 0x10000, scoped, tag = 'output window, operand 0, single buffered']
    #allocation3 [shape = 's32[1]{0}', space=sflag, size = 0x4, scoped, tag = 'scoped memory for a_call__.5']
    %8 = vsyncpa [#allocation3], 0
    // Predicated region
    $region2: #{a_call__.5} parent=1 // pred_check
      _
    $region3: #{a_call__.5} parent=1 // pred_check_branch
      %10 = sbr.rel (0) target = $region5
    $region4: #{a_call__.5} parent=1 // pred_region
      _
    $region5: #{a_call__.5} parent=1 // pred_fallthru
      _
    // Predicated region
    $region6: #{a_call__.5} parent=1 // pred_check
      _
    $region7: #{a_call__.5} parent=1 // pred_check_branch
      %12 = sbr.rel (0) target = $region9
    $region8: #{a_call__.5} parent=1 // pred_region
      _
    $region9: #{a_call__.5} parent=1 // pred_fallthru
      _
    // Predicated region
    $region10: #{a_call__.5} parent=1 // pred_check
      _
    $region11: #{a_call__.5} parent=1 // pred_check_branch
      %14 = sbr.rel (0) target = $region13
    $region12: #{a_call__.5} parent=1 // pred_region
      _
    $region13: #{a_call__.5} parent=1 // pred_fallthru
      _
    %v16 = vld [vmem:[%s0] sm:$0xff]
    %v17 = vld [vmem:[%s0 + $0x8] sm:$0xff]
    %v18 = vld [vmem:[%s0 + $0x10] sm:$0xff]
    %v19 = vld [vmem:[%s0 + $0x18] sm:$0xff]
    %v20 = vld [vmem:[%s0 + $0x20] sm:$0xf]
    %v21 = vld [vmem:[%s0 + $0x24] sm:$0xff]
    %v22 = vld [vmem:[%s0 + $0x2c] sm:$0xff]
    %v23 = vld [vmem:[%s0 + $0x34] sm:$0xff]
    %v24 = vld [vmem:[%s0 + $0x3c] sm:$0xff]
    %v25 = vld [vmem:[%s0 + $0x44] sm:$0xf]
    %v26 = vld [vmem:[%s0 + $0x48] sm:$0xff]
    %v27 = vld [vmem:[%s0 + $0x50] sm:$0xff]
    %v28 = vld [vmem:[%s0 + $0x58] sm:$0xff]
    %v29 = vld [vmem:[%s0 + $0x60] sm:$0xff]
    %v30 = vld [vmem:[%s0 + $0x68] sm:$0xf]
    %v31 = vld [vmem:[%s0 + $0x6c] sm:$0xff]
    %v32 = vld [vmem:[%s0 + $0x74] sm:$0xff]
    %v33 = vld [vmem:[%s0 + $0x7c] sm:$0xff]
    %v34 = vld [vmem:[%s0 + $0x84] sm:$0xff]
    %v35 = vld [vmem:[%s0 + $0x8c] sm:$0xf]
    %v36 = vld [vmem:[%s0 + $0x90] sm:$0xff]
    %v37 = vld [vmem:[%s0 + $0x98] sm:$0xff]
    %v38 = vld [vmem:[%s0 + $0xa0] sm:$0xff]
    %v39 = vld [vmem:[%s0 + $0xa8] sm:$0xff]
    %v40 = vld [vmem:[%s0 + $0xb0] sm:$0xf]
    %v41 = vld [vmem:[%s0 + $0xb4] sm:$0xff]
    %v42 = vld [vmem:[%s0 + $0xbc] sm:$0xff]
    %v43 = vld [vmem:[%s0 + $0xc4] sm:$0xff]
    %v44 = vld [vmem:[%s0 + $0xcc] sm:$0xff]
    %v45 = vld [vmem:[%s0 + $0xd4] sm:$0xf]
    %v46 = vld [vmem:[%s0 + $0xd8] sm:$0xff]
    %v47 = vld [vmem:[%s0 + $0xe0] sm:$0xff]
    %v48 = vld [vmem:[%s0 + $0xe8] sm:$0xff]
    %v49 = vld [vmem:[%s0 + $0xf0] sm:$0xff]
    %v50 = vld [vmem:[%s0 + $0xf8] sm:$0xf]
    %v51 = vld [vmem:[%s0 + $0xfc] sm:$0xff]
    %v52 = vld [vmem:[%s0 + $0x104] sm:$0xff]
    %v53 = vld [vmem:[%s0 + $0x10c] sm:$0xff]
    %v54 = vld [vmem:[%s0 + $0x114] sm:$0xff]
    %v55 = vld [vmem:[%s0 + $0x11c] sm:$0xf]
    %v56 = vld [vmem:[%s0 + $0x120] sm:$0xff]
    %v57 = vld [vmem:[%s0 + $0x128] sm:$0xff]
    %v58 = vld [vmem:[%s0 + $0x130] sm:$0xff]
    %v59 = vld [vmem:[%s0 + $0x138] sm:$0xff]
    %v60 = vld [vmem:[%s0 + $0x140] sm:$0xf]
    %v61 = vld [vmem:[%s0 + $0x144] sm:$0xff]
    %v62 = vld [vmem:[%s0 + $0x14c] sm:$0xff]
    %v63 = vld [vmem:[%s0 + $0x154] sm:$0xff]
    %v64 = vld [vmem:[%s0 + $0x15c] sm:$0xff]
    %v65 = vld [vmem:[%s0 + $0x164] sm:$0xf]
    %v66 = vld [vmem:[%s0 + $0x168] sm:$0xff]
    %v67 = vld [vmem:[%s0 + $0x170] sm:$0xff]
    %v68 = vld [vmem:[%s0 + $0x178] sm:$0xff]
    %v69 = vld [vmem:[%s0 + $0x180] sm:$0xff]
    %v70 = vld [vmem:[%s0 + $0x188] sm:$0xf]
    %v71 = vld [vmem:[%s0 + $0x18c] sm:$0xff]
    %v72 = vld [vmem:[%s0 + $0x194] sm:$0xff]
    %v73 = vld [vmem:[%s0 + $0x19c] sm:$0xff]
    %v74 = vld [vmem:[%s0 + $0x1a4] sm:$0xff]
    %v75 = vld [vmem:[%s0 + $0x1ac] sm:$0xf]
    %v76 = vld [vmem:[%s0 + $0x1b0] sm:$0xff]
    %v77 = vld [vmem:[%s0 + $0x1b8] sm:$0xff]
    %v78 = vld [vmem:[%s0 + $0x1c0] sm:$0xff]
    %v79 = vld [vmem:[%s0 + $0x1c8] sm:$0xff]
    %v80 = vld [vmem:[%s0 + $0x1d0] sm:$0xf]
    %v81 = vld [vmem:[%s0 + $0x1d4] sm:$0xff]
    %v82 = vld [vmem:[%s0 + $0x1dc] sm:$0xff]
    %v83 = vld [vmem:[%s0 + $0x1e4] sm:$0xff]
    %v84 = vld [vmem:[%s0 + $0x1ec] sm:$0xff]
    %v85 = vld [vmem:[%s0 + $0x1f4] sm:$0xf]
    %v86 = vld [vmem:[%s0 + $0x1f8] sm:$0xff]
    %v87 = vld [vmem:[%s0 + $0x200] sm:$0xff]
    %v88 = vld [vmem:[%s0 + $0x208] sm:$0xff]
    %v89 = vld [vmem:[%s0 + $0x210] sm:$0xff]
    %v90 = vld [vmem:[%s0 + $0x218] sm:$0xf]
    %v91 = vld [vmem:[%s0 + $0x21c] sm:$0xff]
    %v92 = vld [vmem:[%s0 + $0x224] sm:$0xff]
    %v93 = vld [vmem:[%s0 + $0x22c] sm:$0xff]
    %v94 = vld [vmem:[%s0 + $0x234] sm:$0xff]
    %v95 = vld [vmem:[%s0 + $0x23c] sm:$0xf]
    %v96 = vld [vmem:[%s1] sm:$0xf]
    %v97 = vld [vmem:[%s1 + $0x4] sm:$0xf]
    %v98 = vld [vmem:[%s1 + $0x8] sm:$0xf]
    %v99 = vld [vmem:[%s1 + $0xc] sm:$0xf]
    %v100 = vld [vmem:[%s1 + $0x10] sm:$0xf]
    %v101 = vld [vmem:[%s1 + $0x14] sm:$0xf]
    %v102 = vld [vmem:[%s1 + $0x18] sm:$0xf]
    %v103 = vld [vmem:[%s1 + $0x1c] sm:$0xf]
    %v104 = vld [vmem:[%s1 + $0x20] sm:$0xf]
    %v105 = vld [vmem:[%s1 + $0x24] sm:$0xf]
    %v106 = vld [vmem:[%s1 + $0x28] sm:$0xf]
    %v107 = vld [vmem:[%s1 + $0x2c] sm:$0xf]
    %v108 = vld [vmem:[%s1 + $0x30] sm:$0xf]
    %v109 = vld [vmem:[%s1 + $0x34] sm:$0xf]
    %v110 = vld [vmem:[%s1 + $0x38] sm:$0xf]
    %v111 = vld [vmem:[%s1 + $0x3c] sm:$0xf]
    %v112 = vld [vmem:[%s1 + $0x40] sm:$0xf]
    %v113 = vld [vmem:[%s1 + $0x44] sm:$0xf]
    %v114 = vld [vmem:[%s1 + $0x48] sm:$0xf]
    %v115 = vld [vmem:[%s1 + $0x4c] sm:$0xf]
    %v116 = vld [vmem:[%s1 + $0x50] sm:$0xf]
    %v117 = vld [vmem:[%s1 + $0x54] sm:$0xf]
    %v118 = vld [vmem:[%s1 + $0x58] sm:$0xf]
    %v119 = vld [vmem:[%s1 + $0x5c] sm:$0xf]
    %v120 = vld [vmem:[%s1 + $0x60] sm:$0xf]
    %v121 = vld [vmem:[%s1 + $0x64] sm:$0xf]
    %v122 = vld [vmem:[%s1 + $0x68] sm:$0xf]
    %v123 = vld [vmem:[%s1 + $0x6c] sm:$0xf]
    %v124 = vld [vmem:[%s1 + $0x70] sm:$0xf]
    %v125 = vld [vmem:[%s1 + $0x74] sm:$0xf]
    %v126 = vld [vmem:[%s1 + $0x78] sm:$0xf]
    %v127 = vld [vmem:[%s1 + $0x7c] sm:$0xf]
    %v128 = vld [vmem:[%s1 + $0x80] sm:$0xf]
    %v129 = vld [vmem:[%s1 + $0x84] sm:$0xf]
    %v130 = vld [vmem:[%s1 + $0x88] sm:$0xf]
    %v131 = vld [vmem:[%s1 + $0x8c] sm:$0xf]
    %v132 = vld [vmem:[%s1 + $0x90] sm:$0xf]
    %v133 = vld [vmem:[%s1 + $0x94] sm:$0xf]
    %v134 = vld [vmem:[%s1 + $0x98] sm:$0xf]
    %v135 = vld [vmem:[%s1 + $0x9c] sm:$0xf]
    %v136 = vld [vmem:[%s1 + $0xa0] sm:$0xf]
    %v137 = vld [vmem:[%s1 + $0xa4] sm:$0xf]
    %v138 = vld [vmem:[%s1 + $0xa8] sm:$0xf]
    %v139 = vld [vmem:[%s1 + $0xac] sm:$0xf]
    %v140 = vld [vmem:[%s1 + $0xb0] sm:$0xf]
    %v141 = vld [vmem:[%s1 + $0xb4] sm:$0xf]
    %v142 = vld [vmem:[%s1 + $0xb8] sm:$0xf]
    %v143 = vld [vmem:[%s1 + $0xbc] sm:$0xf]
    %v144 = vld [vmem:[%s1 + $0xc0] sm:$0xf]
    %v145 = vld [vmem:[%s1 + $0xc4] sm:$0xf]
    %v146 = vld [vmem:[%s1 + $0xc8] sm:$0xf]
    %v147 = vld [vmem:[%s1 + $0xcc] sm:$0xf]
    %v148 = vld [vmem:[%s1 + $0xd0] sm:$0xf]
    %v149 = vld [vmem:[%s1 + $0xd4] sm:$0xf]
    %v150 = vld [vmem:[%s1 + $0xd8] sm:$0xf]
    %v151 = vld [vmem:[%s1 + $0xdc] sm:$0xf]
    %v152 = vld [vmem:[%s1 + $0xe0] sm:$0xf]
    %v153 = vld [vmem:[%s1 + $0xe4] sm:$0xf]
    %v154 = vld [vmem:[%s1 + $0xe8] sm:$0xf]
    %v155 = vld [vmem:[%s1 + $0xec] sm:$0xf]
    %v156 = vld [vmem:[%s1 + $0xf0] sm:$0xf]
    %v157 = vld [vmem:[%s1 + $0xf4] sm:$0xf]
    %v158 = vld [vmem:[%s1 + $0xf8] sm:$0xf]
    %v159 = vld [vmem:[%s1 + $0xfc] sm:$0xf]
    %v160 = vld [vmem:[%s1 + $0x100] sm:$0xf]
    %v161 = vld [vmem:[%s1 + $0x104] sm:$0xf]
    %v162 = vld [vmem:[%s1 + $0x108] sm:$0xf]
    %v163 = vld [vmem:[%s1 + $0x10c] sm:$0xf]
    %v164 = vld [vmem:[%s1 + $0x110] sm:$0xf]
    %v165 = vld [vmem:[%s1 + $0x114] sm:$0xf]
    %v166 = vld [vmem:[%s1 + $0x118] sm:$0xf]
    %v167 = vld [vmem:[%s1 + $0x11c] sm:$0xf]
    %v168 = vld [vmem:[%s1 + $0x120] sm:$0xf]
    %v169 = vld [vmem:[%s1 + $0x124] sm:$0xf]
    %v170 = vld [vmem:[%s1 + $0x128] sm:$0xf]
    %v171 = vld [vmem:[%s1 + $0x12c] sm:$0xf]
    %v172 = vld [vmem:[%s1 + $0x130] sm:$0xf]
    %v173 = vld [vmem:[%s1 + $0x134] sm:$0xf]
    %v174 = vld [vmem:[%s1 + $0x138] sm:$0xf]
    %v175 = vld [vmem:[%s1 + $0x13c] sm:$0xf]
    %v176 = vld [vmem:[%s1 + $0x140] sm:$0xf]
    %v177 = vld [vmem:[%s1 + $0x144] sm:$0xf]
    %v178 = vld [vmem:[%s1 + $0x148] sm:$0xf]
    %v179 = vld [vmem:[%s1 + $0x14c] sm:$0xf]
    %v180 = vld [vmem:[%s1 + $0x150] sm:$0xf]
    %v181 = vld [vmem:[%s1 + $0x154] sm:$0xf]
    %v182 = vld [vmem:[%s1 + $0x158] sm:$0xf]
    %v183 = vld [vmem:[%s1 + $0x15c] sm:$0xf]
    %v184 = vld [vmem:[%s1 + $0x160] sm:$0xf]
    %v185 = vld [vmem:[%s1 + $0x164] sm:$0xf]
    %v186 = vld [vmem:[%s1 + $0x168] sm:$0xf]
    %v187 = vld [vmem:[%s1 + $0x16c] sm:$0xf]
    %v188 = vld [vmem:[%s1 + $0x170] sm:$0xf]
    %v189 = vld [vmem:[%s1 + $0x174] sm:$0xf]
    %v190 = vld [vmem:[%s1 + $0x178] sm:$0xf]
    %v191 = vld [vmem:[%s1 + $0x17c] sm:$0xf]
    %v192 = vld [vmem:[%s1 + $0x180] sm:$0xf]
    %v193 = vld [vmem:[%s1 + $0x184] sm:$0xf]
    %v194 = vld [vmem:[%s1 + $0x188] sm:$0xf]
    %v195 = vld [vmem:[%s1 + $0x18c] sm:$0xf]
    %v196 = vld [vmem:[%s1 + $0x190] sm:$0xf]
    %v197 = vld [vmem:[%s1 + $0x194] sm:$0xf]
    %v198 = vld [vmem:[%s1 + $0x198] sm:$0xf]
    %v199 = vld [vmem:[%s1 + $0x19c] sm:$0xf]
    %v200 = vld [vmem:[%s1 + $0x1a0] sm:$0xf]
    %v201 = vld [vmem:[%s1 + $0x1a4] sm:$0xf]
    %v202 = vld [vmem:[%s1 + $0x1a8] sm:$0xf]
    %v203 = vld [vmem:[%s1 + $0x1ac] sm:$0xf]
    %v204 = vld [vmem:[%s1 + $0x1b0] sm:$0xf]
    %v205 = vld [vmem:[%s1 + $0x1b4] sm:$0xf]
    %v206 = vld [vmem:[%s1 + $0x1b8] sm:$0xf]
    %v207 = vld [vmem:[%s1 + $0x1bc] sm:$0xf]
    %v208 = vld [vmem:[%s1 + $0x1c0] sm:$0xf]
    %v209 = vld [vmem:[%s1 + $0x1c4] sm:$0xf]
    %v210 = vld [vmem:[%s1 + $0x1c8] sm:$0xf]
    %v211 = vld [vmem:[%s1 + $0x1cc] sm:$0xf]
    %v212 = vld [vmem:[%s1 + $0x1d0] sm:$0xf]
    %v213 = vld [vmem:[%s1 + $0x1d4] sm:$0xf]
    %v214 = vld [vmem:[%s1 + $0x1d8] sm:$0xf]
    %v215 = vld [vmem:[%s1 + $0x1dc] sm:$0xf]
    %v216 = vld [vmem:[%s1 + $0x1e0] sm:$0xf]
    %v217 = vld [vmem:[%s1 + $0x1e4] sm:$0xf]
    %v218 = vld [vmem:[%s1 + $0x1e8] sm:$0xf]
    %v219 = vld [vmem:[%s1 + $0x1ec] sm:$0xf]
    %v220 = vld [vmem:[%s1 + $0x1f0] sm:$0xf]
    %v221 = vld [vmem:[%s1 + $0x1f4] sm:$0xf]
    %v222 = vld [vmem:[%s1 + $0x1f8] sm:$0xf]
    %v223 = vld [vmem:[%s1 + $0x1fc] sm:$0xf]
    %v224 = vld [vmem:[%s1 + $0x200] sm:$0xf]
    %v225 = vld [vmem:[%s1 + $0x204] sm:$0xf]
    %v226 = vld [vmem:[%s1 + $0x208] sm:$0xf]
    %v227 = vld [vmem:[%s1 + $0x20c] sm:$0xf]
    %v228 = vld [vmem:[%s1 + $0x210] sm:$0xf]
    %v229 = vld [vmem:[%s1 + $0x214] sm:$0xf]
    %v230 = vld [vmem:[%s1 + $0x218] sm:$0xf]
    %v231 = vld [vmem:[%s1 + $0x21c] sm:$0xf]
    %v232 = vld [vmem:[%s1 + $0x220] sm:$0xf]
    %v233 = vld [vmem:[%s1 + $0x224] sm:$0xf]
    %v234 = vld [vmem:[%s1 + $0x228] sm:$0xf]
    %v235 = vld [vmem:[%s1 + $0x22c] sm:$0xf]
    %v236 = vld [vmem:[%s1 + $0x230] sm:$0xf]
    %v237 = vld [vmem:[%s1 + $0x234] sm:$0xf]
    %v238 = vld [vmem:[%s1 + $0x238] sm:$0xf]
    %v239 = vld [vmem:[%s1 + $0x23c] sm:$0xf]
    %v240 = vld [vmem:[%s2] sm:$0x1]
    %v242 = vlaneseq
    %v243 = vshrl.u32 %v242, 7
    %v244 = vsub.s32 0, %v243
    %v245 = vrot.slane %v240, %v244
    %v327 = vunpack.c.l.b16 %v16
    %v328 = vunpack.c.h.b16 %v16
    %v329 = vunpack.c.l.b16 %v17
    %v330 = vunpack.c.h.b16 %v17
    %v331 = vunpack.c.l.b16 %v18
    %v332 = vunpack.c.h.b16 %v18
    %v333 = vunpack.c.l.b16 %v19
    %v334 = vunpack.c.h.b16 %v19
    %v335 = vunpack.c.l.b16 %v20
    %v336 = vunpack.c.l.b16 %v21
    %v337 = vunpack.c.h.b16 %v21
    %v338 = vunpack.c.l.b16 %v22
    %v339 = vunpack.c.h.b16 %v22
    %v340 = vunpack.c.l.b16 %v23
    %v341 = vunpack.c.h.b16 %v23
    %v342 = vunpack.c.l.b16 %v24
    %v343 = vunpack.c.h.b16 %v24
    %v344 = vunpack.c.l.b16 %v25
    %v345 = vunpack.c.l.b16 %v26
    %v346 = vunpack.c.h.b16 %v26
    %v347 = vunpack.c.l.b16 %v27
    %v348 = vunpack.c.h.b16 %v27
    %v349 = vunpack.c.l.b16 %v28
    %v350 = vunpack.c.h.b16 %v28
    %v351 = vunpack.c.l.b16 %v29
    %v352 = vunpack.c.h.b16 %v29
    %v353 = vunpack.c.l.b16 %v30
    %v354 = vunpack.c.l.b16 %v31
    %v355 = vunpack.c.h.b16 %v31
    %v356 = vunpack.c.l.b16 %v32
    %v357 = vunpack.c.h.b16 %v32
    %v358 = vunpack.c.l.b16 %v33
    %v359 = vunpack.c.h.b16 %v33
    %v360 = vunpack.c.l.b16 %v34
    %v361 = vunpack.c.h.b16 %v34
    %v362 = vunpack.c.l.b16 %v35
    %v363 = vunpack.c.l.b16 %v36
    %v364 = vunpack.c.h.b16 %v36
    %v365 = vunpack.c.l.b16 %v37
    %v366 = vunpack.c.h.b16 %v37
    %v367 = vunpack.c.l.b16 %v38
    %v368 = vunpack.c.h.b16 %v38
    %v369 = vunpack.c.l.b16 %v39
    %v370 = vunpack.c.h.b16 %v39
    %v371 = vunpack.c.l.b16 %v40
    %v372 = vunpack.c.l.b16 %v41
    %v373 = vunpack.c.h.b16 %v41
    %v374 = vunpack.c.l.b16 %v42
    %v375 = vunpack.c.h.b16 %v42
    %v376 = vunpack.c.l.b16 %v43
    %v377 = vunpack.c.h.b16 %v43
    %v378 = vunpack.c.l.b16 %v44
    %v379 = vunpack.c.h.b16 %v44
    %v380 = vunpack.c.l.b16 %v45
    %v381 = vunpack.c.l.b16 %v46
    %v382 = vunpack.c.h.b16 %v46
    %v383 = vunpack.c.l.b16 %v47
    %v384 = vunpack.c.h.b16 %v47
    %v385 = vunpack.c.l.b16 %v48
    %v386 = vunpack.c.h.b16 %v48
    %v387 = vunpack.c.l.b16 %v49
    %v388 = vunpack.c.h.b16 %v49
    %v389 = vunpack.c.l.b16 %v50
    %v390 = vunpack.c.l.b16 %v51
    %v391 = vunpack.c.h.b16 %v51
    %v392 = vunpack.c.l.b16 %v52
    %v393 = vunpack.c.h.b16 %v52
    %v394 = vunpack.c.l.b16 %v53
    %v395 = vunpack.c.h.b16 %v53
    %v396 = vunpack.c.l.b16 %v54
    %v397 = vunpack.c.h.b16 %v54
    %v398 = vunpack.c.l.b16 %v55
    %v399 = vunpack.c.l.b16 %v56
    %v400 = vunpack.c.h.b16 %v56
    %v401 = vunpack.c.l.b16 %v57
    %v402 = vunpack.c.h.b16 %v57
    %v403 = vunpack.c.l.b16 %v58
    %v404 = vunpack.c.h.b16 %v58
    %v405 = vunpack.c.l.b16 %v59
    %v406 = vunpack.c.h.b16 %v59
    %v407 = vunpack.c.l.b16 %v60
    %v408 = vunpack.c.l.b16 %v61
    %v409 = vunpack.c.h.b16 %v61
    %v410 = vunpack.c.l.b16 %v62
    %v411 = vunpack.c.h.b16 %v62
    %v412 = vunpack.c.l.b16 %v63
    %v413 = vunpack.c.h.b16 %v63
    %v414 = vunpack.c.l.b16 %v64
    %v415 = vunpack.c.h.b16 %v64
    %v416 = vunpack.c.l.b16 %v65
    %v417 = vunpack.c.l.b16 %v66
    %v418 = vunpack.c.h.b16 %v66
    %v419 = vunpack.c.l.b16 %v67
    %v420 = vunpack.c.h.b16 %v67
    %v421 = vunpack.c.l.b16 %v68
    %v422 = vunpack.c.h.b16 %v68
    %v423 = vunpack.c.l.b16 %v69
    %v424 = vunpack.c.h.b16 %v69
    %v425 = vunpack.c.l.b16 %v70
    %v426 = vunpack.c.l.b16 %v71
    %v427 = vunpack.c.h.b16 %v71
    %v428 = vunpack.c.l.b16 %v72
    %v429 = vunpack.c.h.b16 %v72
    %v430 = vunpack.c.l.b16 %v73
    %v431 = vunpack.c.h.b16 %v73
    %v432 = vunpack.c.l.b16 %v74
    %v433 = vunpack.c.h.b16 %v74
    %v434 = vunpack.c.l.b16 %v75
    %v435 = vunpack.c.l.b16 %v76
    %v436 = vunpack.c.h.b16 %v76
    %v437 = vunpack.c.l.b16 %v77
    %v438 = vunpack.c.h.b16 %v77
    %v439 = vunpack.c.l.b16 %v78
    %v440 = vunpack.c.h.b16 %v78
    %v441 = vunpack.c.l.b16 %v79
    %v442 = vunpack.c.h.b16 %v79
    %v443 = vunpack.c.l.b16 %v80
    %v444 = vunpack.c.l.b16 %v81
    %v445 = vunpack.c.h.b16 %v81
    %v446 = vunpack.c.l.b16 %v82
    %v447 = vunpack.c.h.b16 %v82
    %v448 = vunpack.c.l.b16 %v83
    %v449 = vunpack.c.h.b16 %v83
    %v450 = vunpack.c.l.b16 %v84
    %v451 = vunpack.c.h.b16 %v84
    %v452 = vunpack.c.l.b16 %v85
    %v453 = vunpack.c.l.b16 %v86
    %v454 = vunpack.c.h.b16 %v86
    %v455 = vunpack.c.l.b16 %v87
    %v456 = vunpack.c.h.b16 %v87
    %v457 = vunpack.c.l.b16 %v88
    %v458 = vunpack.c.h.b16 %v88
    %v459 = vunpack.c.l.b16 %v89
    %v460 = vunpack.c.h.b16 %v89
    %v461 = vunpack.c.l.b16 %v90
    %v462 = vunpack.c.l.b16 %v91
    %v463 = vunpack.c.h.b16 %v91
    %v464 = vunpack.c.l.b16 %v92
    %v465 = vunpack.c.h.b16 %v92
    %v466 = vunpack.c.l.b16 %v93
    %v467 = vunpack.c.h.b16 %v93
    %v468 = vunpack.c.l.b16 %v94
    %v469 = vunpack.c.h.b16 %v94
    %v470 = vunpack.c.l.b16 %v95
    %v471 = vpack.c.b16 %v336, %v327
    %v472 = vpack.c.b16 %v337, %v328
    %v473 = vpack.c.b16 %v338, %v329
    %v474 = vpack.c.b16 %v339, %v330
    %v475 = vpack.c.b16 %v340, %v331
    %v476 = vpack.c.b16 %v341, %v332
    %v477 = vpack.c.b16 %v342, %v333
    %v478 = vpack.c.b16 %v343, %v334
    %v479 = vpack.c.b16 %v344, %v335
    %v480 = vpack.c.b16 %v354, %v345
    %v481 = vpack.c.b16 %v355, %v346
    %v482 = vpack.c.b16 %v356, %v347
    %v483 = vpack.c.b16 %v357, %v348
    %v484 = vpack.c.b16 %v358, %v349
    %v485 = vpack.c.b16 %v359, %v350
    %v486 = vpack.c.b16 %v360, %v351
    %v487 = vpack.c.b16 %v361, %v352
    %v488 = vpack.c.b16 %v362, %v353
    %v489 = vpack.c.b16 %v372, %v363
    %v490 = vpack.c.b16 %v373, %v364
    %v491 = vpack.c.b16 %v374, %v365
    %v492 = vpack.c.b16 %v375, %v366
    %v493 = vpack.c.b16 %v376, %v367
    %v494 = vpack.c.b16 %v377, %v368
    %v495 = vpack.c.b16 %v378, %v369
    %v496 = vpack.c.b16 %v379, %v370
    %v497 = vpack.c.b16 %v380, %v371
    %v498 = vpack.c.b16 %v390, %v381
    %v499 = vpack.c.b16 %v391, %v382
    %v500 = vpack.c.b16 %v392, %v383
    %v501 = vpack.c.b16 %v393, %v384
    %v502 = vpack.c.b16 %v394, %v385
    %v503 = vpack.c.b16 %v395, %v386
    %v504 = vpack.c.b16 %v396, %v387
    %v505 = vpack.c.b16 %v397, %v388
    %v506 = vpack.c.b16 %v398, %v389
    %v507 = vpack.c.b16 %v408, %v399
    %v508 = vpack.c.b16 %v409, %v400
    %v509 = vpack.c.b16 %v410, %v401
    %v510 = vpack.c.b16 %v411, %v402
    %v511 = vpack.c.b16 %v412, %v403
    %v512 = vpack.c.b16 %v413, %v404
    %v513 = vpack.c.b16 %v414, %v405
    %v514 = vpack.c.b16 %v415, %v406
    %v515 = vpack.c.b16 %v416, %v407
    %v516 = vpack.c.b16 %v426, %v417
    %v517 = vpack.c.b16 %v427, %v418
    %v518 = vpack.c.b16 %v428, %v419
    %v519 = vpack.c.b16 %v429, %v420
    %v520 = vpack.c.b16 %v430, %v421
    %v521 = vpack.c.b16 %v431, %v422
    %v522 = vpack.c.b16 %v432, %v423
    %v523 = vpack.c.b16 %v433, %v424
    %v524 = vpack.c.b16 %v434, %v425
    %v525 = vpack.c.b16 %v444, %v435
    %v526 = vpack.c.b16 %v445, %v436
    %v527 = vpack.c.b16 %v446, %v437
    %v528 = vpack.c.b16 %v447, %v438
    %v529 = vpack.c.b16 %v448, %v439
    %v530 = vpack.c.b16 %v449, %v440
    %v531 = vpack.c.b16 %v450, %v441
    %v532 = vpack.c.b16 %v451, %v442
    %v533 = vpack.c.b16 %v452, %v443
    %v534 = vpack.c.b16 %v462, %v453
    %v535 = vpack.c.b16 %v463, %v454
    %v536 = vpack.c.b16 %v464, %v455
    %v537 = vpack.c.b16 %v465, %v456
    %v538 = vpack.c.b16 %v466, %v457
    %v539 = vpack.c.b16 %v467, %v458
    %v540 = vpack.c.b16 %v468, %v459
    %v541 = vpack.c.b16 %v469, %v460
    %v542 = vpack.c.b16 %v470, %v461
    %v759 = vunpack.c.l.b16 %v96
    %v760 = vunpack.c.l.b16 %v97
    %v761 = vunpack.c.l.b16 %v98
    %v762 = vunpack.c.l.b16 %v99
    %v763 = vunpack.c.l.b16 %v100
    %v764 = vunpack.c.l.b16 %v101
    %v765 = vunpack.c.l.b16 %v102
    %v766 = vunpack.c.l.b16 %v103
    %v767 = vunpack.c.l.b16 %v104
    %v768 = vunpack.c.l.b16 %v105
    %v769 = vunpack.c.l.b16 %v106
    %v770 = vunpack.c.l.b16 %v107
    %v771 = vunpack.c.l.b16 %v108
    %v772 = vunpack.c.l.b16 %v109
    %v773 = vunpack.c.l.b16 %v110
    %v774 = vunpack.c.l.b16 %v111
    %v775 = vunpack.c.l.b16 %v112
    %v776 = vunpack.c.l.b16 %v113
    %v777 = vunpack.c.l.b16 %v114
    %v778 = vunpack.c.l.b16 %v115
    %v779 = vunpack.c.l.b16 %v116
    %v780 = vunpack.c.l.b16 %v117
    %v781 = vunpack.c.l.b16 %v118
    %v782 = vunpack.c.l.b16 %v119
    %v783 = vunpack.c.l.b16 %v120
    %v784 = vunpack.c.l.b16 %v121
    %v785 = vunpack.c.l.b16 %v122
    %v786 = vunpack.c.l.b16 %v123
    %v787 = vunpack.c.l.b16 %v124
    %v788 = vunpack.c.l.b16 %v125
    %v789 = vunpack.c.l.b16 %v126
    %v790 = vunpack.c.l.b16 %v127
    %v791 = vunpack.c.l.b16 %v128
    %v792 = vunpack.c.l.b16 %v129
    %v793 = vunpack.c.l.b16 %v130
    %v794 = vunpack.c.l.b16 %v131
    %v795 = vunpack.c.l.b16 %v132
    %v796 = vunpack.c.l.b16 %v133
    %v797 = vunpack.c.l.b16 %v134
    %v798 = vunpack.c.l.b16 %v135
    %v799 = vunpack.c.l.b16 %v136
    %v800 = vunpack.c.l.b16 %v137
    %v801 = vunpack.c.l.b16 %v138
    %v802 = vunpack.c.l.b16 %v139
    %v803 = vunpack.c.l.b16 %v140
    %v804 = vunpack.c.l.b16 %v141
    %v805 = vunpack.c.l.b16 %v142
    %v806 = vunpack.c.l.b16 %v143
    %v807 = vunpack.c.l.b16 %v144
    %v808 = vunpack.c.l.b16 %v145
    %v809 = vunpack.c.l.b16 %v146
    %v810 = vunpack.c.l.b16 %v147
    %v811 = vunpack.c.l.b16 %v148
    %v812 = vunpack.c.l.b16 %v149
    %v813 = vunpack.c.l.b16 %v150
    %v814 = vunpack.c.l.b16 %v151
    %v815 = vunpack.c.l.b16 %v152
    %v816 = vunpack.c.l.b16 %v153
    %v817 = vunpack.c.l.b16 %v154
    %v818 = vunpack.c.l.b16 %v155
    %v819 = vunpack.c.l.b16 %v156
    %v820 = vunpack.c.l.b16 %v157
    %v821 = vunpack.c.l.b16 %v158
    %v822 = vunpack.c.l.b16 %v159
    %v823 = vunpack.c.l.b16 %v160
    %v824 = vunpack.c.l.b16 %v161
    %v825 = vunpack.c.l.b16 %v162
    %v826 = vunpack.c.l.b16 %v163
    %v827 = vunpack.c.l.b16 %v164
    %v828 = vunpack.c.l.b16 %v165
    %v829 = vunpack.c.l.b16 %v166
    %v830 = vunpack.c.l.b16 %v167
    %v831 = vunpack.c.l.b16 %v168
    %v832 = vunpack.c.l.b16 %v169
    %v833 = vunpack.c.l.b16 %v170
    %v834 = vunpack.c.l.b16 %v171
    %v835 = vunpack.c.l.b16 %v172
    %v836 = vunpack.c.l.b16 %v173
    %v837 = vunpack.c.l.b16 %v174
    %v838 = vunpack.c.l.b16 %v175
    %v839 = vunpack.c.l.b16 %v176
    %v840 = vunpack.c.l.b16 %v177
    %v841 = vunpack.c.l.b16 %v178
    %v842 = vunpack.c.l.b16 %v179
    %v843 = vunpack.c.l.b16 %v180
    %v844 = vunpack.c.l.b16 %v181
    %v845 = vunpack.c.l.b16 %v182
    %v846 = vunpack.c.l.b16 %v183
    %v847 = vunpack.c.l.b16 %v184
    %v848 = vunpack.c.l.b16 %v185
    %v849 = vunpack.c.l.b16 %v186
    %v850 = vunpack.c.l.b16 %v187
    %v851 = vunpack.c.l.b16 %v188
    %v852 = vunpack.c.l.b16 %v189
    %v853 = vunpack.c.l.b16 %v190
    %v854 = vunpack.c.l.b16 %v191
    %v855 = vunpack.c.l.b16 %v192
    %v856 = vunpack.c.l.b16 %v193
    %v857 = vunpack.c.l.b16 %v194
    %v858 = vunpack.c.l.b16 %v195
    %v859 = vunpack.c.l.b16 %v196
    %v860 = vunpack.c.l.b16 %v197
    %v861 = vunpack.c.l.b16 %v198
    %v862 = vunpack.c.l.b16 %v199
    %v863 = vunpack.c.l.b16 %v200
    %v864 = vunpack.c.l.b16 %v201
    %v865 = vunpack.c.l.b16 %v202
    %v866 = vunpack.c.l.b16 %v203
    %v867 = vunpack.c.l.b16 %v204
    %v868 = vunpack.c.l.b16 %v205
    %v869 = vunpack.c.l.b16 %v206
    %v870 = vunpack.c.l.b16 %v207
    %v871 = vunpack.c.l.b16 %v208
    %v872 = vunpack.c.l.b16 %v209
    %v873 = vunpack.c.l.b16 %v210
    %v874 = vunpack.c.l.b16 %v211
    %v875 = vunpack.c.l.b16 %v212
    %v876 = vunpack.c.l.b16 %v213
    %v877 = vunpack.c.l.b16 %v214
    %v878 = vunpack.c.l.b16 %v215
    %v879 = vunpack.c.l.b16 %v216
    %v880 = vunpack.c.l.b16 %v217
    %v881 = vunpack.c.l.b16 %v218
    %v882 = vunpack.c.l.b16 %v219
    %v883 = vunpack.c.l.b16 %v220
    %v884 = vunpack.c.l.b16 %v221
    %v885 = vunpack.c.l.b16 %v222
    %v886 = vunpack.c.l.b16 %v223
    %v887 = vunpack.c.l.b16 %v224
    %v888 = vunpack.c.l.b16 %v225
    %v889 = vunpack.c.l.b16 %v226
    %v890 = vunpack.c.l.b16 %v227
    %v891 = vunpack.c.l.b16 %v228
    %v892 = vunpack.c.l.b16 %v229
    %v893 = vunpack.c.l.b16 %v230
    %v894 = vunpack.c.l.b16 %v231
    %v895 = vunpack.c.l.b16 %v232
    %v896 = vunpack.c.l.b16 %v233
    %v897 = vunpack.c.l.b16 %v234
    %v898 = vunpack.c.l.b16 %v235
    %v899 = vunpack.c.l.b16 %v236
    %v900 = vunpack.c.l.b16 %v237
    %v901 = vunpack.c.l.b16 %v238
    %v902 = vunpack.c.l.b16 %v239
    %v903 = vpack.c.b16 %v760, %v759
    %v904 = vpack.c.b16 %v762, %v761
    %v905 = vpack.c.b16 %v764, %v763
    %v906 = vpack.c.b16 %v766, %v765
    %v907 = vpack.c.b16 %v768, %v767
    %v908 = vpack.c.b16 %v770, %v769
    %v909 = vpack.c.b16 %v772, %v771
    %v910 = vpack.c.b16 %v774, %v773
    %v911 = vpack.c.b16 %v776, %v775
    %v912 = vpack.c.b16 %v778, %v777
    %v913 = vpack.c.b16 %v780, %v779
    %v914 = vpack.c.b16 %v782, %v781
    %v915 = vpack.c.b16 %v784, %v783
    %v916 = vpack.c.b16 %v786, %v785
    %v917 = vpack.c.b16 %v788, %v787
    %v918 = vpack.c.b16 %v790, %v789
    %v919 = vpack.c.b16 %v792, %v791
    %v920 = vpack.c.b16 %v794, %v793
    %v921 = vpack.c.b16 %v796, %v795
    %v922 = vpack.c.b16 %v798, %v797
    %v923 = vpack.c.b16 %v800, %v799
    %v924 = vpack.c.b16 %v802, %v801
    %v925 = vpack.c.b16 %v804, %v803
    %v926 = vpack.c.b16 %v806, %v805
    %v927 = vpack.c.b16 %v808, %v807
    %v928 = vpack.c.b16 %v810, %v809
    %v929 = vpack.c.b16 %v812, %v811
    %v930 = vpack.c.b16 %v814, %v813
    %v931 = vpack.c.b16 %v816, %v815
    %v932 = vpack.c.b16 %v818, %v817
    %v933 = vpack.c.b16 %v820, %v819
    %v934 = vpack.c.b16 %v822, %v821
    %v935 = vpack.c.b16 %v824, %v823
    %v936 = vpack.c.b16 %v826, %v825
    %v937 = vpack.c.b16 %v828, %v827
    %v938 = vpack.c.b16 %v830, %v829
    %v939 = vpack.c.b16 %v832, %v831
    %v940 = vpack.c.b16 %v834, %v833
    %v941 = vpack.c.b16 %v836, %v835
    %v942 = vpack.c.b16 %v838, %v837
    %v943 = vpack.c.b16 %v840, %v839
    %v944 = vpack.c.b16 %v842, %v841
    %v945 = vpack.c.b16 %v844, %v843
    %v946 = vpack.c.b16 %v846, %v845
    %v947 = vpack.c.b16 %v848, %v847
    %v948 = vpack.c.b16 %v850, %v849
    %v949 = vpack.c.b16 %v852, %v851
    %v950 = vpack.c.b16 %v854, %v853
    %v951 = vpack.c.b16 %v856, %v855
    %v952 = vpack.c.b16 %v858, %v857
    %v953 = vpack.c.b16 %v860, %v859
    %v954 = vpack.c.b16 %v862, %v861
    %v955 = vpack.c.b16 %v864, %v863
    %v956 = vpack.c.b16 %v866, %v865
    %v957 = vpack.c.b16 %v868, %v867
    %v958 = vpack.c.b16 %v870, %v869
    %v959 = vpack.c.b16 %v872, %v871
    %v960 = vpack.c.b16 %v874, %v873
    %v961 = vpack.c.b16 %v876, %v875
    %v962 = vpack.c.b16 %v878, %v877
    %v963 = vpack.c.b16 %v880, %v879
    %v964 = vpack.c.b16 %v882, %v881
    %v965 = vpack.c.b16 %v884, %v883
    %v966 = vpack.c.b16 %v886, %v885
    %v967 = vpack.c.b16 %v888, %v887
    %v968 = vpack.c.b16 %v890, %v889
    %v969 = vpack.c.b16 %v892, %v891
    %v970 = vpack.c.b16 %v894, %v893
    %v971 = vpack.c.b16 %v896, %v895
    %v972 = vpack.c.b16 %v898, %v897
    %v973 = vpack.c.b16 %v900, %v899
    %v974 = vpack.c.b16 %v902, %v901
    %1047 = vmatprep.subr.bf16.mxu0 0
    %1048 = vmatpush1.bf16.msra.mxu0 %v910
    %1049 = vmatprep.subr.bf16.mxu0 0
    %1050 = vmatpush1.bf16.msra.mxu0 %v909
    %1051 = vmatprep.subr.bf16.mxu0 0
    %1052 = vmatpush1.bf16.msra.mxu0 %v908
    %1053 = vmatprep.subr.bf16.mxu0 0
    %1054 = vmatpush1.bf16.msra.mxu0 %v907
    %1055 = vmatprep.subr.bf16.mxu0 0
    %1056 = vmatpush1.bf16.msra.mxu0 %v906
    %1057 = vmatprep.subr.bf16.mxu0 0
    %1058 = vmatpush1.bf16.msra.mxu0 %v905
    %1059 = vmatprep.subr.bf16.mxu0 0
    %1060 = vmatpush1.bf16.msra.mxu0 %v904
    %1061 = vmatprep.subr.bf16.mxu0 0
    %1062 = vmatpush1.bf16.msra.mxu0 %v903
    %1063 = vmatprep.subr.bf16.mxu0 0
    %1064 = vmatpush2.bf16.msra.mxu0 %v918
    %1065 = vmatprep.subr.bf16.mxu0 0
    %1066 = vmatpush2.bf16.msra.mxu0 %v917
    %1067 = vmatprep.subr.bf16.mxu0 0
    %1068 = vmatpush2.bf16.msra.mxu0 %v916
    %1069 = vmatprep.subr.bf16.mxu0 0
    %1070 = vmatpush2.bf16.msra.mxu0 %v915
    %1071 = vmatprep.subr.bf16.mxu0 0
    %1072 = vmatpush2.bf16.msra.mxu0 %v914
    %1073 = vmatprep.subr.bf16.mxu0 0
    %1074 = vmatpush2.bf16.msra.mxu0 %v913
    %1075 = vmatprep.subr.bf16.mxu0 0
    %1076 = vmatpush2.bf16.msra.mxu0 %v912
    %1077 = vmatprep.subr.bf16.mxu0 0
    %1078 = vmatpush2.bf16.msra.mxu0 %v911
    %1079 = vmatprep.mubr.bf16.mxu0 %v472
    %1080 = vmatmul.mubr.bf16.gmra.mxu0 %v471
    %v1081 = vpop.f32.mrf.mxu0
    %v1082 = vadd.f32 %v245, %v1081
    %v1083 = vpop.f32.mrf.mxu0
    %v1084 = vpop.f32.mrf.mxu0
    %v1085 = vadd.f32 %v245, %v1084
    %v1086 = vpop.f32.mrf.mxu0
    %1087 = vmatprep.mubr.bf16.mxu0 %v481
    %1088 = vmatmul.mubr.bf16.gmra.mxu0 %v480
    %v1089 = vpop.f32.mrf.mxu0
    %v1090 = vadd.f32 %v245, %v1089
    %v1091 = vpop.f32.mrf.mxu0
    %v1092 = vpop.f32.mrf.mxu0
    %v1093 = vadd.f32 %v245, %v1092
    %v1094 = vpop.f32.mrf.mxu0
    %1095 = vmatprep.mubr.bf16.mxu0 %v490
    %1096 = vmatmul.mubr.bf16.gmra.mxu0 %v489
    %v1097 = vpop.f32.mrf.mxu0
    %v1098 = vadd.f32 %v245, %v1097
    %v1099 = vpop.f32.mrf.mxu0
    %v1100 = vpop.f32.mrf.mxu0
    %v1101 = vadd.f32 %v245, %v1100
    %v1102 = vpop.f32.mrf.mxu0
    %1103 = vmatprep.mubr.bf16.mxu0 %v499
    %1104 = vmatmul.mubr.bf16.gmra.mxu0 %v498
    %v1105 = vpop.f32.mrf.mxu0
    %v1106 = vadd.f32 %v245, %v1105
    %v1107 = vpop.f32.mrf.mxu0
    %v1108 = vpop.f32.mrf.mxu0
    %v1109 = vadd.f32 %v245, %v1108
    %v1110 = vpop.f32.mrf.mxu0
    %1111 = vmatprep.mubr.bf16.mxu0 %v508
    %1112 = vmatmul.mubr.bf16.gmra.mxu0 %v507
    %v1113 = vpop.f32.mrf.mxu0
    %v1114 = vadd.f32 %v245, %v1113
    %v1115 = vpop.f32.mrf.mxu0
    %v1116 = vpop.f32.mrf.mxu0
    %v1117 = vadd.f32 %v245, %v1116
    %v1118 = vpop.f32.mrf.mxu0
    %1119 = vmatprep.mubr.bf16.mxu0 %v517
    %1120 = vmatmul.mubr.bf16.gmra.mxu0 %v516
    %v1121 = vpop.f32.mrf.mxu0
    %v1122 = vadd.f32 %v245, %v1121
    %v1123 = vpop.f32.mrf.mxu0
    %v1124 = vpop.f32.mrf.mxu0
    %v1125 = vadd.f32 %v245, %v1124
    %v1126 = vpop.f32.mrf.mxu0
    %1127 = vmatprep.mubr.bf16.mxu0 %v526
    %1128 = vmatmul.mubr.bf16.gmra.mxu0 %v525
    %v1129 = vpop.f32.mrf.mxu0
    %v1130 = vadd.f32 %v245, %v1129
    %v1131 = vpop.f32.mrf.mxu0
    %v1132 = vpop.f32.mrf.mxu0
    %v1133 = vadd.f32 %v245, %v1132
    %v1134 = vpop.f32.mrf.mxu0
    %1135 = vmatprep.mubr.bf16.mxu0 %v535
    %1136 = vmatmul.mubr.bf16.gmra.mxu0 %v534
    %v1137 = vpop.f32.mrf.mxu0
    %v1138 = vadd.f32 %v245, %v1137
    %v1139 = vpop.f32.mrf.mxu0
    %v1140 = vpop.f32.mrf.mxu0
    %v1141 = vadd.f32 %v245, %v1140
    %v1142 = vpop.f32.mrf.mxu0
    %1143 = vdwg.mxu0
    %1144 = vmatprep.subr.bf16.mxu0 0
    %1145 = vmatpush1.bf16.msra.mxu0 %v926
    %1146 = vmatprep.subr.bf16.mxu0 0
    %1147 = vmatpush1.bf16.msra.mxu0 %v925
    %1148 = vmatprep.subr.bf16.mxu0 0
    %1149 = vmatpush1.bf16.msra.mxu0 %v924
    %1150 = vmatprep.subr.bf16.mxu0 0
    %1151 = vmatpush1.bf16.msra.mxu0 %v923
    %1152 = vmatprep.subr.bf16.mxu0 0
    %1153 = vmatpush1.bf16.msra.mxu0 %v922
    %1154 = vmatprep.subr.bf16.mxu0 0
    %1155 = vmatpush1.bf16.msra.mxu0 %v921
    %1156 = vmatprep.subr.bf16.mxu0 0
    %1157 = vmatpush1.bf16.msra.mxu0 %v920
    %1158 = vmatprep.subr.bf16.mxu0 0
    %1159 = vmatpush1.bf16.msra.mxu0 %v919
    %1160 = vmatprep.subr.bf16.mxu0 0
    %1161 = vmatpush2.bf16.msra.mxu0 %v934
    %1162 = vmatprep.subr.bf16.mxu0 0
    %1163 = vmatpush2.bf16.msra.mxu0 %v933
    %1164 = vmatprep.subr.bf16.mxu0 0
    %1165 = vmatpush2.bf16.msra.mxu0 %v932
    %1166 = vmatprep.subr.bf16.mxu0 0
    %1167 = vmatpush2.bf16.msra.mxu0 %v931
    %1168 = vmatprep.subr.bf16.mxu0 0
    %1169 = vmatpush2.bf16.msra.mxu0 %v930
    %1170 = vmatprep.subr.bf16.mxu0 0
    %1171 = vmatpush2.bf16.msra.mxu0 %v929
    %1172 = vmatprep.subr.bf16.mxu0 0
    %1173 = vmatpush2.bf16.msra.mxu0 %v928
    %1174 = vmatprep.subr.bf16.mxu0 0
    %1175 = vmatpush2.bf16.msra.mxu0 %v927
    %1176 = vmatprep.mubr.bf16.mxu0 %v474
    %1177 = vmatmul.mubr.bf16.gmra.mxu0 %v473
    %v1178 = vpop.f32.mrf.mxu0
    %v1179 = vadd.f32 %v1082, %v1178
    %v1180 = vpop.f32.mrf.mxu0
    %v1181 = vpop.f32.mrf.mxu0
    %v1182 = vadd.f32 %v1085, %v1181
    %v1183 = vpop.f32.mrf.mxu0
    %1184 = vmatprep.mubr.bf16.mxu0 %v483
    %1185 = vmatmul.mubr.bf16.gmra.mxu0 %v482
    %v1186 = vpop.f32.mrf.mxu0
    %v1187 = vadd.f32 %v1090, %v1186
    %v1188 = vpop.f32.mrf.mxu0
    %v1189 = vpop.f32.mrf.mxu0
    %v1190 = vadd.f32 %v1093, %v1189
    %v1191 = vpop.f32.mrf.mxu0
    %1192 = vmatprep.mubr.bf16.mxu0 %v492
    %1193 = vmatmul.mubr.bf16.gmra.mxu0 %v491
    %v1194 = vpop.f32.mrf.mxu0
    %v1195 = vadd.f32 %v1098, %v1194
    %v1196 = vpop.f32.mrf.mxu0
    %v1197 = vpop.f32.mrf.mxu0
    %v1198 = vadd.f32 %v1101, %v1197
    %v1199 = vpop.f32.mrf.mxu0
    %1200 = vmatprep.mubr.bf16.mxu0 %v501
    %1201 = vmatmul.mubr.bf16.gmra.mxu0 %v500
    %v1202 = vpop.f32.mrf.mxu0
    %v1203 = vadd.f32 %v1106, %v1202
    %v1204 = vpop.f32.mrf.mxu0
    %v1205 = vpop.f32.mrf.mxu0
    %v1206 = vadd.f32 %v1109, %v1205
    %v1207 = vpop.f32.mrf.mxu0
    %1208 = vmatprep.mubr.bf16.mxu0 %v510
    %1209 = vmatmul.mubr.bf16.gmra.mxu0 %v509
    %v1210 = vpop.f32.mrf.mxu0
    %v1211 = vadd.f32 %v1114, %v1210
    %v1212 = vpop.f32.mrf.mxu0
    %v1213 = vpop.f32.mrf.mxu0
    %v1214 = vadd.f32 %v1117, %v1213
    %v1215 = vpop.f32.mrf.mxu0
    %1216 = vmatprep.mubr.bf16.mxu0 %v519
    %1217 = vmatmul.mubr.bf16.gmra.mxu0 %v518
    %v1218 = vpop.f32.mrf.mxu0
    %v1219 = vadd.f32 %v1122, %v1218
    %v1220 = vpop.f32.mrf.mxu0
    %v1221 = vpop.f32.mrf.mxu0
    %v1222 = vadd.f32 %v1125, %v1221
    %v1223 = vpop.f32.mrf.mxu0
    %1224 = vmatprep.mubr.bf16.mxu0 %v528
    %1225 = vmatmul.mubr.bf16.gmra.mxu0 %v527
    %v1226 = vpop.f32.mrf.mxu0
    %v1227 = vadd.f32 %v1130, %v1226
    %v1228 = vpop.f32.mrf.mxu0
    %v1229 = vpop.f32.mrf.mxu0
    %v1230 = vadd.f32 %v1133, %v1229
    %v1231 = vpop.f32.mrf.mxu0
    %1232 = vmatprep.mubr.bf16.mxu0 %v537
    %1233 = vmatmul.mubr.bf16.gmra.mxu0 %v536
    %v1234 = vpop.f32.mrf.mxu0
    %v1235 = vadd.f32 %v1138, %v1234
    %v1236 = vpop.f32.mrf.mxu0
    %v1237 = vpop.f32.mrf.mxu0
    %v1238 = vadd.f32 %v1141, %v1237
    %v1239 = vpop.f32.mrf.mxu0
    %1240 = vdwg.mxu0
    %1241 = vmatprep.subr.bf16.mxu0 0
    %1242 = vmatpush1.bf16.msra.mxu0 %v942
    %1243 = vmatprep.subr.bf16.mxu0 0
    %1244 = vmatpush1.bf16.msra.mxu0 %v941
    %1245 = vmatprep.subr.bf16.mxu0 0
    %1246 = vmatpush1.bf16.msra.mxu0 %v940
    %1247 = vmatprep.subr.bf16.mxu0 0
    %1248 = vmatpush1.bf16.msra.mxu0 %v939
    %1249 = vmatprep.subr.bf16.mxu0 0
    %1250 = vmatpush1.bf16.msra.mxu0 %v938
    %1251 = vmatprep.subr.bf16.mxu0 0
    %1252 = vmatpush1.bf16.msra.mxu0 %v937
    %1253 = vmatprep.subr.bf16.mxu0 0
    %1254 = vmatpush1.bf16.msra.mxu0 %v936
    %1255 = vmatprep.subr.bf16.mxu0 0
    %1256 = vmatpush1.bf16.msra.mxu0 %v935
    %1257 = vmatprep.subr.bf16.mxu0 0
    %1258 = vmatpush2.bf16.msra.mxu0 %v950
    %1259 = vmatprep.subr.bf16.mxu0 0
    %1260 = vmatpush2.bf16.msra.mxu0 %v949
    %1261 = vmatprep.subr.bf16.mxu0 0
    %1262 = vmatpush2.bf16.msra.mxu0 %v948
    %1263 = vmatprep.subr.bf16.mxu0 0
    %1264 = vmatpush2.bf16.msra.mxu0 %v947
    %1265 = vmatprep.subr.bf16.mxu0 0
    %1266 = vmatpush2.bf16.msra.mxu0 %v946
    %1267 = vmatprep.subr.bf16.mxu0 0
    %1268 = vmatpush2.bf16.msra.mxu0 %v945
    %1269 = vmatprep.subr.bf16.mxu0 0
    %1270 = vmatpush2.bf16.msra.mxu0 %v944
    %1271 = vmatprep.subr.bf16.mxu0 0
    %1272 = vmatpush2.bf16.msra.mxu0 %v943
    %1273 = vmatprep.mubr.bf16.mxu0 %v476
    %1274 = vmatmul.mubr.bf16.gmra.mxu0 %v475
    %v1275 = vpop.f32.mrf.mxu0
    %v1276 = vadd.f32 %v1179, %v1275
    %v1277 = vpop.f32.mrf.mxu0
    %v1278 = vpop.f32.mrf.mxu0
    %v1279 = vadd.f32 %v1182, %v1278
    %v1280 = vpop.f32.mrf.mxu0
    %1281 = vmatprep.mubr.bf16.mxu0 %v485
    %1282 = vmatmul.mubr.bf16.gmra.mxu0 %v484
    %v1283 = vpop.f32.mrf.mxu0
    %v1284 = vadd.f32 %v1187, %v1283
    %v1285 = vpop.f32.mrf.mxu0
    %v1286 = vpop.f32.mrf.mxu0
    %v1287 = vadd.f32 %v1190, %v1286
    %v1288 = vpop.f32.mrf.mxu0
    %1289 = vmatprep.mubr.bf16.mxu0 %v494
    %1290 = vmatmul.mubr.bf16.gmra.mxu0 %v493
    %v1291 = vpop.f32.mrf.mxu0
    %v1292 = vadd.f32 %v1195, %v1291
    %v1293 = vpop.f32.mrf.mxu0
    %v1294 = vpop.f32.mrf.mxu0
    %v1295 = vadd.f32 %v1198, %v1294
    %v1296 = vpop.f32.mrf.mxu0
    %1297 = vmatprep.mubr.bf16.mxu0 %v503
    %1298 = vmatmul.mubr.bf16.gmra.mxu0 %v502
    %v1299 = vpop.f32.mrf.mxu0
    %v1300 = vadd.f32 %v1203, %v1299
    %v1301 = vpop.f32.mrf.mxu0
    %v1302 = vpop.f32.mrf.mxu0
    %v1303 = vadd.f32 %v1206, %v1302
    %v1304 = vpop.f32.mrf.mxu0
    %1305 = vmatprep.mubr.bf16.mxu0 %v512
    %1306 = vmatmul.mubr.bf16.gmra.mxu0 %v511
    %v1307 = vpop.f32.mrf.mxu0
    %v1308 = vadd.f32 %v1211, %v1307
    %v1309 = vpop.f32.mrf.mxu0
    %v1310 = vpop.f32.mrf.mxu0
    %v1311 = vadd.f32 %v1214, %v1310
    %v1312 = vpop.f32.mrf.mxu0
    %1313 = vmatprep.mubr.bf16.mxu0 %v521
    %1314 = vmatmul.mubr.bf16.gmra.mxu0 %v520
    %v1315 = vpop.f32.mrf.mxu0
    %v1316 = vadd.f32 %v1219, %v1315
    %v1317 = vpop.f32.mrf.mxu0
    %v1318 = vpop.f32.mrf.mxu0
    %v1319 = vadd.f32 %v1222, %v1318
    %v1320 = vpop.f32.mrf.mxu0
    %1321 = vmatprep.mubr.bf16.mxu0 %v530
    %1322 = vmatmul.mubr.bf16.gmra.mxu0 %v529
    %v1323 = vpop.f32.mrf.mxu0
    %v1324 = vadd.f32 %v1227, %v1323
    %v1325 = vpop.f32.mrf.mxu0
    %v1326 = vpop.f32.mrf.mxu0
    %v1327 = vadd.f32 %v1230, %v1326
    %v1328 = vpop.f32.mrf.mxu0
    %1329 = vmatprep.mubr.bf16.mxu0 %v539
    %1330 = vmatmul.mubr.bf16.gmra.mxu0 %v538
    %v1331 = vpop.f32.mrf.mxu0
    %v1332 = vadd.f32 %v1235, %v1331
    %v1333 = vpop.f32.mrf.mxu0
    %v1334 = vpop.f32.mrf.mxu0
    %v1335 = vadd.f32 %v1238, %v1334
    %v1336 = vpop.f32.mrf.mxu0
    %1337 = vdwg.mxu0
    %1338 = vmatprep.subr.bf16.mxu0 0
    %1339 = vmatpush1.bf16.msra.mxu0 %v958
    %1340 = vmatprep.subr.bf16.mxu0 0
    %1341 = vmatpush1.bf16.msra.mxu0 %v957
    %1342 = vmatprep.subr.bf16.mxu0 0
    %1343 = vmatpush1.bf16.msra.mxu0 %v956
    %1344 = vmatprep.subr.bf16.mxu0 0
    %1345 = vmatpush1.bf16.msra.mxu0 %v955
    %1346 = vmatprep.subr.bf16.mxu0 0
    %1347 = vmatpush1.bf16.msra.mxu0 %v954
    %1348 = vmatprep.subr.bf16.mxu0 0
    %1349 = vmatpush1.bf16.msra.mxu0 %v953
    %1350 = vmatprep.subr.bf16.mxu0 0
    %1351 = vmatpush1.bf16.msra.mxu0 %v952
    %1352 = vmatprep.subr.bf16.mxu0 0
    %1353 = vmatpush1.bf16.msra.mxu0 %v951
    %1354 = vmatprep.subr.bf16.mxu0 0
    %1355 = vmatpush2.bf16.msra.mxu0 %v966
    %1356 = vmatprep.subr.bf16.mxu0 0
    %1357 = vmatpush2.bf16.msra.mxu0 %v965
    %1358 = vmatprep.subr.bf16.mxu0 0
    %1359 = vmatpush2.bf16.msra.mxu0 %v964
    %1360 = vmatprep.subr.bf16.mxu0 0
    %1361 = vmatpush2.bf16.msra.mxu0 %v963
    %1362 = vmatprep.subr.bf16.mxu0 0
    %1363 = vmatpush2.bf16.msra.mxu0 %v962
    %1364 = vmatprep.subr.bf16.mxu0 0
    %1365 = vmatpush2.bf16.msra.mxu0 %v961
    %1366 = vmatprep.subr.bf16.mxu0 0
    %1367 = vmatpush2.bf16.msra.mxu0 %v960
    %1368 = vmatprep.subr.bf16.mxu0 0
    %1369 = vmatpush2.bf16.msra.mxu0 %v959
    %1370 = vmatprep.mubr.bf16.mxu0 %v478
    %1371 = vmatmul.mubr.bf16.gmra.mxu0 %v477
    %v1372 = vpop.f32.mrf.mxu0
    %v1373 = vadd.f32 %v1276, %v1372
    %v1374 = vpop.f32.mrf.mxu0
    %v1375 = vpop.f32.mrf.mxu0
    %v1376 = vadd.f32 %v1279, %v1375
    %v1377 = vpop.f32.mrf.mxu0
    %1378 = vmatprep.mubr.bf16.mxu0 %v487
    %1379 = vmatmul.mubr.bf16.gmra.mxu0 %v486
    %v1380 = vpop.f32.mrf.mxu0
    %v1381 = vadd.f32 %v1284, %v1380
    %v1382 = vpop.f32.mrf.mxu0
    %v1383 = vpop.f32.mrf.mxu0
    %v1384 = vadd.f32 %v1287, %v1383
    %v1385 = vpop.f32.mrf.mxu0
    %1386 = vmatprep.mubr.bf16.mxu0 %v496
    %1387 = vmatmul.mubr.bf16.gmra.mxu0 %v495
    %v1388 = vpop.f32.mrf.mxu0
    %v1389 = vadd.f32 %v1292, %v1388
    %v1390 = vpop.f32.mrf.mxu0
    %v1391 = vpop.f32.mrf.mxu0
    %v1392 = vadd.f32 %v1295, %v1391
    %v1393 = vpop.f32.mrf.mxu0
    %1394 = vmatprep.mubr.bf16.mxu0 %v505
    %1395 = vmatmul.mubr.bf16.gmra.mxu0 %v504
    %v1396 = vpop.f32.mrf.mxu0
    %v1397 = vadd.f32 %v1300, %v1396
    %v1398 = vpop.f32.mrf.mxu0
    %v1399 = vpop.f32.mrf.mxu0
    %v1400 = vadd.f32 %v1303, %v1399
    %v1401 = vpop.f32.mrf.mxu0
    %1402 = vmatprep.mubr.bf16.mxu0 %v514
    %1403 = vmatmul.mubr.bf16.gmra.mxu0 %v513
    %v1404 = vpop.f32.mrf.mxu0
    %v1405 = vadd.f32 %v1308, %v1404
    %v1406 = vpop.f32.mrf.mxu0
    %v1407 = vpop.f32.mrf.mxu0
    %v1408 = vadd.f32 %v1311, %v1407
    %v1409 = vpop.f32.mrf.mxu0
    %1410 = vmatprep.mubr.bf16.mxu0 %v523
    %1411 = vmatmul.mubr.bf16.gmra.mxu0 %v522
    %v1412 = vpop.f32.mrf.mxu0
    %v1413 = vadd.f32 %v1316, %v1412
    %v1414 = vpop.f32.mrf.mxu0
    %v1415 = vpop.f32.mrf.mxu0
    %v1416 = vadd.f32 %v1319, %v1415
    %v1417 = vpop.f32.mrf.mxu0
    %1418 = vmatprep.mubr.bf16.mxu0 %v532
    %1419 = vmatmul.mubr.bf16.gmra.mxu0 %v531
    %v1420 = vpop.f32.mrf.mxu0
    %v1421 = vadd.f32 %v1324, %v1420
    %v1422 = vpop.f32.mrf.mxu0
    %v1423 = vpop.f32.mrf.mxu0
    %v1424 = vadd.f32 %v1327, %v1423
    %v1425 = vpop.f32.mrf.mxu0
    %1426 = vmatprep.mubr.bf16.mxu0 %v541
    %1427 = vmatmul.mubr.bf16.gmra.mxu0 %v540
    %v1428 = vpop.f32.mrf.mxu0
    %v1429 = vadd.f32 %v1332, %v1428
    %v1430 = vpop.f32.mrf.mxu0
    %v1431 = vpop.f32.mrf.mxu0
    %v1432 = vadd.f32 %v1335, %v1431
    %v1433 = vpop.f32.mrf.mxu0
    %1434 = vdwg.mxu0
    %1435 = vmatprep.subr.bf16.mxu0 0
    %1436 = vmatpush1.bf16.msra.mxu0 %v974
    %1437 = vmatprep.subr.bf16.mxu0 0
    %1438 = vmatpush1.bf16.msra.mxu0 %v973
    %1439 = vmatprep.subr.bf16.mxu0 0
    %1440 = vmatpush1.bf16.msra.mxu0 %v972
    %1441 = vmatprep.subr.bf16.mxu0 0
    %1442 = vmatpush1.bf16.msra.mxu0 %v971
    %1443 = vmatprep.subr.bf16.mxu0 0
    %1444 = vmatpush1.bf16.msra.mxu0 %v970
    %1445 = vmatprep.subr.bf16.mxu0 0
    %1446 = vmatpush1.bf16.msra.mxu0 %v969
    %1447 = vmatprep.subr.bf16.mxu0 0
    %1448 = vmatpush1.bf16.msra.mxu0 %v968
    %1449 = vmatprep.subr.bf16.mxu0 0
    %1450 = vmatpush1.bf16.msra.mxu0 %v967
    %1451 = vmatprep.subr.bf16.mxu0 0
    %1452 = vmatpush2.bf16.msra.mxu0 0
    %1453 = vmatprep.subr.bf16.mxu0 0
    %1454 = vmatpush2.bf16.msra.mxu0 0
    %1455 = vmatprep.subr.bf16.mxu0 0
    %1456 = vmatpush2.bf16.msra.mxu0 0
    %1457 = vmatprep.subr.bf16.mxu0 0
    %1458 = vmatpush2.bf16.msra.mxu0 0
    %1459 = vmatprep.subr.bf16.mxu0 0
    %1460 = vmatpush2.bf16.msra.mxu0 0
    %1461 = vmatprep.subr.bf16.mxu0 0
    %1462 = vmatpush2.bf16.msra.mxu0 0
    %1463 = vmatprep.subr.bf16.mxu0 0
    %1464 = vmatpush2.bf16.msra.mxu0 0
    %1465 = vmatprep.subr.bf16.mxu0 0
    %1466 = vmatpush2.bf16.msra.mxu0 0
    %1467 = vmatprep.mubr.bf16.mxu0 0
    %1468 = vmatmul.mubr.bf16.gmra.mxu0 %v479
    %v1469 = vpop.f32.mrf.mxu0
    %v1470 = vadd.f32 %v1373, %v1469
    %v1471 = vpop.f32.mrf.mxu0
    %v1472 = vpop.f32.mrf.mxu0
    %v1473 = vadd.f32 %v1376, %v1472
    %v1474 = vpop.f32.mrf.mxu0
    %1475 = vmatprep.mubr.bf16.mxu0 0
    %1476 = vmatmul.mubr.bf16.gmra.mxu0 %v488
    %v1477 = vpop.f32.mrf.mxu0
    %v1478 = vadd.f32 %v1381, %v1477
    %v1479 = vpop.f32.mrf.mxu0
    %v1480 = vpop.f32.mrf.mxu0
    %v1481 = vadd.f32 %v1384, %v1480
    %v1482 = vpop.f32.mrf.mxu0
    %1483 = vmatprep.mubr.bf16.mxu0 0
    %1484 = vmatmul.mubr.bf16.gmra.mxu0 %v497
    %v1485 = vpop.f32.mrf.mxu0
    %v1486 = vadd.f32 %v1389, %v1485
    %v1487 = vpop.f32.mrf.mxu0
    %v1488 = vpop.f32.mrf.mxu0
    %v1489 = vadd.f32 %v1392, %v1488
    %v1490 = vpop.f32.mrf.mxu0
    %1491 = vmatprep.mubr.bf16.mxu0 0
    %1492 = vmatmul.mubr.bf16.gmra.mxu0 %v506
    %v1493 = vpop.f32.mrf.mxu0
    %v1494 = vadd.f32 %v1397, %v1493
    %v1495 = vpop.f32.mrf.mxu0
    %v1496 = vpop.f32.mrf.mxu0
    %v1497 = vadd.f32 %v1400, %v1496
    %v1498 = vpop.f32.mrf.mxu0
    %1499 = vmatprep.mubr.bf16.mxu0 0
    %1500 = vmatmul.mubr.bf16.gmra.mxu0 %v515
    %v1501 = vpop.f32.mrf.mxu0
    %v1502 = vadd.f32 %v1405, %v1501
    %v1503 = vpop.f32.mrf.mxu0
    %v1504 = vpop.f32.mrf.mxu0
    %v1505 = vadd.f32 %v1408, %v1504
    %v1506 = vpop.f32.mrf.mxu0
    %1507 = vmatprep.mubr.bf16.mxu0 0
    %1508 = vmatmul.mubr.bf16.gmra.mxu0 %v524
    %v1509 = vpop.f32.mrf.mxu0
    %v1510 = vadd.f32 %v1413, %v1509
    %v1511 = vpop.f32.mrf.mxu0
    %v1512 = vpop.f32.mrf.mxu0
    %v1513 = vadd.f32 %v1416, %v1512
    %v1514 = vpop.f32.mrf.mxu0
    %1515 = vmatprep.mubr.bf16.mxu0 0
    %1516 = vmatmul.mubr.bf16.gmra.mxu0 %v533
    %v1517 = vpop.f32.mrf.mxu0
    %v1518 = vadd.f32 %v1421, %v1517
    %v1519 = vpop.f32.mrf.mxu0
    %v1520 = vpop.f32.mrf.mxu0
    %v1521 = vadd.f32 %v1424, %v1520
    %v1522 = vpop.f32.mrf.mxu0
    %1523 = vmatprep.mubr.bf16.mxu0 0
    %1524 = vmatmul.mubr.bf16.gmra.mxu0 %v542
    %v1525 = vpop.f32.mrf.mxu0
    %v1526 = vadd.f32 %v1429, %v1525
    %v1527 = vpop.f32.mrf.mxu0
    %v1528 = vpop.f32.mrf.mxu0
    %v1529 = vadd.f32 %v1432, %v1528
    %v1530 = vpop.f32.mrf.mxu0
    %1531 = vdwg.mxu0
    %1532 = vst [vmem:[#allocation2] sm:$0xff] %v1470
    %1533 = vst [vmem:[#allocation2 + $0x8] sm:$0xff] %v1473
    %1534 = vst [vmem:[#allocation2 + $0x10] sm:$0xff] %v1478
    %1535 = vst [vmem:[#allocation2 + $0x18] sm:$0xff] %v1481
    %1536 = vst [vmem:[#allocation2 + $0x20] sm:$0xff] %v1486
    %1537 = vst [vmem:[#allocation2 + $0x28] sm:$0xff] %v1489
    %1538 = vst [vmem:[#allocation2 + $0x30] sm:$0xff] %v1494
    %1539 = vst [vmem:[#allocation2 + $0x38] sm:$0xff] %v1497
    %1540 = vst [vmem:[#allocation2 + $0x40] sm:$0xff] %v1502
    %1541 = vst [vmem:[#allocation2 + $0x48] sm:$0xff] %v1505
    %1542 = vst [vmem:[#allocation2 + $0x50] sm:$0xff] %v1510
    %1543 = vst [vmem:[#allocation2 + $0x58] sm:$0xff] %v1513
    %1544 = vst [vmem:[#allocation2 + $0x60] sm:$0xff] %v1518
    %1545 = vst [vmem:[#allocation2 + $0x68] sm:$0xff] %v1521
    %1546 = vst [vmem:[#allocation2 + $0x70] sm:$0xff] %v1526
    %1547 = vst [vmem:[#allocation2 + $0x78] sm:$0xff] %v1529
    // Predicated region
    $region14: #{a_call__.5} parent=1 // pred_check
      _
    $region15: #{a_call__.5} parent=1 // pred_check_branch
      %1549 = sbr.rel (0) target = $region17
    $region16: #{a_call__.5} parent=1 // pred_region
      %s1551 = ssub.s32 2048, 2048
      %1552 = vsyncadd [#allocation3], %s1551
      %s1553 = sshll.u32 [#allocation2], 4
      %s1554 = int_to_ptr.vmem [resolvable:$true] %s1553
      %1559 = dma.vmem_to_hbm [thread:$0]  %s1554, 2048, %s3, [#allocation3], 128, 128, 8
    $region17: #{a_call__.5} parent=1 // pred_fallthru
      _
    // Predicated region
    $region18: #{a_call__.5} parent=1 // pred_check
      _
    $region19: #{a_call__.5} parent=1 // pred_check_branch
      %1561 = sbr.rel (0) target = $region21
    $region20: #{a_call__.5} parent=1 // pred_region
      %1562 = dma.done [#allocation3], 2048
    $region21: #{a_call__.5} parent=1 // pred_fallthru
      _
    %1563 = vsyncpa [#allocation3], 1

</llo_original>
